<compile_context>
chip_gen: v7x
topology: tpu7x:2x2x1
jax: 0.10.0
libtpu: 0.0.40
codegen_flags: <defaults>
</compile_context>

<pallas_src>
import functools

import jax
import jax.numpy as jnp
from jax import lax
from jax.experimental import pallas as pl
from jax.experimental.pallas import tpu as pltpu

ACT_DTYPE = jnp.bfloat16          # activation / MXU-weight dtype
HEAD_PAD = 128                    # pad head output to a full lane width


def _query_phys_vmem():
    try:
        return int(pltpu.get_tpu_info().vmem_capacity_bytes)
    except Exception:
        return 64 << 20           # conservative (v7x-sized) fallback


_PHYS_VMEM = _query_phys_vmem()
_DUAL_TC = _PHYS_VMEM < (100 << 20)        # v7x heuristic: 64 MiB/TC, 2 TensorCores
VMEM_LIMIT = (32 << 20) if _DUAL_TC else (96 << 20)
ROW_TILE = 512 if _DUAL_TC else 1024


def _mosaic_params():
    return pltpu.CompilerParams(
        dimension_semantics=("parallel",),
        vmem_limit_bytes=VMEM_LIMIT,
    )


def _row_tile(m):
    """Row tile (multiple of 8).  On dual-TensorCore parts guarantee >= 2 grid
    blocks so both cores are busy; on single-TC parts favor the largest tile."""
    if _DUAL_TC and m > 8:
        return min(ROW_TILE, ((m + 15) // 16) * 8)   # ~ceil(m/2) rounded to 8
    return m if m <= ROW_TILE else ROW_TILE


def _ln_f32(x, g, b, eps):
    mu = jnp.mean(x, axis=-1, keepdims=True)
    xc = x - mu
    var = jnp.mean(xc * xc, axis=-1, keepdims=True)
    return (xc * lax.rsqrt(var + eps)) * g + b


# ----------------------------------------------------------------------------
# Kernel: patch-to-embedding linear
# ----------------------------------------------------------------------------
# TODO(synk): K = in_chans (2-3) is a degenerate MXU contraction; a VPU
# broadcast-MAC would be marginally better but needs a lane-offset broadcast
# relayout — kept on the proven MXU path for compile safety (op runs once).
def _embed_kernel(x_ref, w_ref, b_ref, o_ref):
    x = x_ref[...].astype(w_ref.dtype)
    acc = jnp.dot(x, w_ref[...], preferred_element_type=jnp.float32) + b_ref[...]
    o_ref[...] = acc.astype(o_ref.dtype)


def embed_linear(x2d, w, b):
    M, K = x2d.shape
    N = w.shape[1]
    TM = _row_tile(M)
    return pl.pallas_call(
        _embed_kernel,
        out_shape=jax.ShapeDtypeStruct((M, N), ACT_DTYPE),
        grid=(pl.cdiv(M, TM),),
        in_specs=[
            pl.BlockSpec((TM, K), lambda i: (i, 0)),
            pl.BlockSpec((K, N), lambda i: (0, 0)),
            pl.BlockSpec((1, N), lambda i: (0, 0)),
        ],
        out_specs=pl.BlockSpec((TM, N), lambda i: (i, 0)),
        compiler_params=_mosaic_params(),
    )(x2d, w, b.reshape(1, N))


# ----------------------------------------------------------------------------
# Kernel: fused LayerNorm1 + in-projection (ONE fused (D, 2D) GEMM -> u, gate)
# ----------------------------------------------------------------------------
def _ln_in_proj_kernel(x_ref, g_ref, b_ref, w_ref, bias_ref, u_ref, z_ref,
                       *, eps, D):
    xn = _ln_f32(x_ref[...].astype(jnp.float32), g_ref[...], b_ref[...], eps)
    acc = jnp.dot(xn.astype(w_ref.dtype), w_ref[...],
                  preferred_element_type=jnp.float32) + bias_ref[...]
    u_ref[...] = acc[:, :D].astype(u_ref.dtype)
    z_ref[...] = acc[:, D:].astype(z_ref.dtype)


def ln_in_proj(x2d, ln_g, ln_b, w_in, b_in, eps=1e-6):
    M, D = x2d.shape
    N2 = w_in.shape[1]            # = 2 * D  (fused [w_u | w_g])
    TM = _row_tile(M)
    return pl.pallas_call(
        functools.partial(_ln_in_proj_kernel, eps=eps, D=D),
        out_shape=(jax.ShapeDtypeStruct((M, D), ACT_DTYPE),
                   jax.ShapeDtypeStruct((M, D), ACT_DTYPE)),
        grid=(pl.cdiv(M, TM),),
        in_specs=[
            pl.BlockSpec((TM, D), lambda i: (i, 0)),
            pl.BlockSpec((1, D), lambda i: (0, 0)),
            pl.BlockSpec((1, D), lambda i: (0, 0)),
            pl.BlockSpec((D, N2), lambda i: (0, 0)),
            pl.BlockSpec((1, N2), lambda i: (0, 0)),
        ],
        out_specs=(pl.BlockSpec((TM, D), lambda i: (i, 0)),
                   pl.BlockSpec((TM, D), lambda i: (i, 0))),
        compiler_params=_mosaic_params(),
    )(x2d, ln_g.reshape(1, D), ln_b.reshape(1, D), w_in, b_in.reshape(1, N2))


# ----------------------------------------------------------------------------
# Kernel: bidirectional per-channel linear recurrence + SiLU gating
#   Log-depth doubling scan: ceil(log2(L)) full-slab passes (roll + mask +
#   mul-add) instead of an L-step serial loop.  Gating / store done in bulk.
# ----------------------------------------------------------------------------
def _bi_scan_kernel(u_ref, g_ref, af_ref, ab_ref, o_ref):
    L, D = u_ref.shape
    u = u_ref[...].astype(jnp.float32)                 # (L, D)
    g = g_ref[...].astype(jnp.float32)
    row = lax.broadcasted_iota(jnp.int32, (L, D), 0)

    # forward prefix:  hf[t] = sum_{s<=t} af^(t-s) * u[s]
    hf = u
    a_pow = af_ref[...]                                # (1, D)
    k = 1
    while k < L:                                       # static unrolled passes
        sh = jnp.where(row >= k, pltpu.roll(hf, k, axis=0), 0.0)
        hf = hf + a_pow * sh
        a_pow = a_pow * a_pow
        k *= 2

    # backward (reversed) prefix:  hb[t] = sum_{s>=t} ab^(s-t) * u[s]
    hb = u
    b_pow = ab_ref[...]
    k = 1
    while k < L:
        sh = jnp.where(row < L - k, pltpu.roll(hb, L - k, axis=0), 0.0)
        hb = hb + b_pow * sh
        b_pow = b_pow * b_pow
        k *= 2

    # SiLU gating + single bulk lane-dense store (no per-step masked stores)
    y = (hf + hb) * (g * jax.nn.sigmoid(g))
    o_ref[...] = y.astype(o_ref.dtype)


def bi_scan(u, g, a_fwd, a_bwd):
    """u, g: (B, L, D); a_fwd, a_bwd: (D,).  Grid over B ('parallel')."""
    B, L, D = u.shape
    seq_spec = pl.BlockSpec((None, L, D), lambda b: (b, 0, 0))
    vec_spec = pl.BlockSpec((1, D), lambda b: (0, 0))
    return pl.pallas_call(
        _bi_scan_kernel,
        out_shape=jax.ShapeDtypeStruct((B, L, D), ACT_DTYPE),
        grid=(B,),
        in_specs=[seq_spec, seq_spec, vec_spec, vec_spec],
        out_specs=pl.BlockSpec((None, L, D), lambda b: (b, 0, 0)),
        compiler_params=_mosaic_params(),
    )(u, g, a_fwd.reshape(1, D), a_bwd.reshape(1, D))


# ----------------------------------------------------------------------------
# Kernel: fused out-proj + residual + LN2 + MLP + residual + stage LayerNorm
# ----------------------------------------------------------------------------
def _block_tail_kernel(res_ref, y_ref, wo_ref, bo_ref, ln2g_ref, ln2b_ref,
                       w1_ref, b1_ref, w2_ref, b2_ref, png_ref, pnb_ref,
                       o_ref, *, eps, post_eps):
    y = y_ref[...].astype(wo_ref.dtype)
    h = jnp.dot(y, wo_ref[...], preferred_element_type=jnp.float32) + bo_ref[...]
    h = res_ref[...].astype(jnp.float32) + h                     # residual 1
    hn = _ln_f32(h, ln2g_ref[...], ln2b_ref[...], eps).astype(w1_ref.dtype)
    m = jnp.dot(hn, w1_ref[...], preferred_element_type=jnp.float32) + b1_ref[...]
    # TODO(synk): PyTorch nn.GELU default is exact (erf); tanh approximation used.
    m = jax.nn.gelu(m, approximate=True)
    m = jnp.dot(m.astype(w2_ref.dtype), w2_ref[...],
                preferred_element_type=jnp.float32) + b2_ref[...]
    out = h + m                                                  # residual 2
    on = _ln_f32(out, png_ref[...], pnb_ref[...], post_eps)      # stage norm
    o_ref[...] = on.astype(o_ref.dtype)


def block_tail(res2d, y2d, p, post_g, post_b, post_eps, eps=1e-6):
    M, D = res2d.shape
    H = p["w1"].shape[1]
    TM = _row_tile(M)
    row = lambda i: (i, 0)
    full = lambda i: (0, 0)
    return pl.pallas_call(
        functools.partial(_block_tail_kernel, eps=eps, post_eps=post_eps),
        out_shape=jax.ShapeDtypeStruct((M, D), ACT_DTYPE),
        grid=(pl.cdiv(M, TM),),
        in_specs=[
            pl.BlockSpec((TM, D), row),        # residual input (pre-LN1 x)
            pl.BlockSpec((TM, D), row),        # scan output
            pl.BlockSpec((D, D), full),        # w_out
            pl.BlockSpec((1, D), full),        # b_out
            pl.BlockSpec((1, D), full),        # ln2 gamma
            pl.BlockSpec((1, D), full),        # ln2 beta
            pl.BlockSpec((D, H), full),        # mlp w1
            pl.BlockSpec((1, H), full),        # mlp b1
            pl.BlockSpec((H, D), full),        # mlp w2
            pl.BlockSpec((1, D), full),        # mlp b2
            pl.BlockSpec((1, D), full),        # stage-norm gamma
            pl.BlockSpec((1, D), full),        # stage-norm beta
        ],
        out_specs=pl.BlockSpec((TM, D), row),
        compiler_params=_mosaic_params(),
    )(res2d, y2d, p["w_out"], p["b_out"].reshape(1, D),
      p["ln2_g"].reshape(1, D), p["ln2_b"].reshape(1, D),
      p["w1"], p["b1"].reshape(1, H), p["w2"], p["b2"].reshape(1, D),
      post_g.reshape(1, D), post_b.reshape(1, D))


# ----------------------------------------------------------------------------
# Kernel: fused head LayerNorm (eps=1e-5) + Linear(D, 3) padded to 128 lanes
# Output emitted in bf16 (sliced / cast to f32 outside).
# ----------------------------------------------------------------------------
def _head_kernel(x_ref, g_ref, b_ref, w_ref, bias_ref, o_ref, *, eps):
    xn = _ln_f32(x_ref[...].astype(jnp.float32), g_ref[...], b_ref[...], eps)
    acc = jnp.dot(xn.astype(w_ref.dtype), w_ref[...],
                  preferred_element_type=jnp.float32) + bias_ref[...]
    o_ref[...] = acc.astype(o_ref.dtype)


def head(x2d, ln_g, ln_b, w_pad, b_pad, eps=1e-5):
    M, D = x2d.shape
    N = w_pad.shape[1]
    TM = _row_tile(M)
    return pl.pallas_call(
        functools.partial(_head_kernel, eps=eps),
        out_shape=jax.ShapeDtypeStruct((M, N), ACT_DTYPE),
        grid=(pl.cdiv(M, TM),),
        in_specs=[
            pl.BlockSpec((TM, D), lambda i: (i, 0)),
            pl.BlockSpec((1, D), lambda i: (0, 0)),
            pl.BlockSpec((1, D), lambda i: (0, 0)),
            pl.BlockSpec((D, N), lambda i: (0, 0)),
            pl.BlockSpec((1, N), lambda i: (0, 0)),
        ],
        out_specs=pl.BlockSpec((TM, N), lambda i: (i, 0)),
        compiler_params=_mosaic_params(),
    )(x2d, ln_g.reshape(1, D), ln_b.reshape(1, D), w_pad, b_pad.reshape(1, N))


# ----------------------------------------------------------------------------
# BiSTSSMBlock stand-in (pre-norm bidirectional SSM mixer + pre-norm MLP)
# ----------------------------------------------------------------------------
# TODO(synk): the reference `BiSTSSMBlock` (forward_type='v2_plus_poselimbs')
# is not defined in the provided source; this block reproduces its residual /
# norm / mlp_ratio structure with a bidirectional gated scan as the token mixer.
def block_apply(x3d, p, post_g, post_b, post_eps=1e-6):
    """x3d: (B, L, D) -> (B, L, D); stage LayerNorm fused into the tail kernel."""
    B, L, D = x3d.shape
    x2d = x3d.reshape(B * L, D)
    u, g = ln_in_proj(x2d, p["ln1_g"], p["ln1_b"], p["w_in"], p["b_in"])
    y = bi_scan(u.reshape(B, L, D), g.reshape(B, L, D), p["a_fwd"], p["a_bwd"])
    out = block_tail(x2d, y.reshape(B * L, D), p, post_g, post_b, post_eps)
    return out.reshape(B, L, D)


# ----------------------------------------------------------------------------
# PoseMamba forward
# ----------------------------------------------------------------------------
def pose_mamba_forward(x, params, depth):
    b, f, n, c = x.shape
    D = params["W_embed"].shape[1]

    # ---- STE_forward ----
    xe = embed_linear(x.reshape(b * f * n, c), params["W_embed"], params["b_embed"])
    xe = xe.reshape(b, f, n, D) + params["spatial_pos"][:, None, :, :]   # pos_drop(p=0)=id
    x3 = block_apply(xe.reshape(b, f * n, D), params["ste"][0],
                     params["sn_g"], params["sn_b"]).reshape(b, f, n, D)

    # ---- TTE_forward ---- (temporal pos broadcast-added in (b,f,n,D) layout)
    x3 = x3 + params["temporal_pos"][:, :f, None, :]
    x3 = block_apply(x3.reshape(b, f * n, D), params["tte"][0],
                     params["tn_g"], params["tn_b"]).reshape(b, f, n, D)

    # ---- ST_forward ----
    for i in range(1, depth):
        x3 = block_apply(x3.reshape(b, f * n, D), params["ste"][i],
                         params["sn_g"], params["sn_b"]).reshape(b, f, n, D)
        x3 = block_apply(x3.reshape(b, f * n, D), params["tte"][i],
                         params["tn_g"], params["tn_b"]).reshape(b, f, n, D)

    # ---- head: fused LayerNorm(eps=1e-5) + Linear(D, 3) (padded to 128 lanes) ----
    out = head(x3.reshape(-1, D), params["head_ln_g"], params["head_ln_b"],
               params["W_head_p"], params["b_head_p"])
    return out[:, :3].astype(jnp.float32).reshape(b, f, n, 3)


# ----------------------------------------------------------------------------
# Deterministic parameter initialization (bf16 GEMM weights, f32 norms/biases)
# ----------------------------------------------------------------------------
def _winit(key, shape, scale=0.02, dtype=ACT_DTYPE):
    return (jax.random.normal(key, shape, jnp.float32) * scale).astype(dtype)


def init_block(key, D, H):
    ks = jax.random.split(key, 6)
    return {
        "ln1_g": jnp.ones((D,), jnp.float32),
        "ln1_b": jnp.zeros((D,), jnp.float32),
        "w_in": _winit(ks[0], (D, 2 * D)),          # fused [w_u | w_g]
        "b_in": jnp.zeros((2 * D,), jnp.float32),
        "a_fwd": jax.nn.sigmoid(jax.random.normal(ks[1], (D,), jnp.float32)),
        "a_bwd": jax.nn.sigmoid(jax.random.normal(ks[2], (D,), jnp.float32)),
        "w_out": _winit(ks[3], (D, D)),
        "b_out": jnp.zeros((D,), jnp.float32),
        "ln2_g": jnp.ones((D,), jnp.float32),
        "ln2_b": jnp.zeros((D,), jnp.float32),
        "w1": _winit(ks[4], (D, H)),
        "b1": jnp.zeros((H,), jnp.float32),
        "w2": _winit(ks[5], (H, D)),
        "b2": jnp.zeros((D,), jnp.float32),
    }


def init_params(key, *, in_chans, num_frame, num_joints, D, depth, mlp_ratio):
    H = int(D * mlp_ratio)
    ks = jax.random.split(key, depth * 2 + 8)
    w_head = _winit(ks[3], (D, 3), dtype=jnp.float32)
    w_head_p = jnp.zeros((D, HEAD_PAD), jnp.float32).at[:, :3].set(w_head)
    return {
        "W_embed": _winit(ks[0], (in_chans, D)),
        "b_embed": jnp.zeros((D,), jnp.float32),
        "spatial_pos": _winit(ks[1], (1, num_joints, D)),
        "temporal_pos": _winit(ks[2], (1, num_frame, D)),
        "sn_g": jnp.ones((D,), jnp.float32),
        "sn_b": jnp.zeros((D,), jnp.float32),
        "tn_g": jnp.ones((D,), jnp.float32),
        "tn_b": jnp.zeros((D,), jnp.float32),
        "head_ln_g": jnp.ones((D,), jnp.float32),
        "head_ln_b": jnp.zeros((D,), jnp.float32),
        "W_head_p": w_head_p.astype(ACT_DTYPE),
        "b_head_p": jnp.zeros((HEAD_PAD,), jnp.float32),
        "ste": [init_block(ks[4 + i], D, H) for i in range(depth)],
        "tte": [init_block(ks[4 + depth + i], D, H) for i in range(depth)],
    }


# ----------------------------------------------------------------------------
if __name__ == "__main__":
    # Small, module-consistent shapes: batch=2, frames=4, joints=8, in_chans=2,
    # embed_dim_ratio=32, depth=2, mlp_ratio=2.0.
    B, F, N, C = 2, 4, 8, 2
    D, DEPTH, MLP_RATIO = 32, 2, 2.0

    key = jax.random.PRNGKey(0)
    k_x, k_p = jax.random.split(key)
    x = jax.random.normal(k_x, (B, F, N, C), jnp.float32)
    params = init_params(k_p, in_chans=C, num_frame=F, num_joints=N,
                         D=D, depth=DEPTH, mlp_ratio=MLP_RATIO)

    fwd = jax.jit(functools.partial(pose_mamba_forward, depth=DEPTH))
    out = jax.block_until_ready(fwd(x, params))

    assert out.shape == (B, F, N, 3), out.shape
    assert bool(jnp.all(jnp.isfinite(out)))
    print("KERNEL_OK")
</pallas_src>

<mosaic_0001>
module attributes {stable_mosaic.version = 11 : i64} {
  func.func @_embed_kernel(%arg0: i32, %arg1: memref<32x2xf32, #tpu.memory_space<vmem>>, %arg2: memref<2x32xbf16, #tpu.memory_space<vmem>>, %arg3: memref<1x32xf32, #tpu.memory_space<vmem>>, %arg4: memref<32x32xbf16, #tpu.memory_space<vmem>>) attributes {dimension_semantics = [#tpu.dimension_semantics<parallel>], iteration_bounds = array<i64: 2>, scalar_prefetch = 0 : i64, scratch_operands = 0 : i64, tpu.core_type = #tpu.core_type<tc>, window_params = [{transform_indices = @transform_0, window_bounds = array<i64: 32, 2>}, {pipeline_mode = #tpu.pipeline_mode<synchronous>, transform_indices = @transform_1, window_bounds = array<i64: 2, 32>}, {pipeline_mode = #tpu.pipeline_mode<synchronous>, transform_indices = @transform_2, window_bounds = array<i64: 1, 32>}, {transform_indices = @transform_3, window_bounds = array<i64: 32, 32>}]} {
    %c0 = arith.constant 0 : index
    %c0_0 = arith.constant 0 : index
    %0 = vector.load %arg1[%c0, %c0_0] : memref<32x2xf32, #tpu.memory_space<vmem>>, vector<32x2xf32>
    %1 = arith.truncf %0 : vector<32x2xf32> to vector<32x2xbf16>
    %c0_1 = arith.constant 0 : index
    %c0_2 = arith.constant 0 : index
    %2 = vector.load %arg2[%c0_1, %c0_2] : memref<2x32xbf16, #tpu.memory_space<vmem>>, vector<2x32xbf16>
    %cst = arith.constant dense<0.000000e+00> : vector<32x32xf32>
    %3 = tpu.matmul %1, %2, %cst {dimension_numbers = #tpu.dot_dimension_numbers<[1], [0], [0], [1], [0, 0, 1, 1], [], []>} : vector<32x2xbf16>, vector<2x32xbf16>, vector<32x32xf32> -> vector<32x32xf32>
    %c0_3 = arith.constant 0 : index
    %c0_4 = arith.constant 0 : index
    %4 = vector.load %arg3[%c0_3, %c0_4] : memref<1x32xf32, #tpu.memory_space<vmem>>, vector<1x32xf32>
    %5 = vector.broadcast %4 : vector<1x32xf32> to vector<32x32xf32>
    %6 = arith.addf %3, %5 : vector<32x32xf32>
    %7 = arith.truncf %6 : vector<32x32xf32> to vector<32x32xbf16>
    %c0_5 = arith.constant 0 : index
    %c0_6 = arith.constant 0 : index
    %8 = vector.load %arg4[%c0_5, %c0_6] : memref<32x32xbf16, #tpu.memory_space<vmem>>, vector<32x32xbf16>
    tpu.vector_store %arg4[%c0_5, %c0_6], %7 {strides = array<i32>} : memref<32x32xbf16, #tpu.memory_space<vmem>>, vector<32x32xbf16>,
    return
  }
  func.func @transform_0(%arg0: i32) -> (i32, i32) {
    %c0_i32 = arith.constant 0 : i32
    %c0_i32_0 = arith.constant 0 : i32
    return %arg0, %c0_i32 : i32, i32
  }
  func.func @transform_1(%arg0: i32) -> (i32, i32) {
    %c0_i32 = arith.constant 0 : i32
    %c0_i32_0 = arith.constant 0 : i32
    %c0_i32_1 = arith.constant 0 : i32
    return %c0_i32, %c0_i32_0 : i32, i32
  }
  func.func @transform_2(%arg0: i32) -> (i32, i32) {
    %c0_i32 = arith.constant 0 : i32
    %c0_i32_0 = arith.constant 0 : i32
    %c0_i32_1 = arith.constant 0 : i32
    return %c0_i32, %c0_i32_0 : i32, i32
  }
  func.func @transform_3(%arg0: i32) -> (i32, i32) {
    %c0_i32 = arith.constant 0 : i32
    %c0_i32_0 = arith.constant 0 : i32
    return %arg0, %c0_i32 : i32, i32
  }
}

module attributes {stable_mosaic.version = 11 : i64} {
  func.func @_ln_in_proj_kernel(%arg0: i32, %arg1: memref<32x32xbf16, #tpu.memory_space<vmem>>, %arg2: memref<1x32xf32, #tpu.memory_space<vmem>>, %arg3: memref<1x32xf32, #tpu.memory_space<vmem>>, %arg4: memref<32x64xbf16, #tpu.memory_space<vmem>>, %arg5: memref<1x64xf32, #tpu.memory_space<vmem>>, %arg6: memref<32x32xbf16, #tpu.memory_space<vmem>>, %arg7: memref<32x32xbf16, #tpu.memory_space<vmem>>) attributes {dimension_semantics = [#tpu.dimension_semantics<parallel>], iteration_bounds = array<i64: 2>, scalar_prefetch = 0 : i64, scratch_operands = 0 : i64, tpu.core_type = #tpu.core_type<tc>, window_params = [{transform_indices = @transform_0, window_bounds = array<i64: 32, 32>}, {pipeline_mode = #tpu.pipeline_mode<synchronous>, transform_indices = @transform_1, window_bounds = array<i64: 1, 32>}, {pipeline_mode = #tpu.pipeline_mode<synchronous>, transform_indices = @transform_2, window_bounds = array<i64: 1, 32>}, {pipeline_mode = #tpu.pipeline_mode<synchronous>, transform_indices = @transform_3, window_bounds = array<i64: 32, 64>}, {pipeline_mode = #tpu.pipeline_mode<synchronous>, transform_indices = @transform_4, window_bounds = array<i64: 1, 64>}, {transform_indices = @transform_5, window_bounds = array<i64: 32, 32>}, {transform_indices = @transform_6, window_bounds = array<i64: 32, 32>}]} {
    %c0 = arith.constant 0 : index
    %c0_0 = arith.constant 0 : index
    %0 = vector.load %arg1[%c0, %c0_0] : memref<32x32xbf16, #tpu.memory_space<vmem>>, vector<32x32xbf16>
    %1 = arith.extf %0 : vector<32x32xbf16> to vector<32x32xf32>
    %c0_1 = arith.constant 0 : index
    %c0_2 = arith.constant 0 : index
    %2 = vector.load %arg2[%c0_1, %c0_2] : memref<1x32xf32, #tpu.memory_space<vmem>>, vector<1x32xf32>
    %c0_3 = arith.constant 0 : index
    %c0_4 = arith.constant 0 : index
    %3 = vector.load %arg3[%c0_3, %c0_4] : memref<1x32xf32, #tpu.memory_space<vmem>>, vector<1x32xf32>
    %cst = arith.constant dense<0.000000e+00> : vector<32xf32>
    %4 = vector.multi_reduction <add>, %1, %cst [1] : vector<32x32xf32> to vector<32xf32>
    %5 = vector.shape_cast %4 : vector<32xf32> to vector<32x1xf32>
    %cst_5 = arith.constant 3.200000e+01 : f32
    %6 = vector.broadcast %cst_5 : f32 to vector<32x1xf32>
    %7 = arith.divf %5, %6 : vector<32x1xf32>
    %8 = vector.broadcast %7 : vector<32x1xf32> to vector<32x32xf32>
    %9 = arith.subf %1, %8 : vector<32x32xf32>
    %10 = arith.mulf %9, %9 : vector<32x32xf32>
    %cst_6 = arith.constant dense<0.000000e+00> : vector<32xf32>
    %11 = vector.multi_reduction <add>, %10, %cst_6 [1] : vector<32x32xf32> to vector<32xf32>
    %12 = vector.shape_cast %11 : vector<32xf32> to vector<32x1xf32>
    %cst_7 = arith.constant 3.200000e+01 : f32
    %13 = vector.broadcast %cst_7 : f32 to vector<32x1xf32>
    %14 = arith.divf %12, %13 : vector<32x1xf32>
    %cst_8 = arith.constant 9.99999997E-7 : f32
    %15 = vector.broadcast %cst_8 : f32 to vector<32x1xf32>
    %16 = arith.addf %14, %15 : vector<32x1xf32>
    %17 = math.rsqrt %16 : vector<32x1xf32>
    %18 = vector.broadcast %17 : vector<32x1xf32> to vector<32x32xf32>
    %19 = arith.mulf %9, %18 : vector<32x32xf32>
    %20 = vector.broadcast %2 : vector<1x32xf32> to vector<32x32xf32>
    %21 = arith.mulf %19, %20 : vector<32x32xf32>
    %22 = vector.broadcast %3 : vector<1x32xf32> to vector<32x32xf32>
    %23 = arith.addf %21, %22 : vector<32x32xf32>
    %24 = arith.truncf %23 : vector<32x32xf32> to vector<32x32xbf16>
    %c0_9 = arith.constant 0 : index
    %c0_10 = arith.constant 0 : index
    %25 = vector.load %arg4[%c0_9, %c0_10] : memref<32x64xbf16, #tpu.memory_space<vmem>>, vector<32x64xbf16>
    %cst_11 = arith.constant dense<0.000000e+00> : vector<32x64xf32>
    %26 = tpu.matmul %24, %25, %cst_11 {dimension_numbers = #tpu.dot_dimension_numbers<[1], [0], [0], [1], [0, 0, 1, 1], [], []>} : vector<32x32xbf16>, vector<32x64xbf16>, vector<32x64xf32> -> vector<32x64xf32>
    %c0_12 = arith.constant 0 : index
    %c0_13 = arith.constant 0 : index
    %27 = vector.load %arg5[%c0_12, %c0_13] : memref<1x64xf32, #tpu.memory_space<vmem>>, vector<1x64xf32>
    %28 = vector.broadcast %27 : vector<1x64xf32> to vector<32x64xf32>
    %29 = arith.addf %26, %28 : vector<32x64xf32>
    %30 = vector.extract_strided_slice %29 {offsets = [0, 0], sizes = [32, 32], strides = [1, 1]} : vector<32x64xf32> to vector<32x32xf32>
    %31 = arith.truncf %30 : vector<32x32xf32> to vector<32x32xbf16>
    %c0_14 = arith.constant 0 : index
    %c0_15 = arith.constant 0 : index
    %32 = vector.load %arg6[%c0_14, %c0_15] : memref<32x32xbf16, #tpu.memory_space<vmem>>, vector<32x32xbf16>
    tpu.vector_store %arg6[%c0_14, %c0_15], %31 {strides = array<i32>} : memref<32x32xbf16, #tpu.memory_space<vmem>>, vector<32x32xbf16>,
    %33 = vector.extract_strided_slice %29 {offsets = [0, 32], sizes = [32, 32], strides = [1, 1]} : vector<32x64xf32> to vector<32x32xf32>
    %34 = arith.truncf %33 : vector<32x32xf32> to vector<32x32xbf16>
    %c0_16 = arith.constant 0 : index
    %c0_17 = arith.constant 0 : index
    %35 = vector.load %arg7[%c0_16, %c0_17] : memref<32x32xbf16, #tpu.memory_space<vmem>>, vector<32x32xbf16>
    tpu.vector_store %arg7[%c0_16, %c0_17], %34 {strides = array<i32>} : memref<32x32xbf16, #tpu.memory_space<vmem>>, vector<32x32xbf16>,
    return
  }
  func.func @transform_0(%arg0: i32) -> (i32, i32) {
    %c0_i32 = arith.constant 0 : i32
    %c0_i32_0 = arith.constant 0 : i32
    return %arg0, %c0_i32 : i32, i32
  }
  func.func @transform_1(%arg0: i32) -> (i32, i32) {
    %c0_i32 = arith.constant 0 : i32
    %c0_i32_0 = arith.constant 0 : i32
    %c0_i32_1 = arith.constant 0 : i32
    return %c0_i32, %c0_i32_0 : i32, i32
  }
  func.func @transform_2(%arg0: i32) -> (i32, i32) {
    %c0_i32 = arith.constant 0 : i32
    %c0_i32_0 = arith.constant 0 : i32
    %c0_i32_1 = arith.constant 0 : i32
    return %c0_i32, %c0_i32_0 : i32, i32
  }
  func.func @transform_3(%arg0: i32) -> (i32, i32) {
    %c0_i32 = arith.constant 0 : i32
    %c0_i32_0 = arith.constant 0 : i32
    %c0_i32_1 = arith.constant 0 : i32
    return %c0_i32, %c0_i32_0 : i32, i32
  }
  func.func @transform_4(%arg0: i32) -> (i32, i32) {
    %c0_i32 = arith.constant 0 : i32
    %c0_i32_0 = arith.constant 0 : i32
    %c0_i32_1 = arith.constant 0 : i32
    return %c0_i32, %c0_i32_0 : i32, i32
  }
  func.func @transform_5(%arg0: i32) -> (i32, i32) {
    %c0_i32 = arith.constant 0 : i32
    %c0_i32_0 = arith.constant 0 : i32
    return %arg0, %c0_i32 : i32, i32
  }
  func.func @transform_6(%arg0: i32) -> (i32, i32) {
    %c0_i32 = arith.constant 0 : i32
    %c0_i32_0 = arith.constant 0 : i32
    return %arg0, %c0_i32 : i32, i32
  }
}

module attributes {stable_mosaic.version = 11 : i64} {
  func.func @_bi_scan_kernel(%arg0: i32, %arg1: memref<1x32x32xbf16, #tpu.memory_space<vmem>>, %arg2: memref<1x32x32xbf16, #tpu.memory_space<vmem>>, %arg3: memref<1x32xf32, #tpu.memory_space<vmem>>, %arg4: memref<1x32xf32, #tpu.memory_space<vmem>>, %arg5: memref<1x32x32xbf16, #tpu.memory_space<vmem>>) attributes {dimension_semantics = [#tpu.dimension_semantics<parallel>], iteration_bounds = array<i64: 2>, scalar_prefetch = 0 : i64, scratch_operands = 0 : i64, tpu.core_type = #tpu.core_type<tc>, window_params = [{transform_indices = @transform_0, window_bounds = array<i64: 1, 32, 32>}, {transform_indices = @transform_1, window_bounds = array<i64: 1, 32, 32>}, {pipeline_mode = #tpu.pipeline_mode<synchronous>, transform_indices = @transform_2, window_bounds = array<i64: 1, 32>}, {pipeline_mode = #tpu.pipeline_mode<synchronous>, transform_indices = @transform_3, window_bounds = array<i64: 1, 32>}, {transform_indices = @transform_4, window_bounds = array<i64: 1, 32, 32>}]} {
    %c0 = arith.constant 0 : index
    %c0_0 = arith.constant 0 : index
    %c0_1 = arith.constant 0 : index
    %0 = vector.load %arg1[%c0, %c0_0, %c0_1] : memref<1x32x32xbf16, #tpu.memory_space<vmem>>, vector<1x32x32xbf16>
    %1 = vector.shape_cast %0 : vector<1x32x32xbf16> to vector<32x32xbf16>
    %2 = arith.extf %1 : vector<32x32xbf16> to vector<32x32xf32>
    %c0_2 = arith.constant 0 : index
    %c0_3 = arith.constant 0 : index
    %c0_4 = arith.constant 0 : index
    %3 = vector.load %arg2[%c0_2, %c0_3, %c0_4] : memref<1x32x32xbf16, #tpu.memory_space<vmem>>, vector<1x32x32xbf16>
    %4 = vector.shape_cast %3 : vector<1x32x32xbf16> to vector<32x32xbf16>
    %5 = arith.extf %4 : vector<32x32xbf16> to vector<32x32xf32>
    %6 = tpu.iota {dimensions = array<i32: 0>} : vector<32x32xi32>
    %c0_5 = arith.constant 0 : index
    %c0_6 = arith.constant 0 : index
    %7 = vector.load %arg3[%c0_5, %c0_6] : memref<1x32xf32, #tpu.memory_space<vmem>>, vector<1x32xf32>
    %c1_i32 = arith.constant 1 : i32
    %8 = vector.broadcast %c1_i32 : i32 to vector<32x32xi32>
    %9 = arith.cmpi sge, %6, %8 : vector<32x32xi32>
    %c1_i32_7 = arith.constant 1 : i32
    %10 = tpu.dynamic_rotate %2 by %c1_i32_7 dim 0 : vector<32x32xf32>, i32 -> vector<32x32xf32>
    %cst = arith.constant 0.000000e+00 : f32
    %11 = vector.broadcast %cst : f32 to vector<32x32xf32>
    %12 = arith.select %9, %10, %11 : vector<32x32xi1>, vector<32x32xf32>
    %13 = vector.broadcast %7 : vector<1x32xf32> to vector<32x32xf32>
    %14 = arith.mulf %13, %12 : vector<32x32xf32>
    %15 = arith.addf %2, %14 : vector<32x32xf32>
    %16 = arith.mulf %7, %7 : vector<1x32xf32>
    %c2_i32 = arith.constant 2 : i32
    %17 = vector.broadcast %c2_i32 : i32 to vector<32x32xi32>
    %18 = arith.cmpi sge, %6, %17 : vector<32x32xi32>
    %c2_i32_8 = arith.constant 2 : i32
    %19 = tpu.dynamic_rotate %15 by %c2_i32_8 dim 0 : vector<32x32xf32>, i32 -> vector<32x32xf32>
    %cst_9 = arith.constant 0.000000e+00 : f32
    %20 = vector.broadcast %cst_9 : f32 to vector<32x32xf32>
    %21 = arith.select %18, %19, %20 : vector<32x32xi1>, vector<32x32xf32>
    %22 = vector.broadcast %16 : vector<1x32xf32> to vector<32x32xf32>
    %23 = arith.mulf %22, %21 : vector<32x32xf32>
    %24 = arith.addf %15, %23 : vector<32x32xf32>
    %25 = arith.mulf %16, %16 : vector<1x32xf32>
    %c4_i32 = arith.constant 4 : i32
    %26 = vector.broadcast %c4_i32 : i32 to vector<32x32xi32>
    %27 = arith.cmpi sge, %6, %26 : vector<32x32xi32>
    %c4_i32_10 = arith.constant 4 : i32
    %28 = tpu.dynamic_rotate %24 by %c4_i32_10 dim 0 : vector<32x32xf32>, i32 -> vector<32x32xf32>
    %cst_11 = arith.constant 0.000000e+00 : f32
    %29 = vector.broadcast %cst_11 : f32 to vector<32x32xf32>
    %30 = arith.select %27, %28, %29 : vector<32x32xi1>, vector<32x32xf32>
    %31 = vector.broadcast %25 : vector<1x32xf32> to vector<32x32xf32>
    %32 = arith.mulf %31, %30 : vector<32x32xf32>
    %33 = arith.addf %24, %32 : vector<32x32xf32>
    %34 = arith.mulf %25, %25 : vector<1x32xf32>
    %c8_i32 = arith.constant 8 : i32
    %35 = vector.broadcast %c8_i32 : i32 to vector<32x32xi32>
    %36 = arith.cmpi sge, %6, %35 : vector<32x32xi32>
    %c8_i32_12 = arith.constant 8 : i32
    %37 = tpu.dynamic_rotate %33 by %c8_i32_12 dim 0 : vector<32x32xf32>, i32 -> vector<32x32xf32>
    %cst_13 = arith.constant 0.000000e+00 : f32
    %38 = vector.broadcast %cst_13 : f32 to vector<32x32xf32>
    %39 = arith.select %36, %37, %38 : vector<32x32xi1>, vector<32x32xf32>
    %40 = vector.broadcast %34 : vector<1x32xf32> to vector<32x32xf32>
    %41 = arith.mulf %40, %39 : vector<32x32xf32>
    %42 = arith.addf %33, %41 : vector<32x32xf32>
    %43 = arith.mulf %34, %34 : vector<1x32xf32>
    %c16_i32 = arith.constant 16 : i32
    %44 = vector.broadcast %c16_i32 : i32 to vector<32x32xi32>
    %45 = arith.cmpi sge, %6, %44 : vector<32x32xi32>
    %c16_i32_14 = arith.constant 16 : i32
    %46 = tpu.dynamic_rotate %42 by %c16_i32_14 dim 0 : vector<32x32xf32>, i32 -> vector<32x32xf32>
    %cst_15 = arith.constant 0.000000e+00 : f32
    %47 = vector.broadcast %cst_15 : f32 to vector<32x32xf32>
    %48 = arith.select %45, %46, %47 : vector<32x32xi1>, vector<32x32xf32>
    %49 = vector.broadcast %43 : vector<1x32xf32> to vector<32x32xf32>
    %50 = arith.mulf %49, %48 : vector<32x32xf32>
    %51 = arith.addf %42, %50 : vector<32x32xf32>
    %c0_16 = arith.constant 0 : index
    %c0_17 = arith.constant 0 : index
    %52 = vector.load %arg4[%c0_16, %c0_17] : memref<1x32xf32, #tpu.memory_space<vmem>>, vector<1x32xf32>
    %c31_i32 = arith.constant 31 : i32
    %53 = vector.broadcast %c31_i32 : i32 to vector<32x32xi32>
    %54 = arith.cmpi slt, %6, %53 : vector<32x32xi32>
    %c31_i32_18 = arith.constant 31 : i32
    %55 = tpu.dynamic_rotate %2 by %c31_i32_18 dim 0 : vector<32x32xf32>, i32 -> vector<32x32xf32>
    %cst_19 = arith.constant 0.000000e+00 : f32
    %56 = vector.broadcast %cst_19 : f32 to vector<32x32xf32>
    %57 = arith.select %54, %55, %56 : vector<32x32xi1>, vector<32x32xf32>
    %58 = vector.broadcast %52 : vector<1x32xf32> to vector<32x32xf32>
    %59 = arith.mulf %58, %57 : vector<32x32xf32>
    %60 = arith.addf %2, %59 : vector<32x32xf32>
    %61 = arith.mulf %52, %52 : vector<1x32xf32>
    %c30_i32 = arith.constant 30 : i32
    %62 = vector.broadcast %c30_i32 : i32 to vector<32x32xi32>
    %63 = arith.cmpi slt, %6, %62 : vector<32x32xi32>
    %c30_i32_20 = arith.constant 30 : i32
    %64 = tpu.dynamic_rotate %60 by %c30_i32_20 dim 0 : vector<32x32xf32>, i32 -> vector<32x32xf32>
    %cst_21 = arith.constant 0.000000e+00 : f32
    %65 = vector.broadcast %cst_21 : f32 to vector<32x32xf32>
    %66 = arith.select %63, %64, %65 : vector<32x32xi1>, vector<32x32xf32>
    %67 = vector.broadcast %61 : vector<1x32xf32> to vector<32x32xf32>
    %68 = arith.mulf %67, %66 : vector<32x32xf32>
    %69 = arith.addf %60, %68 : vector<32x32xf32>
    %70 = arith.mulf %61, %61 : vector<1x32xf32>
    %c28_i32 = arith.constant 28 : i32
    %71 = vector.broadcast %c28_i32 : i32 to vector<32x32xi32>
    %72 = arith.cmpi slt, %6, %71 : vector<32x32xi32>
    %c28_i32_22 = arith.constant 28 : i32
    %73 = tpu.dynamic_rotate %69 by %c28_i32_22 dim 0 : vector<32x32xf32>, i32 -> vector<32x32xf32>
    %cst_23 = arith.constant 0.000000e+00 : f32
    %74 = vector.broadcast %cst_23 : f32 to vector<32x32xf32>
    %75 = arith.select %72, %73, %74 : vector<32x32xi1>, vector<32x32xf32>
    %76 = vector.broadcast %70 : vector<1x32xf32> to vector<32x32xf32>
    %77 = arith.mulf %76, %75 : vector<32x32xf32>
    %78 = arith.addf %69, %77 : vector<32x32xf32>
    %79 = arith.mulf %70, %70 : vector<1x32xf32>
    %c24_i32 = arith.constant 24 : i32
    %80 = vector.broadcast %c24_i32 : i32 to vector<32x32xi32>
    %81 = arith.cmpi slt, %6, %80 : vector<32x32xi32>
    %c24_i32_24 = arith.constant 24 : i32
    %82 = tpu.dynamic_rotate %78 by %c24_i32_24 dim 0 : vector<32x32xf32>, i32 -> vector<32x32xf32>
    %cst_25 = arith.constant 0.000000e+00 : f32
    %83 = vector.broadcast %cst_25 : f32 to vector<32x32xf32>
    %84 = arith.select %81, %82, %83 : vector<32x32xi1>, vector<32x32xf32>
    %85 = vector.broadcast %79 : vector<1x32xf32> to vector<32x32xf32>
    %86 = arith.mulf %85, %84 : vector<32x32xf32>
    %87 = arith.addf %78, %86 : vector<32x32xf32>
    %88 = arith.mulf %79, %79 : vector<1x32xf32>
    %c16_i32_26 = arith.constant 16 : i32
    %89 = vector.broadcast %c16_i32_26 : i32 to vector<32x32xi32>
    %90 = arith.cmpi slt, %6, %89 : vector<32x32xi32>
    %c16_i32_27 = arith.constant 16 : i32
    %91 = tpu.dynamic_rotate %87 by %c16_i32_27 dim 0 : vector<32x32xf32>, i32 -> vector<32x32xf32>
    %cst_28 = arith.constant 0.000000e+00 : f32
    %92 = vector.broadcast %cst_28 : f32 to vector<32x32xf32>
    %93 = arith.select %90, %91, %92 : vector<32x32xi1>, vector<32x32xf32>
    %94 = vector.broadcast %88 : vector<1x32xf32> to vector<32x32xf32>
    %95 = arith.mulf %94, %93 : vector<32x32xf32>
    %96 = arith.addf %87, %95 : vector<32x32xf32>
    %97 = arith.addf %51, %96 : vector<32x32xf32>
    %98 = arith.negf %5 : vector<32x32xf32>
    %99 = math.exp %98 : vector<32x32xf32>
    %cst_29 = arith.constant 1.000000e+00 : f32
    %100 = vector.broadcast %cst_29 : f32 to vector<32x32xf32>
    %101 = arith.addf %100, %99 : vector<32x32xf32>
    %102 = arith.divf %100, %101 : vector<32x32xf32>
    %103 = arith.mulf %5, %102 : vector<32x32xf32>
    %104 = arith.mulf %97, %103 : vector<32x32xf32>
    %105 = arith.truncf %104 : vector<32x32xf32> to vector<32x32xbf16>
    %c0_30 = arith.constant 0 : index
    %c0_31 = arith.constant 0 : index
    %c0_32 = arith.constant 0 : index
    %106 = vector.load %arg5[%c0_30, %c0_31, %c0_32] : memref<1x32x32xbf16, #tpu.memory_space<vmem>>, vector<1x32x32xbf16>
    %107 = vector.shape_cast %106 : vector<1x32x32xbf16> to vector<32x32xbf16>
    %108 = vector.shape_cast %105 : vector<32x32xbf16> to vector<1x32x32xbf16>
    tpu.vector_store %arg5[%c0_30, %c0_31, %c0_32], %108 {strides = array<i32>} : memref<1x32x32xbf16, #tpu.memory_space<vmem>>, vector<1x32x32xbf16>,
    return
  }
  func.func @transform_0(%arg0: i32) -> (i32, i32, i32) {
    %c0_i32 = arith.constant 0 : i32
    %c0_i32_0 = arith.constant 0 : i32
    %c0_i32_1 = arith.constant 0 : i32
    return %arg0, %c0_i32, %c0_i32_0 : i32, i32, i32
  }
  func.func @transform_1(%arg0: i32) -> (i32, i32, i32) {
    %c0_i32 = arith.constant 0 : i32
    %c0_i32_0 = arith.constant 0 : i32
    %c0_i32_1 = arith.constant 0 : i32
    return %arg0, %c0_i32, %c0_i32_0 : i32, i32, i32
  }
  func.func @transform_2(%arg0: i32) -> (i32, i32) {
    %c0_i32 = arith.constant 0 : i32
    %c0_i32_0 = arith.constant 0 : i32
    %c0_i32_1 = arith.constant 0 : i32
    return %c0_i32, %c0_i32_0 : i32, i32
  }
  func.func @transform_3(%arg0: i32) -> (i32, i32) {
    %c0_i32 = arith.constant 0 : i32
    %c0_i32_0 = arith.constant 0 : i32
    %c0_i32_1 = arith.constant 0 : i32
    return %c0_i32, %c0_i32_0 : i32, i32
  }
  func.func @transform_4(%arg0: i32) -> (i32, i32, i32) {
    %c0_i32 = arith.constant 0 : i32
    %c0_i32_0 = arith.constant 0 : i32
    %c0_i32_1 = arith.constant 0 : i32
    return %arg0, %c0_i32, %c0_i32_0 : i32, i32, i32
  }
}

module attributes {stable_mosaic.version = 11 : i64} {
  func.func @_block_tail_kernel(%arg0: i32, %arg1: memref<32x32xbf16, #tpu.memory_space<vmem>>, %arg2: memref<32x32xbf16, #tpu.memory_space<vmem>>, %arg3: memref<32x32xbf16, #tpu.memory_space<vmem>>, %arg4: memref<1x32xf32, #tpu.memory_space<vmem>>, %arg5: memref<1x32xf32, #tpu.memory_space<vmem>>, %arg6: memref<1x32xf32, #tpu.memory_space<vmem>>, %arg7: memref<32x64xbf16, #tpu.memory_space<vmem>>, %arg8: memref<1x64xf32, #tpu.memory_space<vmem>>, %arg9: memref<64x32xbf16, #tpu.memory_space<vmem>>, %arg10: memref<1x32xf32, #tpu.memory_space<vmem>>, %arg11: memref<1x32xf32, #tpu.memory_space<vmem>>, %arg12: memref<1x32xf32, #tpu.memory_space<vmem>>, %arg13: memref<32x32xbf16, #tpu.memory_space<vmem>>) attributes {dimension_semantics = [#tpu.dimension_semantics<parallel>], iteration_bounds = array<i64: 2>, scalar_prefetch = 0 : i64, scratch_operands = 0 : i64, tpu.core_type = #tpu.core_type<tc>, window_params = [{transform_indices = @transform_0, window_bounds = array<i64: 32, 32>}, {transform_indices = @transform_1, window_bounds = array<i64: 32, 32>}, {pipeline_mode = #tpu.pipeline_mode<synchronous>, transform_indices = @transform_2, window_bounds = array<i64: 32, 32>}, {pipeline_mode = #tpu.pipeline_mode<synchronous>, transform_indices = @transform_3, window_bounds = array<i64: 1, 32>}, {pipeline_mode = #tpu.pipeline_mode<synchronous>, transform_indices = @transform_4, window_bounds = array<i64: 1, 32>}, {pipeline_mode = #tpu.pipeline_mode<synchronous>, transform_indices = @transform_5, window_bounds = array<i64: 1, 32>}, {pipeline_mode = #tpu.pipeline_mode<synchronous>, transform_indices = @transform_6, window_bounds = array<i64: 32, 64>}, {pipeline_mode = #tpu.pipeline_mode<synchronous>, transform_indices = @transform_7, window_bounds = array<i64: 1, 64>}, {pipeline_mode = #tpu.pipeline_mode<synchronous>, transform_indices = @transform_8, window_bounds = array<i64: 64, 32>}, {pipeline_mode = #tpu.pipeline_mode<synchronous>, transform_indices = @transform_9, window_bounds = array<i64: 1, 32>}, {pipeline_mode = #tpu.pipeline_mode<synchronous>, transform_indices = @transform_10, window_bounds = array<i64: 1, 32>}, {pipeline_mode = #tpu.pipeline_mode<synchronous>, transform_indices = @transform_11, window_bounds = array<i64: 1, 32>}, {transform_indices = @transform_12, window_bounds = array<i64: 32, 32>}]} {
    %c0 = arith.constant 0 : index
    %c0_0 = arith.constant 0 : index
    %0 = vector.load %arg2[%c0, %c0_0] : memref<32x32xbf16, #tpu.memory_space<vmem>>, vector<32x32xbf16>
    %c0_1 = arith.constant 0 : index
    %c0_2 = arith.constant 0 : index
    %1 = vector.load %arg3[%c0_1, %c0_2] : memref<32x32xbf16, #tpu.memory_space<vmem>>, vector<32x32xbf16>
    %cst = arith.constant dense<0.000000e+00> : vector<32x32xf32>
    %2 = tpu.matmul %0, %1, %cst {dimension_numbers = #tpu.dot_dimension_numbers<[1], [0], [0], [1], [0, 0, 1, 1], [], []>} : vector<32x32xbf16>, vector<32x32xbf16>, vector<32x32xf32> -> vector<32x32xf32>
    %c0_3 = arith.constant 0 : index
    %c0_4 = arith.constant 0 : index
    %3 = vector.load %arg4[%c0_3, %c0_4] : memref<1x32xf32, #tpu.memory_space<vmem>>, vector<1x32xf32>
    %4 = vector.broadcast %3 : vector<1x32xf32> to vector<32x32xf32>
    %5 = arith.addf %2, %4 : vector<32x32xf32>
    %c0_5 = arith.constant 0 : index
    %c0_6 = arith.constant 0 : index
    %6 = vector.load %arg1[%c0_5, %c0_6] : memref<32x32xbf16, #tpu.memory_space<vmem>>, vector<32x32xbf16>
    %7 = arith.extf %6 : vector<32x32xbf16> to vector<32x32xf32>
    %8 = arith.addf %7, %5 : vector<32x32xf32>
    %c0_7 = arith.constant 0 : index
    %c0_8 = arith.constant 0 : index
    %9 = vector.load %arg5[%c0_7, %c0_8] : memref<1x32xf32, #tpu.memory_space<vmem>>, vector<1x32xf32>
    %c0_9 = arith.constant 0 : index
    %c0_10 = arith.constant 0 : index
    %10 = vector.load %arg6[%c0_9, %c0_10] : memref<1x32xf32, #tpu.memory_space<vmem>>, vector<1x32xf32>
    %cst_11 = arith.constant dense<0.000000e+00> : vector<32xf32>
    %11 = vector.multi_reduction <add>, %8, %cst_11 [1] : vector<32x32xf32> to vector<32xf32>
    %12 = vector.shape_cast %11 : vector<32xf32> to vector<32x1xf32>
    %cst_12 = arith.constant 3.200000e+01 : f32
    %13 = vector.broadcast %cst_12 : f32 to vector<32x1xf32>
    %14 = arith.divf %12, %13 : vector<32x1xf32>
    %15 = vector.broadcast %14 : vector<32x1xf32> to vector<32x32xf32>
    %16 = arith.subf %8, %15 : vector<32x32xf32>
    %17 = arith.mulf %16, %16 : vector<32x32xf32>
    %cst_13 = arith.constant dense<0.000000e+00> : vector<32xf32>
    %18 = vector.multi_reduction <add>, %17, %cst_13 [1] : vector<32x32xf32> to vector<32xf32>
    %19 = vector.shape_cast %18 : vector<32xf32> to vector<32x1xf32>
    %cst_14 = arith.constant 3.200000e+01 : f32
    %20 = vector.broadcast %cst_14 : f32 to vector<32x1xf32>
    %21 = arith.divf %19, %20 : vector<32x1xf32>
    %cst_15 = arith.constant 9.99999997E-7 : f32
    %22 = vector.broadcast %cst_15 : f32 to vector<32x1xf32>
    %23 = arith.addf %21, %22 : vector<32x1xf32>
    %24 = math.rsqrt %23 : vector<32x1xf32>
    %25 = vector.broadcast %24 : vector<32x1xf32> to vector<32x32xf32>
    %26 = arith.mulf %16, %25 : vector<32x32xf32>
    %27 = vector.broadcast %9 : vector<1x32xf32> to vector<32x32xf32>
    %28 = arith.mulf %26, %27 : vector<32x32xf32>
    %29 = vector.broadcast %10 : vector<1x32xf32> to vector<32x32xf32>
    %30 = arith.addf %28, %29 : vector<32x32xf32>
    %31 = arith.truncf %30 : vector<32x32xf32> to vector<32x32xbf16>
    %c0_16 = arith.constant 0 : index
    %c0_17 = arith.constant 0 : index
    %32 = vector.load %arg7[%c0_16, %c0_17] : memref<32x64xbf16, #tpu.memory_space<vmem>>, vector<32x64xbf16>
    %cst_18 = arith.constant dense<0.000000e+00> : vector<32x64xf32>
    %33 = tpu.matmul %31, %32, %cst_18 {dimension_numbers = #tpu.dot_dimension_numbers<[1], [0], [0], [1], [0, 0, 1, 1], [], []>} : vector<32x32xbf16>, vector<32x64xbf16>, vector<32x64xf32> -> vector<32x64xf32>
    %c0_19 = arith.constant 0 : index
    %c0_20 = arith.constant 0 : index
    %34 = vector.load %arg8[%c0_19, %c0_20] : memref<1x64xf32, #tpu.memory_space<vmem>>, vector<1x64xf32>
    %35 = vector.broadcast %34 : vector<1x64xf32> to vector<32x64xf32>
    %36 = arith.addf %33, %35 : vector<32x64xf32>
    %37 = arith.mulf %36, %36 : vector<32x64xf32>
    %38 = arith.mulf %36, %37 : vector<32x64xf32>
    %cst_21 = arith.constant 4.471500e-02 : f32
    %39 = vector.broadcast %cst_21 : f32 to vector<32x64xf32>
    %40 = arith.mulf %39, %38 : vector<32x64xf32>
    %41 = arith.addf %36, %40 : vector<32x64xf32>
    %cst_22 = arith.constant 0.797884583 : f32
    %42 = vector.broadcast %cst_22 : f32 to vector<32x64xf32>
    %43 = arith.mulf %42, %41 : vector<32x64xf32>
    %44 = math.tanh %43 : vector<32x64xf32>
    %cst_23 = arith.constant 1.000000e+00 : f32
    %45 = vector.broadcast %cst_23 : f32 to vector<32x64xf32>
    %46 = arith.addf %45, %44 : vector<32x64xf32>
    %cst_24 = arith.constant 5.000000e-01 : f32
    %47 = vector.broadcast %cst_24 : f32 to vector<32x64xf32>
    %48 = arith.mulf %47, %46 : vector<32x64xf32>
    %49 = arith.mulf %36, %48 : vector<32x64xf32>
    %50 = arith.truncf %49 : vector<32x64xf32> to vector<32x64xbf16>
    %c0_25 = arith.constant 0 : index
    %c0_26 = arith.constant 0 : index
    %51 = vector.load %arg9[%c0_25, %c0_26] : memref<64x32xbf16, #tpu.memory_space<vmem>>, vector<64x32xbf16>
    %cst_27 = arith.constant dense<0.000000e+00> : vector<32x32xf32>
    %52 = tpu.matmul %50, %51, %cst_27 {dimension_numbers = #tpu.dot_dimension_numbers<[1], [0], [0], [1], [0, 0, 1, 1], [], []>} : vector<32x64xbf16>, vector<64x32xbf16>, vector<32x32xf32> -> vector<32x32xf32>
    %c0_28 = arith.constant 0 : index
    %c0_29 = arith.constant 0 : index
    %53 = vector.load %arg10[%c0_28, %c0_29] : memref<1x32xf32, #tpu.memory_space<vmem>>, vector<1x32xf32>
    %54 = vector.broadcast %53 : vector<1x32xf32> to vector<32x32xf32>
    %55 = arith.addf %52, %54 : vector<32x32xf32>
    %56 = arith.addf %8, %55 : vector<32x32xf32>
    %c0_30 = arith.constant 0 : index
    %c0_31 = arith.constant 0 : index
    %57 = vector.load %arg11[%c0_30, %c0_31] : memref<1x32xf32, #tpu.memory_space<vmem>>, vector<1x32xf32>
    %c0_32 = arith.constant 0 : index
    %c0_33 = arith.constant 0 : index
    %58 = vector.load %arg12[%c0_32, %c0_33] : memref<1x32xf32, #tpu.memory_space<vmem>>, vector<1x32xf32>
    %cst_34 = arith.constant dense<0.000000e+00> : vector<32xf32>
    %59 = vector.multi_reduction <add>, %56, %cst_34 [1] : vector<32x32xf32> to vector<32xf32>
    %60 = vector.shape_cast %59 : vector<32xf32> to vector<32x1xf32>
    %cst_35 = arith.constant 3.200000e+01 : f32
    %61 = vector.broadcast %cst_35 : f32 to vector<32x1xf32>
    %62 = arith.divf %60, %61 : vector<32x1xf32>
    %63 = vector.broadcast %62 : vector<32x1xf32> to vector<32x32xf32>
    %64 = arith.subf %56, %63 : vector<32x32xf32>
    %65 = arith.mulf %64, %64 : vector<32x32xf32>
    %cst_36 = arith.constant dense<0.000000e+00> : vector<32xf32>
    %66 = vector.multi_reduction <add>, %65, %cst_36 [1] : vector<32x32xf32> to vector<32xf32>
    %67 = vector.shape_cast %66 : vector<32xf32> to vector<32x1xf32>
    %cst_37 = arith.constant 3.200000e+01 : f32
    %68 = vector.broadcast %cst_37 : f32 to vector<32x1xf32>
    %69 = arith.divf %67, %68 : vector<32x1xf32>
    %cst_38 = arith.constant 9.99999997E-7 : f32
    %70 = vector.broadcast %cst_38 : f32 to vector<32x1xf32>
    %71 = arith.addf %69, %70 : vector<32x1xf32>
    %72 = math.rsqrt %71 : vector<32x1xf32>
    %73 = vector.broadcast %72 : vector<32x1xf32> to vector<32x32xf32>
    %74 = arith.mulf %64, %73 : vector<32x32xf32>
    %75 = vector.broadcast %57 : vector<1x32xf32> to vector<32x32xf32>
    %76 = arith.mulf %74, %75 : vector<32x32xf32>
    %77 = vector.broadcast %58 : vector<1x32xf32> to vector<32x32xf32>
    %78 = arith.addf %76, %77 : vector<32x32xf32>
    %79 = arith.truncf %78 : vector<32x32xf32> to vector<32x32xbf16>
    %c0_39 = arith.constant 0 : index
    %c0_40 = arith.constant 0 : index
    %80 = vector.load %arg13[%c0_39, %c0_40] : memref<32x32xbf16, #tpu.memory_space<vmem>>, vector<32x32xbf16>
    tpu.vector_store %arg13[%c0_39, %c0_40], %79 {strides = array<i32>} : memref<32x32xbf16, #tpu.memory_space<vmem>>, vector<32x32xbf16>,
    return
  }
  func.func @transform_0(%arg0: i32) -> (i32, i32) {
    %c0_i32 = arith.constant 0 : i32
    %c0_i32_0 = arith.constant 0 : i32
    return %arg0, %c0_i32 : i32, i32
  }
  func.func @transform_1(%arg0: i32) -> (i32, i32) {
    %c0_i32 = arith.constant 0 : i32
    %c0_i32_0 = arith.constant 0 : i32
    return %arg0, %c0_i32 : i32, i32
  }
  func.func @transform_2(%arg0: i32) -> (i32, i32) {
    %c0_i32 = arith.constant 0 : i32
    %c0_i32_0 = arith.constant 0 : i32
    %c0_i32_1 = arith.constant 0 : i32
    return %c0_i32, %c0_i32_0 : i32, i32
  }
  func.func @transform_3(%arg0: i32) -> (i32, i32) {
    %c0_i32 = arith.constant 0 : i32
    %c0_i32_0 = arith.constant 0 : i32
    %c0_i32_1 = arith.constant 0 : i32
    return %c0_i32, %c0_i32_0 : i32, i32
  }
  func.func @transform_4(%arg0: i32) -> (i32, i32) {
    %c0_i32 = arith.constant 0 : i32
    %c0_i32_0 = arith.constant 0 : i32
    %c0_i32_1 = arith.constant 0 : i32
    return %c0_i32, %c0_i32_0 : i32, i32
  }
  func.func @transform_5(%arg0: i32) -> (i32, i32) {
    %c0_i32 = arith.constant 0 : i32
    %c0_i32_0 = arith.constant 0 : i32
    %c0_i32_1 = arith.constant 0 : i32
    return %c0_i32, %c0_i32_0 : i32, i32
  }
  func.func @transform_6(%arg0: i32) -> (i32, i32) {
    %c0_i32 = arith.constant 0 : i32
    %c0_i32_0 = arith.constant 0 : i32
    %c0_i32_1 = arith.constant 0 : i32
    return %c0_i32, %c0_i32_0 : i32, i32
  }
  func.func @transform_7(%arg0: i32) -> (i32, i32) {
    %c0_i32 = arith.constant 0 : i32
    %c0_i32_0 = arith.constant 0 : i32
    %c0_i32_1 = arith.constant 0 : i32
    return %c0_i32, %c0_i32_0 : i32, i32
  }
  func.func @transform_8(%arg0: i32) -> (i32, i32) {
    %c0_i32 = arith.constant 0 : i32
    %c0_i32_0 = arith.constant 0 : i32
    %c0_i32_1 = arith.constant 0 : i32
    return %c0_i32, %c0_i32_0 : i32, i32
  }
  func.func @transform_9(%arg0: i32) -> (i32, i32) {
    %c0_i32 = arith.constant 0 : i32
    %c0_i32_0 = arith.constant 0 : i32
    %c0_i32_1 = arith.constant 0 : i32
    return %c0_i32, %c0_i32_0 : i32, i32
  }
  func.func @transform_10(%arg0: i32) -> (i32, i32) {
    %c0_i32 = arith.constant 0 : i32
    %c0_i32_0 = arith.constant 0 : i32
    %c0_i32_1 = arith.constant 0 : i32
    return %c0_i32, %c0_i32_0 : i32, i32
  }
  func.func @transform_11(%arg0: i32) -> (i32, i32) {
    %c0_i32 = arith.constant 0 : i32
    %c0_i32_0 = arith.constant 0 : i32
    %c0_i32_1 = arith.constant 0 : i32
    return %c0_i32, %c0_i32_0 : i32, i32
  }
  func.func @transform_12(%arg0: i32) -> (i32, i32) {
    %c0_i32 = arith.constant 0 : i32
    %c0_i32_0 = arith.constant 0 : i32
    return %arg0, %c0_i32 : i32, i32
  }
}

module attributes {stable_mosaic.version = 11 : i64} {
  func.func @_head_kernel(%arg0: i32, %arg1: memref<32x32xbf16, #tpu.memory_space<vmem>>, %arg2: memref<1x32xf32, #tpu.memory_space<vmem>>, %arg3: memref<1x32xf32, #tpu.memory_space<vmem>>, %arg4: memref<32x128xbf16, #tpu.memory_space<vmem>>, %arg5: memref<1x128xf32, #tpu.memory_space<vmem>>, %arg6: memref<32x128xbf16, #tpu.memory_space<vmem>>) attributes {dimension_semantics = [#tpu.dimension_semantics<parallel>], iteration_bounds = array<i64: 2>, scalar_prefetch = 0 : i64, scratch_operands = 0 : i64, tpu.core_type = #tpu.core_type<tc>, window_params = [{transform_indices = @transform_0, window_bounds = array<i64: 32, 32>}, {pipeline_mode = #tpu.pipeline_mode<synchronous>, transform_indices = @transform_1, window_bounds = array<i64: 1, 32>}, {pipeline_mode = #tpu.pipeline_mode<synchronous>, transform_indices = @transform_2, window_bounds = array<i64: 1, 32>}, {pipeline_mode = #tpu.pipeline_mode<synchronous>, transform_indices = @transform_3, window_bounds = array<i64: 32, 128>}, {pipeline_mode = #tpu.pipeline_mode<synchronous>, transform_indices = @transform_4, window_bounds = array<i64: 1, 128>}, {transform_indices = @transform_5, window_bounds = array<i64: 32, 128>}]} {
    %c0 = arith.constant 0 : index
    %c0_0 = arith.constant 0 : index
    %0 = vector.load %arg1[%c0, %c0_0] : memref<32x32xbf16, #tpu.memory_space<vmem>>, vector<32x32xbf16>
    %1 = arith.extf %0 : vector<32x32xbf16> to vector<32x32xf32>
    %c0_1 = arith.constant 0 : index
    %c0_2 = arith.constant 0 : index
    %2 = vector.load %arg2[%c0_1, %c0_2] : memref<1x32xf32, #tpu.memory_space<vmem>>, vector<1x32xf32>
    %c0_3 = arith.constant 0 : index
    %c0_4 = arith.constant 0 : index
    %3 = vector.load %arg3[%c0_3, %c0_4] : memref<1x32xf32, #tpu.memory_space<vmem>>, vector<1x32xf32>
    %cst = arith.constant dense<0.000000e+00> : vector<32xf32>
    %4 = vector.multi_reduction <add>, %1, %cst [1] : vector<32x32xf32> to vector<32xf32>
    %5 = vector.shape_cast %4 : vector<32xf32> to vector<32x1xf32>
    %cst_5 = arith.constant 3.200000e+01 : f32
    %6 = vector.broadcast %cst_5 : f32 to vector<32x1xf32>
    %7 = arith.divf %5, %6 : vector<32x1xf32>
    %8 = vector.broadcast %7 : vector<32x1xf32> to vector<32x32xf32>
    %9 = arith.subf %1, %8 : vector<32x32xf32>
    %10 = arith.mulf %9, %9 : vector<32x32xf32>
    %cst_6 = arith.constant dense<0.000000e+00> : vector<32xf32>
    %11 = vector.multi_reduction <add>, %10, %cst_6 [1] : vector<32x32xf32> to vector<32xf32>
    %12 = vector.shape_cast %11 : vector<32xf32> to vector<32x1xf32>
    %cst_7 = arith.constant 3.200000e+01 : f32
    %13 = vector.broadcast %cst_7 : f32 to vector<32x1xf32>
    %14 = arith.divf %12, %13 : vector<32x1xf32>
    %cst_8 = arith.constant 9.99999974E-6 : f32
    %15 = vector.broadcast %cst_8 : f32 to vector<32x1xf32>
    %16 = arith.addf %14, %15 : vector<32x1xf32>
    %17 = math.rsqrt %16 : vector<32x1xf32>
    %18 = vector.broadcast %17 : vector<32x1xf32> to vector<32x32xf32>
    %19 = arith.mulf %9, %18 : vector<32x32xf32>
    %20 = vector.broadcast %2 : vector<1x32xf32> to vector<32x32xf32>
    %21 = arith.mulf %19, %20 : vector<32x32xf32>
    %22 = vector.broadcast %3 : vector<1x32xf32> to vector<32x32xf32>
    %23 = arith.addf %21, %22 : vector<32x32xf32>
    %24 = arith.truncf %23 : vector<32x32xf32> to vector<32x32xbf16>
    %c0_9 = arith.constant 0 : index
    %c0_10 = arith.constant 0 : index
    %25 = vector.load %arg4[%c0_9, %c0_10] : memref<32x128xbf16, #tpu.memory_space<vmem>>, vector<32x128xbf16>
    %cst_11 = arith.constant dense<0.000000e+00> : vector<32x128xf32>
    %26 = tpu.matmul %24, %25, %cst_11 {dimension_numbers = #tpu.dot_dimension_numbers<[1], [0], [0], [1], [0, 0, 1, 1], [], []>} : vector<32x32xbf16>, vector<32x128xbf16>, vector<32x128xf32> -> vector<32x128xf32>
    %c0_12 = arith.constant 0 : index
    %c0_13 = arith.constant 0 : index
    %27 = vector.load %arg5[%c0_12, %c0_13] : memref<1x128xf32, #tpu.memory_space<vmem>>, vector<1x128xf32>
    %28 = vector.broadcast %27 : vector<1x128xf32> to vector<32x128xf32>
    %29 = arith.addf %26, %28 : vector<32x128xf32>
    %30 = arith.truncf %29 : vector<32x128xf32> to vector<32x128xbf16>
    %c0_14 = arith.constant 0 : index
    %c0_15 = arith.constant 0 : index
    %31 = vector.load %arg6[%c0_14, %c0_15] : memref<32x128xbf16, #tpu.memory_space<vmem>>, vector<32x128xbf16>
    tpu.vector_store %arg6[%c0_14, %c0_15], %30 {strides = array<i32>} : memref<32x128xbf16, #tpu.memory_space<vmem>>, vector<32x128xbf16>,
    return
  }
  func.func @transform_0(%arg0: i32) -> (i32, i32) {
    %c0_i32 = arith.constant 0 : i32
    %c0_i32_0 = arith.constant 0 : i32
    return %arg0, %c0_i32 : i32, i32
  }
  func.func @transform_1(%arg0: i32) -> (i32, i32) {
    %c0_i32 = arith.constant 0 : i32
    %c0_i32_0 = arith.constant 0 : i32
    %c0_i32_1 = arith.constant 0 : i32
    return %c0_i32, %c0_i32_0 : i32, i32
  }
  func.func @transform_2(%arg0: i32) -> (i32, i32) {
    %c0_i32 = arith.constant 0 : i32
    %c0_i32_0 = arith.constant 0 : i32
    %c0_i32_1 = arith.constant 0 : i32
    return %c0_i32, %c0_i32_0 : i32, i32
  }
  func.func @transform_3(%arg0: i32) -> (i32, i32) {
    %c0_i32 = arith.constant 0 : i32
    %c0_i32_0 = arith.constant 0 : i32
    %c0_i32_1 = arith.constant 0 : i32
    return %c0_i32, %c0_i32_0 : i32, i32
  }
  func.func @transform_4(%arg0: i32) -> (i32, i32) {
    %c0_i32 = arith.constant 0 : i32
    %c0_i32_0 = arith.constant 0 : i32
    %c0_i32_1 = arith.constant 0 : i32
    return %c0_i32, %c0_i32_0 : i32, i32
  }
  func.func @transform_5(%arg0: i32) -> (i32, i32) {
    %c0_i32 = arith.constant 0 : i32
    %c0_i32_0 = arith.constant 0 : i32
    return %arg0, %c0_i32 : i32, i32
  }
}

</mosaic_0001>

<llo_original>
// kernel: pose_mamba_forward.16
$region0: #{pose_mamba_forward.16}
  #allocation0 [shape = 'u32[]', space=smem, size = 0x4, offset = 0x4, fixed_abs, tag = 'smem constant byte address 0x4 - core index']
  #allocation1 [shape = 'u32[144,128]{1,0:T(1,128)}', space=vmem, size = 0x12000, scoped, tag = 'internal scratch']
  %s0 = inlined_call_operand.vmem [shape: bf16[2,32,32], index: 0, kind: input, shape index: {}]
  %s1 = inlined_call_operand.vmem [shape: bf16[2,32,32], index: 1, kind: input, shape index: {}]
  %s2 = inlined_call_operand.vmem [shape: f32[1,32], index: 2, kind: input, shape index: {}]
  %s3 = inlined_call_operand.vmem [shape: f32[1,32], index: 3, kind: input, shape index: {}]
  %s4 = inlined_call_operand.vmem [shape: bf16[2,32,32], index: 4, kind: output, shape index: {}]
  %s5 = sld [smem:[#allocation0]]
  $region49: #{pose_mamba_forward.16} parent=0
    _
  %s7 = ssub.s32 1, %s5
  %s8 = scalar_select 0, %s7, %s5
  loop: start=0, step=1, limit=4
  $region2: #{pose_mamba_forward.16} parent=0 // loop_pre_header
    _
  $region3: #{pose_mamba_forward.16} parent=0 // loop_header
    %s10 = sphi 0, %s14
    %p11 = scmp.ge.s32.totalorder %s10, 4
    %s20 = sphi 0, %s22
    %s23 = sphi 0, %s20
    %s24 = sphi 0, %s23
    %s40 = sphi 0, %s24
    %s46 = sphi 0, %s48
    %s49 = sphi 0, %s46
    %s50 = sphi 0, %s49
    %s66 = sphi 0, %s50
    %s70 = sphi 0, %s70
    %s72 = sphi 0, %s70
    %s73 = sphi 0, %s72
    %s87 = sphi 0, %s73
    %s91 = sphi 0, %s91
    %s93 = sphi 0, %s91
    %s94 = sphi 0, %s93
    %s108 = sphi 0, %s94
    %s114 = sphi 0, %s116
    %s117 = sphi 0, %s114
    %s118 = sphi 0, %s117
    %s134 = sphi 0, %s118
  $region4: #{pose_mamba_forward.16} parent=0 // loop_header_branch
    %13 = sbr.rel (%p11) target = $region8
  $region5: #{pose_mamba_forward.16} parent=0 // loop_body
    %s15 = ssub.s32 %s10, 1
    %s16 = ssub.s32 %s10, 2
    %s17 = sadd.s32 %s10, 1
    %s18 = ssub.s32 %s10, %s17
    %p19 = scmp.eq.s32.totalorder %s18, 0
    %s21 = sadd.s32 %s20, 1
    %s22 = scalar_select %p19, %s20, %s21
    %p25 = pneg %p19
    %p26 = scmp.eq.s32.totalorder %s10, 1
    %p27 = por %p25, %p26
    %p28 = scmp.ne.s32.totalorder %s20, %s23
    %p29 = scmp.eq.s32.totalorder %s10, 0
    %p30 = por %p28, %p29
    %p31 = scmp.ne.s32.totalorder %s20, %s23
    %p32 = scmp.eq.s32.totalorder %s15, 1
    %p33 = por %p31, %p32
    %p34 = scmp.ne.s32.totalorder %s23, %s24
    %p35 = scmp.eq.s32.totalorder %s15, 0
    %p36 = por %p34, %p35
    %p37 = scmp.ne.s32.totalorder %s23, %s24
    %p38 = scmp.eq.s32.totalorder %s16, 1
    %p39 = por %p37, %p38
    %p41 = scmp.ne.s32.totalorder %s24, %s40
    %p42 = scmp.eq.s32.totalorder %s16, 0
    %p43 = por %p41, %p42
    %s44 = ssub.s32 %s10, %s17
    %p45 = scmp.eq.s32.totalorder %s44, 0
    %s47 = sadd.s32 %s46, 1
    %s48 = scalar_select %p45, %s46, %s47
    %p51 = pneg %p45
    %p52 = scmp.eq.s32.totalorder %s10, 1
    %p53 = por %p51, %p52
    %p54 = scmp.ne.s32.totalorder %s46, %s49
    %p55 = scmp.eq.s32.totalorder %s10, 0
    %p56 = por %p54, %p55
    %p57 = scmp.ne.s32.totalorder %s46, %s49
    %p58 = scmp.eq.s32.totalorder %s15, 1
    %p59 = por %p57, %p58
    %p60 = scmp.ne.s32.totalorder %s49, %s50
    %p61 = scmp.eq.s32.totalorder %s15, 0
    %p62 = por %p60, %p61
    %p63 = scmp.ne.s32.totalorder %s49, %s50
    %p64 = scmp.eq.s32.totalorder %s16, 1
    %p65 = por %p63, %p64
    %p67 = scmp.ne.s32.totalorder %s50, %s66
    %p68 = scmp.eq.s32.totalorder %s16, 0
    %p69 = por %p67, %p68
    %s71 = sadd.s32 %s70, 1
    %p74 = scmp.eq.s32.totalorder %s10, 1
    %p75 = scmp.ne.s32.totalorder %s70, %s72
    %p76 = scmp.eq.s32.totalorder %s10, 0
    %p77 = por %p75, %p76
    %p78 = scmp.ne.s32.totalorder %s70, %s72
    %p79 = scmp.eq.s32.totalorder %s15, 1
    %p80 = por %p78, %p79
    %p81 = scmp.ne.s32.totalorder %s72, %s73
    %p82 = scmp.eq.s32.totalorder %s15, 0
    %p83 = por %p81, %p82
    %p84 = scmp.ne.s32.totalorder %s72, %s73
    %p85 = scmp.eq.s32.totalorder %s16, 1
    %p86 = por %p84, %p85
    %p88 = scmp.ne.s32.totalorder %s73, %s87
    %p89 = scmp.eq.s32.totalorder %s16, 0
    %p90 = por %p88, %p89
    %s92 = sadd.s32 %s91, 1
    %p95 = scmp.eq.s32.totalorder %s10, 1
    %p96 = scmp.ne.s32.totalorder %s91, %s93
    %p97 = scmp.eq.s32.totalorder %s10, 0
    %p98 = por %p96, %p97
    %p99 = scmp.ne.s32.totalorder %s91, %s93
    %p100 = scmp.eq.s32.totalorder %s15, 1
    %p101 = por %p99, %p100
    %p102 = scmp.ne.s32.totalorder %s93, %s94
    %p103 = scmp.eq.s32.totalorder %s15, 0
    %p104 = por %p102, %p103
    %p105 = scmp.ne.s32.totalorder %s93, %s94
    %p106 = scmp.eq.s32.totalorder %s16, 1
    %p107 = por %p105, %p106
    %p109 = scmp.ne.s32.totalorder %s94, %s108
    %p110 = scmp.eq.s32.totalorder %s16, 0
    %p111 = por %p109, %p110
    %s112 = ssub.s32 %s10, %s17
    %p113 = scmp.eq.s32.totalorder %s112, 0
    %s115 = sadd.s32 %s114, 1
    %s116 = scalar_select %p113, %s114, %s115
    %p119 = pneg %p113
    %p120 = scmp.eq.s32.totalorder %s10, 1
    %p121 = por %p119, %p120
    %p122 = scmp.ne.s32.totalorder %s114, %s117
    %p123 = scmp.eq.s32.totalorder %s10, 0
    %p124 = por %p122, %p123
    %p125 = scmp.ne.s32.totalorder %s114, %s117
    %p126 = scmp.eq.s32.totalorder %s15, 1
    %p127 = por %p125, %p126
    %p128 = scmp.ne.s32.totalorder %s117, %s118
    %p129 = scmp.eq.s32.totalorder %s15, 0
    %p130 = por %p128, %p129
    %p131 = scmp.ne.s32.totalorder %s117, %s118
    %p132 = scmp.eq.s32.totalorder %s16, 1
    %p133 = por %p131, %p132
    %p135 = scmp.ne.s32.totalorder %s118, %s134
    %p136 = scmp.eq.s32.totalorder %s16, 0
    %p137 = por %p135, %p136
    %p138 = scmp.le.s32.totalorder 1, %s10
    %p139 = scmp.lt.s32.totalorder %s10, 3
    %p140 = pnand %p138, %p139
    %p141 = pneg %p140
    // Predicated region
    $region9: #{pose_mamba_forward.16} parent=5 // pred_check
      _
    $region10: #{pose_mamba_forward.16} parent=5 // pred_check_branch
      %143 = sbr.rel (%p140) target = $region12
    $region11: #{pose_mamba_forward.16} parent=5 // pred_region
      %s144 = ssub.s32 %s10, 1
      // Predicated region
      $region13: #{pose_mamba_forward.16} parent=11 // pred_check
        %p145 = pneg %p83
      $region14: #{pose_mamba_forward.16} parent=11 // pred_check_branch
        %147 = sbr.rel (%p145) target = $region16
      $region15: #{pose_mamba_forward.16} parent=11 // pred_region
        _
      $region16: #{pose_mamba_forward.16} parent=11 // pred_fallthru
        _
      // Predicated region
      $region17: #{pose_mamba_forward.16} parent=11 // pred_check
        %p148 = pneg %p104
      $region18: #{pose_mamba_forward.16} parent=11 // pred_check_branch
        %150 = sbr.rel (%p148) target = $region20
      $region19: #{pose_mamba_forward.16} parent=11 // pred_region
        _
      $region20: #{pose_mamba_forward.16} parent=11 // pred_fallthru
        _
    $region12: #{pose_mamba_forward.16} parent=5 // pred_fallthru
      _
    %p151 = scmp.lt.s32.totalorder %s10, 2
    // Predicated region
    $region21: #{pose_mamba_forward.16} parent=5 // pred_check
      %p152 = pneg %p151
    $region22: #{pose_mamba_forward.16} parent=5 // pred_check_branch
      %154 = sbr.rel (%p152) target = $region24
    $region23: #{pose_mamba_forward.16} parent=5 // pred_region
      // Predicated region
      $region25: #{pose_mamba_forward.16} parent=23 // pred_check
        %p155 = pneg %p30
      $region26: #{pose_mamba_forward.16} parent=23 // pred_check_branch
        %157 = sbr.rel (%p155) target = $region28
      $region27: #{pose_mamba_forward.16} parent=23 // pred_region
        %p158 = scmp.lt.s32.totalorder %s10, 1
        %s159 = scalar_select %p158, %s10, 1
        %s160 = smul.addr %s159, 4
        %s161 = smul.addr %s160, 4
        %s162 = scalar_lea.vmem %s0, %s161
      $region28: #{pose_mamba_forward.16} parent=23 // pred_fallthru
        _
      // Predicated region
      $region29: #{pose_mamba_forward.16} parent=23 // pred_check
        %p163 = pneg %p56
      $region30: #{pose_mamba_forward.16} parent=23 // pred_check_branch
        %165 = sbr.rel (%p163) target = $region32
      $region31: #{pose_mamba_forward.16} parent=23 // pred_region
        %p166 = scmp.lt.s32.totalorder %s10, 1
        %s167 = scalar_select %p166, %s10, 1
        %s168 = smul.addr %s167, 4
        %s169 = smul.addr %s168, 4
        %s170 = scalar_lea.vmem %s1, %s169
      $region32: #{pose_mamba_forward.16} parent=23 // pred_fallthru
        _
    $region24: #{pose_mamba_forward.16} parent=5 // pred_fallthru
      _
    %p171 = scmp.le.s32.totalorder 1, %s10
    %p172 = scmp.lt.s32.totalorder %s10, 3
    %p173 = pnand %p171, %p172
    %p174 = pneg %p173
    // Predicated region
    $region33: #{pose_mamba_forward.16} parent=5 // pred_check
      _
    $region34: #{pose_mamba_forward.16} parent=5 // pred_check_branch
      %176 = sbr.rel (%p173) target = $region36
    $region35: #{pose_mamba_forward.16} parent=5 // pred_region
      %s177 = ssub.s32 %s10, 1
      %p178 = scmp.lt.s32.totalorder %s15, 1
      %s179 = scalar_select %p178, %s15, 1
      %s180 = smul.addr %s179, 4
      %s181 = smul.addr %s180, 4
      %s182 = scalar_lea.vmem %s0, %s181
      %p183 = pneg %p36
      %p184 = pneg %p33
      %p185 = scmp.lt.s32.totalorder %s15, 1
      %s186 = scalar_select %p185, %s15, 1
      %s187 = smul.addr %s186, 4
      %s188 = smul.addr %s187, 4
      %s189 = scalar_lea.vmem %s1, %s188
      %p190 = pneg %p62
      %p191 = pneg %p59
      %p192 = pneg %p83
      %p193 = pneg %p80
      %p194 = pneg %p104
      %p195 = pneg %p101
      %p196 = pneg %p130
      %p197 = pneg %p127
      %p198 = scmp.lt.s32.totalorder %s15, 1
      %s199 = scalar_select %p198, %s15, 1
      %s200 = smul.addr %s199, 4
      %s201 = smul.addr %s200, 4
      %s202 = scalar_lea.vmem %s4, %s201
      %p203 = scmp.lt.s32.totalorder %s15, 1
      %s204 = scalar_select %p203, %s15, 1
      %s205 = smul.addr %s204, 4
      %s206 = smul.addr %s205, 4
      %s207 = scalar_lea.vmem %s0, %s206
      %p208 = scmp.lt.s32.totalorder %s15, 1
      %s209 = scalar_select %p208, %s15, 1
      %s210 = smul.addr %s209, 4
      %s211 = smul.addr %s210, 4
      %s212 = scalar_lea.vmem %s1, %s211
      %p213 = scmp.lt.s32.totalorder %s15, 1
      %s214 = scalar_select %p213, %s15, 1
      %s215 = smul.addr %s214, 4
      %s216 = smul.addr %s215, 4
      %s217 = scalar_lea.vmem %s4, %s216
      %v218 = vld [vmem:[%s207] sm:$0xf]
      %v219 = vld [vmem:[%s207 + $0x4] sm:$0xf]
      %v220 = vld [vmem:[%s207 + $0x8] sm:$0xf]
      %v221 = vld [vmem:[%s207 + $0xc] sm:$0xf]
      %v222 = vunpack.c.l.bf16 %v218
      %v223 = vunpack.c.l.bf16 %v219
      %v224 = vunpack.c.l.bf16 %v220
      %v225 = vunpack.c.l.bf16 %v221
      %v226 = vld [vmem:[%s212] sm:$0xf]
      %v227 = vld [vmem:[%s212 + $0x4] sm:$0xf]
      %v228 = vld [vmem:[%s212 + $0x8] sm:$0xf]
      %v229 = vld [vmem:[%s212 + $0xc] sm:$0xf]
      %v230 = vunpack.c.l.bf16 %v226
      %v231 = vunpack.c.l.bf16 %v227
      %v232 = vunpack.c.l.bf16 %v228
      %v233 = vunpack.c.l.bf16 %v229
      %v234 = vlaneseq
      %v235 = vshrl.u32 %v234, 7
      %v236 = vadd.s32 %v235, 8
      %v237 = vadd.s32 %v235, 16
      %v238 = vadd.s32 %v235, 24
      %v239 = vld [vmem:[%s2] sm:$0x1]
      %vm240 = vcmp.ge.s32.totalorder %v235, 1
      %vm241 = vcmp.ge.s32.totalorder %v236, 1
      %vm242 = vcmp.ge.s32.totalorder %v237, 1
      %vm243 = vcmp.ge.s32.totalorder %v238, 1
      %v244 = vrot.slane %v222, 7
      %v245 = vrot.slane %v223, 7
      %v246 = vrot.slane %v224, 7
      %v247 = vrot.slane %v225, 7
      %vm248 = vcmp.lt.s32.totalorder %v235, 1
      %v249 = vsel %vm248, %v246, %v247
      %v250 = vsel %vm248, %v245, %v246
      %v251 = vsel %vm248, %v244, %v245
      %v252 = vsel %vm248, %v247, %v244
      %v253 = vsel %vm240, %v252, 0.0
      %v254 = vsel %vm241, %v251, 0.0
      %v255 = vsel %vm242, %v250, 0.0
      %v256 = vsel %vm243, %v249, 0.0
      %v258 = vlaneseq
      %v259 = vshrl.u32 %v258, 7
      %v260 = vsub.s32 0, %v259
      %v261 = vrot.slane %v239, %v260
      %v263 = vmul.f32 %v261, %v253
      %v264 = vmul.f32 %v261, %v254
      %v265 = vmul.f32 %v261, %v255
      %v266 = vmul.f32 %v261, %v256
      %v267 = vadd.f32 %v222, %v263
      %v268 = vadd.f32 %v223, %v264
      %v269 = vadd.f32 %v224, %v265
      %v270 = vadd.f32 %v225, %v266
      %v271 = vmul.f32 %v239, %v239
      %vm272 = vcmp.ge.s32.totalorder %v235, 2
      %vm273 = vcmp.ge.s32.totalorder %v236, 2
      %vm274 = vcmp.ge.s32.totalorder %v237, 2
      %vm275 = vcmp.ge.s32.totalorder %v238, 2
      %v276 = vrot.slane %v267, 6
      %v277 = vrot.slane %v268, 6
      %v278 = vrot.slane %v269, 6
      %v279 = vrot.slane %v270, 6
      %vm280 = vcmp.lt.s32.totalorder %v235, 2
      %v281 = vsel %vm280, %v278, %v279
      %v282 = vsel %vm280, %v277, %v278
      %v283 = vsel %vm280, %v276, %v277
      %v284 = vsel %vm280, %v279, %v276
      %v285 = vsel %vm272, %v284, 0.0
      %v286 = vsel %vm273, %v283, 0.0
      %v287 = vsel %vm274, %v282, 0.0
      %v288 = vsel %vm275, %v281, 0.0
      %v290 = vlaneseq
      %v291 = vshrl.u32 %v290, 7
      %v292 = vsub.s32 0, %v291
      %v293 = vrot.slane %v271, %v292
      %v295 = vmul.f32 %v293, %v285
      %v296 = vmul.f32 %v293, %v286
      %v297 = vmul.f32 %v293, %v287
      %v298 = vmul.f32 %v293, %v288
      %v299 = vadd.f32 %v267, %v295
      %v300 = vadd.f32 %v268, %v296
      %v301 = vadd.f32 %v269, %v297
      %v302 = vadd.f32 %v270, %v298
      %v303 = vmul.f32 %v271, %v271
      %vm304 = vcmp.ge.s32.totalorder %v235, 4
      %vm305 = vcmp.ge.s32.totalorder %v236, 4
      %vm306 = vcmp.ge.s32.totalorder %v237, 4
      %vm307 = vcmp.ge.s32.totalorder %v238, 4
      %v308 = vrot.slane %v299, 4
      %v309 = vrot.slane %v300, 4
      %v310 = vrot.slane %v301, 4
      %v311 = vrot.slane %v302, 4
      %vm312 = vcmp.lt.s32.totalorder %v235, 4
      %v313 = vsel %vm312, %v310, %v311
      %v314 = vsel %vm312, %v309, %v310
      %v315 = vsel %vm312, %v308, %v309
      %v316 = vsel %vm312, %v311, %v308
      %v317 = vsel %vm304, %v316, 0.0
      %v318 = vsel %vm305, %v315, 0.0
      %v319 = vsel %vm306, %v314, 0.0
      %v320 = vsel %vm307, %v313, 0.0
      %v322 = vlaneseq
      %v323 = vshrl.u32 %v322, 7
      %v324 = vsub.s32 0, %v323
      %v325 = vrot.slane %v303, %v324
      %v327 = vmul.f32 %v325, %v317
      %v328 = vmul.f32 %v325, %v318
      %v329 = vmul.f32 %v325, %v319
      %v330 = vmul.f32 %v325, %v320
      %v331 = vadd.f32 %v299, %v327
      %v332 = vadd.f32 %v300, %v328
      %v333 = vadd.f32 %v301, %v329
      %v334 = vadd.f32 %v302, %v330
      %v335 = vmul.f32 %v303, %v303
      %vm336 = vcmp.ge.s32.totalorder %v235, 8
      %vm337 = vcmp.ge.s32.totalorder %v236, 8
      %vm338 = vcmp.ge.s32.totalorder %v237, 8
      %vm339 = vcmp.ge.s32.totalorder %v238, 8
      %v340 = vsel %vm336, %v334, 0.0
      %v341 = vsel %vm337, %v331, 0.0
      %v342 = vsel %vm338, %v332, 0.0
      %v343 = vsel %vm339, %v333, 0.0
      %v345 = vlaneseq
      %v346 = vshrl.u32 %v345, 7
      %v347 = vsub.s32 0, %v346
      %v348 = vrot.slane %v335, %v347
      %v350 = vmul.f32 %v348, %v340
      %v351 = vmul.f32 %v348, %v341
      %v352 = vmul.f32 %v348, %v342
      %v353 = vmul.f32 %v348, %v343
      %v354 = vadd.f32 %v331, %v350
      %v355 = vadd.f32 %v332, %v351
      %v356 = vadd.f32 %v333, %v352
      %v357 = vadd.f32 %v334, %v353
      %v358 = vmul.f32 %v335, %v335
      %vm359 = vcmp.ge.s32.totalorder %v235, 16
      %vm360 = vcmp.ge.s32.totalorder %v236, 16
      %vm361 = vcmp.ge.s32.totalorder %v237, 16
      %vm362 = vcmp.ge.s32.totalorder %v238, 16
      %v363 = vsel %vm359, %v356, 0.0
      %v364 = vsel %vm360, %v357, 0.0
      %v365 = vsel %vm361, %v354, 0.0
      %v366 = vsel %vm362, %v355, 0.0
      %v368 = vlaneseq
      %v369 = vshrl.u32 %v368, 7
      %v370 = vsub.s32 0, %v369
      %v371 = vrot.slane %v358, %v370
      %v373 = vmul.f32 %v371, %v363
      %v374 = vmul.f32 %v371, %v364
      %v375 = vmul.f32 %v371, %v365
      %v376 = vmul.f32 %v371, %v366
      %v377 = vadd.f32 %v354, %v373
      %v378 = vadd.f32 %v355, %v374
      %v379 = vadd.f32 %v356, %v375
      %v380 = vadd.f32 %v357, %v376
      %v381 = vld [vmem:[%s3] sm:$0x1]
      %vm382 = vcmp.lt.s32.totalorder %v235, 31
      %vm383 = vcmp.lt.s32.totalorder %v236, 31
      %vm384 = vcmp.lt.s32.totalorder %v237, 31
      %vm385 = vcmp.lt.s32.totalorder %v238, 31
      %v386 = vrot.slane %v222, 1
      %v387 = vrot.slane %v223, 1
      %v388 = vrot.slane %v224, 1
      %v389 = vrot.slane %v225, 1
      %vm390 = vcmp.lt.s32.totalorder %v235, 7
      %v391 = vsel %vm390, %v388, %v389
      %v392 = vsel %vm390, %v387, %v388
      %v393 = vsel %vm390, %v386, %v387
      %v394 = vsel %vm390, %v389, %v386
      %v395 = vsel %vm382, %v393, 0.0
      %v396 = vsel %vm383, %v392, 0.0
      %v397 = vsel %vm384, %v391, 0.0
      %v398 = vsel %vm385, %v394, 0.0
      %v400 = vlaneseq
      %v401 = vshrl.u32 %v400, 7
      %v402 = vsub.s32 0, %v401
      %v403 = vrot.slane %v381, %v402
      %v405 = vmul.f32 %v403, %v395
      %v406 = vmul.f32 %v403, %v396
      %v407 = vmul.f32 %v403, %v397
      %v408 = vmul.f32 %v403, %v398
      %v409 = vadd.f32 %v222, %v405
      %v410 = vadd.f32 %v223, %v406
      %v411 = vadd.f32 %v224, %v407
      %v412 = vadd.f32 %v225, %v408
      %v413 = vmul.f32 %v381, %v381
      %vm414 = vcmp.lt.s32.totalorder %v235, 30
      %vm415 = vcmp.lt.s32.totalorder %v236, 30
      %vm416 = vcmp.lt.s32.totalorder %v237, 30
      %vm417 = vcmp.lt.s32.totalorder %v238, 30
      %v418 = vrot.slane %v409, 2
      %v419 = vrot.slane %v410, 2
      %v420 = vrot.slane %v411, 2
      %v421 = vrot.slane %v412, 2
      %vm422 = vcmp.lt.s32.totalorder %v235, 6
      %v423 = vsel %vm422, %v420, %v421
      %v424 = vsel %vm422, %v419, %v420
      %v425 = vsel %vm422, %v418, %v419
      %v426 = vsel %vm422, %v421, %v418
      %v427 = vsel %vm414, %v425, 0.0
      %v428 = vsel %vm415, %v424, 0.0
      %v429 = vsel %vm416, %v423, 0.0
      %v430 = vsel %vm417, %v426, 0.0
      %v432 = vlaneseq
      %v433 = vshrl.u32 %v432, 7
      %v434 = vsub.s32 0, %v433
      %v435 = vrot.slane %v413, %v434
      %v437 = vmul.f32 %v435, %v427
      %v438 = vmul.f32 %v435, %v428
      %v439 = vmul.f32 %v435, %v429
      %v440 = vmul.f32 %v435, %v430
      %v441 = vadd.f32 %v409, %v437
      %v442 = vadd.f32 %v410, %v438
      %v443 = vadd.f32 %v411, %v439
      %v444 = vadd.f32 %v412, %v440
      %v445 = vmul.f32 %v413, %v413
      %vm446 = vcmp.lt.s32.totalorder %v235, 28
      %vm447 = vcmp.lt.s32.totalorder %v236, 28
      %vm448 = vcmp.lt.s32.totalorder %v237, 28
      %vm449 = vcmp.lt.s32.totalorder %v238, 28
      %v450 = vrot.slane %v441, 4
      %v451 = vrot.slane %v442, 4
      %v452 = vrot.slane %v443, 4
      %v453 = vrot.slane %v444, 4
      %v454 = vsel %vm312, %v452, %v453
      %v455 = vsel %vm312, %v451, %v452
      %v456 = vsel %vm312, %v450, %v451
      %v457 = vsel %vm312, %v453, %v450
      %v458 = vsel %vm446, %v456, 0.0
      %v459 = vsel %vm447, %v455, 0.0
      %v460 = vsel %vm448, %v454, 0.0
      %v461 = vsel %vm449, %v457, 0.0
      %v463 = vlaneseq
      %v464 = vshrl.u32 %v463, 7
      %v465 = vsub.s32 0, %v464
      %v466 = vrot.slane %v445, %v465
      %v468 = vmul.f32 %v466, %v458
      %v469 = vmul.f32 %v466, %v459
      %v470 = vmul.f32 %v466, %v460
      %v471 = vmul.f32 %v466, %v461
      %v472 = vadd.f32 %v441, %v468
      %v473 = vadd.f32 %v442, %v469
      %v474 = vadd.f32 %v443, %v470
      %v475 = vadd.f32 %v444, %v471
      %v476 = vmul.f32 %v445, %v445
      %vm477 = vcmp.lt.s32.totalorder %v235, 24
      %vm478 = vcmp.lt.s32.totalorder %v236, 24
      %vm479 = vcmp.lt.s32.totalorder %v237, 24
      %vm480 = vcmp.lt.s32.totalorder %v238, 24
      %v481 = vsel %vm477, %v473, 0.0
      %v482 = vsel %vm478, %v474, 0.0
      %v483 = vsel %vm479, %v475, 0.0
      %v484 = vsel %vm480, %v472, 0.0
      %v486 = vlaneseq
      %v487 = vshrl.u32 %v486, 7
      %v488 = vsub.s32 0, %v487
      %v489 = vrot.slane %v476, %v488
      %v491 = vmul.f32 %v489, %v481
      %v492 = vmul.f32 %v489, %v482
      %v493 = vmul.f32 %v489, %v483
      %v494 = vmul.f32 %v489, %v484
      %v495 = vadd.f32 %v472, %v491
      %v496 = vadd.f32 %v473, %v492
      %v497 = vadd.f32 %v474, %v493
      %v498 = vadd.f32 %v475, %v494
      %v499 = vmul.f32 %v476, %v476
      %vm500 = vcmp.lt.s32.totalorder %v235, 16
      %vm501 = vcmp.lt.s32.totalorder %v236, 16
      %vm502 = vcmp.lt.s32.totalorder %v237, 16
      %vm503 = vcmp.lt.s32.totalorder %v238, 16
      %v504 = vsel %vm500, %v497, 0.0
      %v505 = vsel %vm501, %v498, 0.0
      %v506 = vsel %vm502, %v495, 0.0
      %v507 = vsel %vm503, %v496, 0.0
      %v509 = vlaneseq
      %v510 = vshrl.u32 %v509, 7
      %v511 = vsub.s32 0, %v510
      %v512 = vrot.slane %v499, %v511
      %v514 = vmul.f32 %v512, %v504
      %v515 = vmul.f32 %v512, %v505
      %v516 = vmul.f32 %v512, %v506
      %v517 = vmul.f32 %v512, %v507
      %v518 = vadd.f32 %v495, %v514
      %v519 = vadd.f32 %v496, %v515
      %v520 = vadd.f32 %v497, %v516
      %v521 = vadd.f32 %v498, %v517
      %v522 = vadd.f32 %v377, %v518
      %v523 = vadd.f32 %v378, %v519
      %v524 = vadd.f32 %v379, %v520
      %v525 = vadd.f32 %v380, %v521
      %v526 = vxor.u32 %v230, 2147483648
      %v527 = vxor.u32 %v231, 2147483648
      %v528 = vxor.u32 %v232, 2147483648
      %v529 = vxor.u32 %v233, 2147483648
      %v530 = vmul.f32 %v526, 1.442695
      %v531 = vpow.pop %v530
      %v532 = vmul.f32 %v527, 1.442695
      %v533 = vpow.pop %v532
      %v534 = vmul.f32 %v528, 1.442695
      %v535 = vpow.pop %v534
      %v536 = vmul.f32 %v529, 1.442695
      %v537 = vpow.pop %v536
      %v538 = vadd.f32 %v531, 1.0
      %v539 = vadd.f32 %v533, 1.0
      %v540 = vadd.f32 %v535, 1.0
      %v541 = vadd.f32 %v537, 1.0
      %v542 = vrcp.pop %v538
      %v543 = vmul.f32 1.0, %v542
      %v544 = vrcp.pop %v539
      %v545 = vmul.f32 1.0, %v544
      %v546 = vrcp.pop %v540
      %v547 = vmul.f32 1.0, %v546
      %v548 = vrcp.pop %v541
      %v549 = vmul.f32 1.0, %v548
      %v550 = vmul.f32 %v230, %v543
      %v551 = vmul.f32 %v231, %v545
      %v552 = vmul.f32 %v232, %v547
      %v553 = vmul.f32 %v233, %v549
      %v554 = vmul.f32 %v522, %v550
      %v555 = vmul.f32 %v523, %v551
      %v556 = vmul.f32 %v524, %v552
      %v557 = vmul.f32 %v525, %v553
      %v558 = vpack.c.bf16 %v555, %v554
      %v559 = vpack.c.bf16 %v557, %v556
      %v562 = vunpack.c.l.b16 %v558
      %v563 = vunpack.c.h.b16 %v558
      %v564 = vunpack.c.l.b16 %v559
      %v565 = vunpack.c.h.b16 %v559
      %v566 = vpack.c.b16 %v562, %v562
      %v567 = vpack.c.b16 %v563, %v563
      %v568 = vpack.c.b16 %v564, %v564
      %v569 = vpack.c.b16 %v565, %v565
      %vm574 = vcmask 257024
      %575 = vst.msk [vmem:[%s217] sm:$0xf] %vm574, %v566
      %576 = vst.msk [vmem:[%s217 + $0x4] sm:$0xf] %vm574, %v567
      %577 = vst.msk [vmem:[%s217 + $0x8] sm:$0xf] %vm574, %v568
      %578 = vst.msk [vmem:[%s217 + $0xc] sm:$0xf] %vm574, %v569
      %p579 = scmp.lt.s32.totalorder %s15, 1
      %s580 = scalar_select %p579, %s15, 1
      %s581 = smul.addr %s580, 4
      %s582 = smul.addr %s581, 4
      %s583 = scalar_lea.vmem %s4, %s582
      // Predicated region
      $region37: #{pose_mamba_forward.16} parent=35 // pred_check
        %p584 = pneg %p127
      $region38: #{pose_mamba_forward.16} parent=35 // pred_check_branch
        %586 = sbr.rel (%p584) target = $region40
      $region39: #{pose_mamba_forward.16} parent=35 // pred_region
        _
      $region40: #{pose_mamba_forward.16} parent=35 // pred_fallthru
        _
    $region36: #{pose_mamba_forward.16} parent=5 // pred_fallthru
      _
    %p587 = scmp.le.s32.totalorder 2, %s10
    // Predicated region
    $region41: #{pose_mamba_forward.16} parent=5 // pred_check
      %p588 = pneg %p587
    $region42: #{pose_mamba_forward.16} parent=5 // pred_check_branch
      %590 = sbr.rel (%p588) target = $region44
    $region43: #{pose_mamba_forward.16} parent=5 // pred_region
      %s591 = ssub.s32 %s10, 2
      // Predicated region
      $region45: #{pose_mamba_forward.16} parent=43 // pred_check
        %p592 = pneg %p133
      $region46: #{pose_mamba_forward.16} parent=43 // pred_check_branch
        %594 = sbr.rel (%p592) target = $region48
      $region47: #{pose_mamba_forward.16} parent=43 // pred_region
        %p595 = scmp.lt.s32.totalorder %s16, 1
        %s596 = scalar_select %p595, %s16, 1
        %s597 = smul.addr %s596, 4
        %s598 = smul.addr %s597, 4
        %s599 = scalar_lea.vmem %s4, %s598
      $region48: #{pose_mamba_forward.16} parent=43 // pred_fallthru
        _
    $region44: #{pose_mamba_forward.16} parent=5 // pred_fallthru
      _
  $region6: #{pose_mamba_forward.16} parent=0 // loop_footer
    %s14 = sadd.s32 1, %s10
  $region7: #{pose_mamba_forward.16} parent=0 // loop_footer_branch
    %9 = sbr.rel target = $region3
  $region8: #{pose_mamba_forward.16} parent=0 // loop_exit
    _

// kernel: pose_mamba_forward.14
$region0: #{pose_mamba_forward.14}
  #allocation0 [shape = 'u32[]', space=smem, size = 0x4, offset = 0x4, fixed_abs, tag = 'smem constant byte address 0x4 - core index']
  #allocation1 [shape = 'u32[144,128]{1,0:T(1,128)}', space=vmem, size = 0x12000, scoped, tag = 'internal scratch']
  %s0 = inlined_call_operand.vmem [shape: f32[64,2], index: 0, kind: input, shape index: {}]
  %s1 = inlined_call_operand.vmem [shape: bf16[2,32], index: 1, kind: input, shape index: {}]
  %s2 = inlined_call_operand.vmem [shape: f32[1,32], index: 2, kind: input, shape index: {}]
  %s3 = inlined_call_operand.vmem [shape: bf16[64,32], index: 3, kind: output, shape index: {}]
  %s4 = sld [smem:[#allocation0]]
  $region45: #{pose_mamba_forward.14} parent=0
    _
  %s6 = ssub.s32 1, %s4
  %s7 = scalar_select 0, %s6, %s4
  loop: start=0, step=1, limit=4
  $region2: #{pose_mamba_forward.14} parent=0 // loop_pre_header
    _
  $region3: #{pose_mamba_forward.14} parent=0 // loop_header
    %s9 = sphi 0, %s13
    %p10 = scmp.ge.s32.totalorder %s9, 4
    %s19 = sphi 0, %s21
    %s22 = sphi 0, %s19
    %s23 = sphi 0, %s22
    %s39 = sphi 0, %s23
    %s43 = sphi 0, %s43
    %s45 = sphi 0, %s43
    %s46 = sphi 0, %s45
    %s60 = sphi 0, %s46
    %s64 = sphi 0, %s64
    %s66 = sphi 0, %s64
    %s67 = sphi 0, %s66
    %s81 = sphi 0, %s67
    %s87 = sphi 0, %s89
    %s90 = sphi 0, %s87
    %s91 = sphi 0, %s90
    %s107 = sphi 0, %s91
  $region4: #{pose_mamba_forward.14} parent=0 // loop_header_branch
    %12 = sbr.rel (%p10) target = $region8
  $region5: #{pose_mamba_forward.14} parent=0 // loop_body
    %s14 = ssub.s32 %s9, 1
    %s15 = ssub.s32 %s9, 2
    %s16 = sadd.s32 %s9, 1
    %s17 = ssub.s32 %s9, %s16
    %p18 = scmp.eq.s32.totalorder %s17, 0
    %s20 = sadd.s32 %s19, 1
    %s21 = scalar_select %p18, %s19, %s20
    %p24 = pneg %p18
    %p25 = scmp.eq.s32.totalorder %s9, 1
    %p26 = por %p24, %p25
    %p27 = scmp.ne.s32.totalorder %s19, %s22
    %p28 = scmp.eq.s32.totalorder %s9, 0
    %p29 = por %p27, %p28
    %p30 = scmp.ne.s32.totalorder %s19, %s22
    %p31 = scmp.eq.s32.totalorder %s14, 1
    %p32 = por %p30, %p31
    %p33 = scmp.ne.s32.totalorder %s22, %s23
    %p34 = scmp.eq.s32.totalorder %s14, 0
    %p35 = por %p33, %p34
    %p36 = scmp.ne.s32.totalorder %s22, %s23
    %p37 = scmp.eq.s32.totalorder %s15, 1
    %p38 = por %p36, %p37
    %p40 = scmp.ne.s32.totalorder %s23, %s39
    %p41 = scmp.eq.s32.totalorder %s15, 0
    %p42 = por %p40, %p41
    %s44 = sadd.s32 %s43, 1
    %p47 = scmp.eq.s32.totalorder %s9, 1
    %p48 = scmp.ne.s32.totalorder %s43, %s45
    %p49 = scmp.eq.s32.totalorder %s9, 0
    %p50 = por %p48, %p49
    %p51 = scmp.ne.s32.totalorder %s43, %s45
    %p52 = scmp.eq.s32.totalorder %s14, 1
    %p53 = por %p51, %p52
    %p54 = scmp.ne.s32.totalorder %s45, %s46
    %p55 = scmp.eq.s32.totalorder %s14, 0
    %p56 = por %p54, %p55
    %p57 = scmp.ne.s32.totalorder %s45, %s46
    %p58 = scmp.eq.s32.totalorder %s15, 1
    %p59 = por %p57, %p58
    %p61 = scmp.ne.s32.totalorder %s46, %s60
    %p62 = scmp.eq.s32.totalorder %s15, 0
    %p63 = por %p61, %p62
    %s65 = sadd.s32 %s64, 1
    %p68 = scmp.eq.s32.totalorder %s9, 1
    %p69 = scmp.ne.s32.totalorder %s64, %s66
    %p70 = scmp.eq.s32.totalorder %s9, 0
    %p71 = por %p69, %p70
    %p72 = scmp.ne.s32.totalorder %s64, %s66
    %p73 = scmp.eq.s32.totalorder %s14, 1
    %p74 = por %p72, %p73
    %p75 = scmp.ne.s32.totalorder %s66, %s67
    %p76 = scmp.eq.s32.totalorder %s14, 0
    %p77 = por %p75, %p76
    %p78 = scmp.ne.s32.totalorder %s66, %s67
    %p79 = scmp.eq.s32.totalorder %s15, 1
    %p80 = por %p78, %p79
    %p82 = scmp.ne.s32.totalorder %s67, %s81
    %p83 = scmp.eq.s32.totalorder %s15, 0
    %p84 = por %p82, %p83
    %s85 = ssub.s32 %s9, %s16
    %p86 = scmp.eq.s32.totalorder %s85, 0
    %s88 = sadd.s32 %s87, 1
    %s89 = scalar_select %p86, %s87, %s88
    %p92 = pneg %p86
    %p93 = scmp.eq.s32.totalorder %s9, 1
    %p94 = por %p92, %p93
    %p95 = scmp.ne.s32.totalorder %s87, %s90
    %p96 = scmp.eq.s32.totalorder %s9, 0
    %p97 = por %p95, %p96
    %p98 = scmp.ne.s32.totalorder %s87, %s90
    %p99 = scmp.eq.s32.totalorder %s14, 1
    %p100 = por %p98, %p99
    %p101 = scmp.ne.s32.totalorder %s90, %s91
    %p102 = scmp.eq.s32.totalorder %s14, 0
    %p103 = por %p101, %p102
    %p104 = scmp.ne.s32.totalorder %s90, %s91
    %p105 = scmp.eq.s32.totalorder %s15, 1
    %p106 = por %p104, %p105
    %p108 = scmp.ne.s32.totalorder %s91, %s107
    %p109 = scmp.eq.s32.totalorder %s15, 0
    %p110 = por %p108, %p109
    %p111 = scmp.le.s32.totalorder 1, %s9
    %p112 = scmp.lt.s32.totalorder %s9, 3
    %p113 = pnand %p111, %p112
    %p114 = pneg %p113
    // Predicated region
    $region9: #{pose_mamba_forward.14} parent=5 // pred_check
      _
    $region10: #{pose_mamba_forward.14} parent=5 // pred_check_branch
      %116 = sbr.rel (%p113) target = $region12
    $region11: #{pose_mamba_forward.14} parent=5 // pred_region
      %s117 = ssub.s32 %s9, 1
      // Predicated region
      $region13: #{pose_mamba_forward.14} parent=11 // pred_check
        %p118 = pneg %p56
      $region14: #{pose_mamba_forward.14} parent=11 // pred_check_branch
        %120 = sbr.rel (%p118) target = $region16
      $region15: #{pose_mamba_forward.14} parent=11 // pred_region
        _
      $region16: #{pose_mamba_forward.14} parent=11 // pred_fallthru
        _
      // Predicated region
      $region17: #{pose_mamba_forward.14} parent=11 // pred_check
        %p121 = pneg %p77
      $region18: #{pose_mamba_forward.14} parent=11 // pred_check_branch
        %123 = sbr.rel (%p121) target = $region20
      $region19: #{pose_mamba_forward.14} parent=11 // pred_region
        _
      $region20: #{pose_mamba_forward.14} parent=11 // pred_fallthru
        _
    $region12: #{pose_mamba_forward.14} parent=5 // pred_fallthru
      _
    %p124 = scmp.lt.s32.totalorder %s9, 2
    // Predicated region
    $region21: #{pose_mamba_forward.14} parent=5 // pred_check
      %p125 = pneg %p124
    $region22: #{pose_mamba_forward.14} parent=5 // pred_check_branch
      %127 = sbr.rel (%p125) target = $region24
    $region23: #{pose_mamba_forward.14} parent=5 // pred_region
      // Predicated region
      $region25: #{pose_mamba_forward.14} parent=23 // pred_check
        %p128 = pneg %p29
      $region26: #{pose_mamba_forward.14} parent=23 // pred_check_branch
        %130 = sbr.rel (%p128) target = $region28
      $region27: #{pose_mamba_forward.14} parent=23 // pred_region
        %s131 = smul.u32 4, %s9
        %p132 = scmp.lt.s32.totalorder %s131, 7
        %s133 = scalar_select %p132, %s131, 7
        %s134 = smul.addr %s133, 8
        %s135 = scalar_lea.vmem %s0, %s134
        %s136 = smul.u32 4, %s9
      $region28: #{pose_mamba_forward.14} parent=23 // pred_fallthru
        _
    $region24: #{pose_mamba_forward.14} parent=5 // pred_fallthru
      _
    %p137 = scmp.le.s32.totalorder 1, %s9
    %p138 = scmp.lt.s32.totalorder %s9, 3
    %p139 = pnand %p137, %p138
    %p140 = pneg %p139
    // Predicated region
    $region29: #{pose_mamba_forward.14} parent=5 // pred_check
      _
    $region30: #{pose_mamba_forward.14} parent=5 // pred_check_branch
      %142 = sbr.rel (%p139) target = $region32
    $region31: #{pose_mamba_forward.14} parent=5 // pred_region
      %s143 = ssub.s32 %s9, 1
      %s144 = smul.u32 4, %s14
      %p145 = scmp.lt.s32.totalorder %s144, 7
      %s146 = scalar_select %p145, %s144, 7
      %s147 = smul.addr %s146, 8
      %s148 = scalar_lea.vmem %s0, %s147
      %p149 = pneg %p35
      %p150 = pneg %p32
      %p151 = pneg %p56
      %p152 = pneg %p53
      %p153 = pneg %p77
      %p154 = pneg %p74
      %p155 = pneg %p103
      %p156 = pneg %p100
      %s157 = smul.u32 4, %s14
      %p158 = scmp.lt.s32.totalorder %s157, 7
      %s159 = scalar_select %p158, %s157, 7
      %s160 = smul.addr %s159, 4
      %s161 = scalar_lea.vmem %s3, %s160
      %s162 = smul.u32 4, %s14
      %p163 = scmp.lt.s32.totalorder %s162, 7
      %s164 = scalar_select %p163, %s162, 7
      %s165 = smul.addr %s164, 8
      %s166 = scalar_lea.vmem %s0, %s165
      %s167 = smul.u32 4, %s14
      %s168 = smul.u32 4, %s14
      %p169 = scmp.lt.s32.totalorder %s168, 7
      %s170 = scalar_select %p169, %s168, 7
      %s171 = smul.addr %s170, 4
      %s172 = scalar_lea.vmem %s3, %s171
      %s173 = smul.u32 4, %s14
      %v175 = vld [vmem:[%s166] sm:$0xff]
      %v176 = vld [vmem:[%s166 + $0x8] sm:$0xff]
      %v177 = vld [vmem:[%s166 + $0x10] sm:$0xff]
      %v178 = vld [vmem:[%s166 + $0x18] sm:$0xff]
      %v179 = vpack.c.bf16 %v176, %v175
      %v180 = vpack.c.bf16 %v178, %v177
      %v181 = vld [vmem:[%s1] sm:$0x1]
      %v182 = vld [vmem:[%s2] sm:$0x1]
      %v184 = vlaneseq
      %v185 = vshrl.u32 %v184, 7
      %v186 = vsub.s32 0, %v185
      %v187 = vrot.slane %v182, %v186
      %vm189 = vcmask 15360
      %v191 = vsel %vm189, %v179, 0
      %v194 = vsel %vm189, %v180, 0
      %vm196 = vcmask 1040384
      %v198 = vsel %vm196, %v181, 0
      %200 = vmatprep.subr.bf16.mxu0 0
      %201 = vmatpush1.bf16.msra.mxu0 %v198
      %202 = vmatprep.subr.bf16.mxu0 0
      %203 = vmatpush1.bf16.msra.mxu0 0
      %204 = vmatprep.subr.bf16.mxu0 0
      %205 = vmatpush1.bf16.msra.mxu0 0
      %206 = vmatprep.subr.bf16.mxu0 0
      %207 = vmatpush1.bf16.msra.mxu0 0
      %208 = vmatprep.subr.bf16.mxu0 0
      %209 = vmatpush1.bf16.msra.mxu0 0
      %210 = vmatprep.subr.bf16.mxu0 0
      %211 = vmatpush1.bf16.msra.mxu0 0
      %212 = vmatprep.subr.bf16.mxu0 0
      %213 = vmatpush1.bf16.msra.mxu0 0
      %214 = vmatprep.subr.bf16.mxu0 0
      %215 = vmatpush1.bf16.msra.mxu0 0
      %216 = vmatprep.subr.bf16.mxu0 0
      %217 = vmatpush1.bf16.msra.mxu0 0
      %218 = vmatprep.subr.bf16.mxu0 0
      %219 = vmatpush1.bf16.msra.mxu0 0
      %220 = vmatprep.subr.bf16.mxu0 0
      %221 = vmatpush1.bf16.msra.mxu0 0
      %222 = vmatprep.subr.bf16.mxu0 0
      %223 = vmatpush1.bf16.msra.mxu0 0
      %224 = vmatprep.subr.bf16.mxu0 0
      %225 = vmatpush1.bf16.msra.mxu0 0
      %226 = vmatprep.subr.bf16.mxu0 0
      %227 = vmatpush1.bf16.msra.mxu0 0
      %228 = vmatprep.subr.bf16.mxu0 0
      %229 = vmatpush1.bf16.msra.mxu0 0
      %230 = vmatprep.subr.bf16.mxu0 0
      %231 = vmatpush1.bf16.msra.mxu0 0
      %232 = vmatprep.mubr.bf16.mxu0 0
      %233 = vmatmul.mubr.bf16.gmra.mrb[0].mxu0 %v191
      %v234 = vpop.f32.mrb[0].mxu0
      %v235 = vadd.f32 %v187, %v234
      %v236 = vpop.f32.mrb[0].mxu0
      %v237 = vpop.f32.mrb[0].mxu0
      %v238 = vadd.f32 %v187, %v237
      %v239 = vpop.f32.mrb[0].mxu0
      %240 = vmatprep.mubr.bf16.mxu0 0
      %241 = vmatmul.mubr.bf16.gmra.mrb[0].mxu0 %v194
      %v242 = vpop.f32.mrb[0].mxu0
      %v243 = vadd.f32 %v187, %v242
      %v244 = vpop.f32.mrb[0].mxu0
      %v245 = vpop.f32.mrb[0].mxu0
      %v246 = vadd.f32 %v187, %v245
      %v247 = vpop.f32.mrb[0].mxu0
      %248 = vdwg.mxu0
      %v249 = vpack.c.bf16 %v238, %v235
      %v250 = vpack.c.bf16 %v246, %v243
      %v253 = vunpack.c.l.b16 %v249
      %v254 = vunpack.c.h.b16 %v249
      %v255 = vunpack.c.l.b16 %v250
      %v256 = vunpack.c.h.b16 %v250
      %v257 = vpack.c.b16 %v253, %v253
      %v258 = vpack.c.b16 %v254, %v254
      %v259 = vpack.c.b16 %v255, %v255
      %v260 = vpack.c.b16 %v256, %v256
      %vm265 = vcmask 257024
      %266 = vst.msk [vmem:[%s172] sm:$0xf] %vm265, %v257
      %267 = vst.msk [vmem:[%s172 + $0x4] sm:$0xf] %vm265, %v258
      %268 = vst.msk [vmem:[%s172 + $0x8] sm:$0xf] %vm265, %v259
      %269 = vst.msk [vmem:[%s172 + $0xc] sm:$0xf] %vm265, %v260
      %s270 = smul.u32 4, %s14
      %p271 = scmp.lt.s32.totalorder %s270, 7
      %s272 = scalar_select %p271, %s270, 7
      %s273 = smul.addr %s272, 4
      %s274 = scalar_lea.vmem %s3, %s273
      // Predicated region
      $region33: #{pose_mamba_forward.14} parent=31 // pred_check
        %p275 = pneg %p100
      $region34: #{pose_mamba_forward.14} parent=31 // pred_check_branch
        %277 = sbr.rel (%p275) target = $region36
      $region35: #{pose_mamba_forward.14} parent=31 // pred_region
        %s278 = smul.u32 4, %s14
      $region36: #{pose_mamba_forward.14} parent=31 // pred_fallthru
        _
    $region32: #{pose_mamba_forward.14} parent=5 // pred_fallthru
      _
    %p279 = scmp.le.s32.totalorder 2, %s9
    // Predicated region
    $region37: #{pose_mamba_forward.14} parent=5 // pred_check
      %p280 = pneg %p279
    $region38: #{pose_mamba_forward.14} parent=5 // pred_check_branch
      %282 = sbr.rel (%p280) target = $region40
    $region39: #{pose_mamba_forward.14} parent=5 // pred_region
      %s283 = ssub.s32 %s9, 2
      // Predicated region
      $region41: #{pose_mamba_forward.14} parent=39 // pred_check
        %p284 = pneg %p106
      $region42: #{pose_mamba_forward.14} parent=39 // pred_check_branch
        %286 = sbr.rel (%p284) target = $region44
      $region43: #{pose_mamba_forward.14} parent=39 // pred_region
        %s287 = smul.u32 4, %s15
        %p288 = scmp.lt.s32.totalorder %s287, 7
        %s289 = scalar_select %p288, %s287, 7
        %s290 = smul.addr %s289, 4
        %s291 = scalar_lea.vmem %s3, %s290
      $region44: #{pose_mamba_forward.14} parent=39 // pred_fallthru
        _
    $region40: #{pose_mamba_forward.14} parent=5 // pred_fallthru
      _
  $region6: #{pose_mamba_forward.14} parent=0 // loop_footer
    %s13 = sadd.s32 1, %s9
  $region7: #{pose_mamba_forward.14} parent=0 // loop_footer_branch
    %8 = sbr.rel target = $region3
  $region8: #{pose_mamba_forward.14} parent=0 // loop_exit
    _

// kernel: pose_mamba_forward.15
$region0: #{pose_mamba_forward.15}
  #allocation0 [shape = 'u32[]', space=smem, size = 0x4, offset = 0x4, fixed_abs, tag = 'smem constant byte address 0x4 - core index']
  #allocation1 [shape = 'u32[144,128]{1,0:T(1,128)}', space=vmem, size = 0x12000, scoped, tag = 'internal scratch']
  %s0 = inlined_call_operand.vmem [shape: bf16[64,32], index: 0, kind: input, shape index: {}]
  %s1 = inlined_call_operand.vmem [shape: f32[1,32], index: 1, kind: input, shape index: {}]
  %s2 = inlined_call_operand.vmem [shape: f32[1,32], index: 2, kind: input, shape index: {}]
  %s3 = inlined_call_operand.vmem [shape: bf16[32,64], index: 3, kind: input, shape index: {}]
  %s4 = inlined_call_operand.vmem [shape: f32[1,64], index: 4, kind: input, shape index: {}]
  %s5 = inlined_call_operand.vmem [shape: bf16[64,32], index: 5, kind: output, shape index: {0}]
  %s6 = inlined_call_operand.vmem [shape: bf16[64,32], index: 6, kind: output, shape index: {1}]
  %7 = xla_tuple %s5, %s6
  %s8 = sld [smem:[#allocation0]]
  $region61: #{pose_mamba_forward.15} parent=0
    _
  %s10 = ssub.s32 1, %s8
  %s11 = scalar_select 0, %s10, %s8
  loop: start=0, step=1, limit=4
  $region2: #{pose_mamba_forward.15} parent=0 // loop_pre_header
    _
  $region3: #{pose_mamba_forward.15} parent=0 // loop_header
    %s13 = sphi 0, %s17
    %p14 = scmp.ge.s32.totalorder %s13, 4
    %s23 = sphi 0, %s25
    %s26 = sphi 0, %s23
    %s27 = sphi 0, %s26
    %s43 = sphi 0, %s27
    %s47 = sphi 0, %s47
    %s49 = sphi 0, %s47
    %s50 = sphi 0, %s49
    %s64 = sphi 0, %s50
    %s68 = sphi 0, %s68
    %s70 = sphi 0, %s68
    %s71 = sphi 0, %s70
    %s85 = sphi 0, %s71
    %s89 = sphi 0, %s89
    %s91 = sphi 0, %s89
    %s92 = sphi 0, %s91
    %s106 = sphi 0, %s92
    %s110 = sphi 0, %s110
    %s112 = sphi 0, %s110
    %s113 = sphi 0, %s112
    %s127 = sphi 0, %s113
    %s133 = sphi 0, %s135
    %s136 = sphi 0, %s133
    %s137 = sphi 0, %s136
    %s153 = sphi 0, %s137
    %s159 = sphi 0, %s161
    %s162 = sphi 0, %s159
    %s163 = sphi 0, %s162
    %s179 = sphi 0, %s163
  $region4: #{pose_mamba_forward.15} parent=0 // loop_header_branch
    %16 = sbr.rel (%p14) target = $region8
  $region5: #{pose_mamba_forward.15} parent=0 // loop_body
    %s18 = ssub.s32 %s13, 1
    %s19 = ssub.s32 %s13, 2
    %s20 = sadd.s32 %s13, 1
    %s21 = ssub.s32 %s13, %s20
    %p22 = scmp.eq.s32.totalorder %s21, 0
    %s24 = sadd.s32 %s23, 1
    %s25 = scalar_select %p22, %s23, %s24
    %p28 = pneg %p22
    %p29 = scmp.eq.s32.totalorder %s13, 1
    %p30 = por %p28, %p29
    %p31 = scmp.ne.s32.totalorder %s23, %s26
    %p32 = scmp.eq.s32.totalorder %s13, 0
    %p33 = por %p31, %p32
    %p34 = scmp.ne.s32.totalorder %s23, %s26
    %p35 = scmp.eq.s32.totalorder %s18, 1
    %p36 = por %p34, %p35
    %p37 = scmp.ne.s32.totalorder %s26, %s27
    %p38 = scmp.eq.s32.totalorder %s18, 0
    %p39 = por %p37, %p38
    %p40 = scmp.ne.s32.totalorder %s26, %s27
    %p41 = scmp.eq.s32.totalorder %s19, 1
    %p42 = por %p40, %p41
    %p44 = scmp.ne.s32.totalorder %s27, %s43
    %p45 = scmp.eq.s32.totalorder %s19, 0
    %p46 = por %p44, %p45
    %s48 = sadd.s32 %s47, 1
    %p51 = scmp.eq.s32.totalorder %s13, 1
    %p52 = scmp.ne.s32.totalorder %s47, %s49
    %p53 = scmp.eq.s32.totalorder %s13, 0
    %p54 = por %p52, %p53
    %p55 = scmp.ne.s32.totalorder %s47, %s49
    %p56 = scmp.eq.s32.totalorder %s18, 1
    %p57 = por %p55, %p56
    %p58 = scmp.ne.s32.totalorder %s49, %s50
    %p59 = scmp.eq.s32.totalorder %s18, 0
    %p60 = por %p58, %p59
    %p61 = scmp.ne.s32.totalorder %s49, %s50
    %p62 = scmp.eq.s32.totalorder %s19, 1
    %p63 = por %p61, %p62
    %p65 = scmp.ne.s32.totalorder %s50, %s64
    %p66 = scmp.eq.s32.totalorder %s19, 0
    %p67 = por %p65, %p66
    %s69 = sadd.s32 %s68, 1
    %p72 = scmp.eq.s32.totalorder %s13, 1
    %p73 = scmp.ne.s32.totalorder %s68, %s70
    %p74 = scmp.eq.s32.totalorder %s13, 0
    %p75 = por %p73, %p74
    %p76 = scmp.ne.s32.totalorder %s68, %s70
    %p77 = scmp.eq.s32.totalorder %s18, 1
    %p78 = por %p76, %p77
    %p79 = scmp.ne.s32.totalorder %s70, %s71
    %p80 = scmp.eq.s32.totalorder %s18, 0
    %p81 = por %p79, %p80
    %p82 = scmp.ne.s32.totalorder %s70, %s71
    %p83 = scmp.eq.s32.totalorder %s19, 1
    %p84 = por %p82, %p83
    %p86 = scmp.ne.s32.totalorder %s71, %s85
    %p87 = scmp.eq.s32.totalorder %s19, 0
    %p88 = por %p86, %p87
    %s90 = sadd.s32 %s89, 1
    %p93 = scmp.eq.s32.totalorder %s13, 1
    %p94 = scmp.ne.s32.totalorder %s89, %s91
    %p95 = scmp.eq.s32.totalorder %s13, 0
    %p96 = por %p94, %p95
    %p97 = scmp.ne.s32.totalorder %s89, %s91
    %p98 = scmp.eq.s32.totalorder %s18, 1
    %p99 = por %p97, %p98
    %p100 = scmp.ne.s32.totalorder %s91, %s92
    %p101 = scmp.eq.s32.totalorder %s18, 0
    %p102 = por %p100, %p101
    %p103 = scmp.ne.s32.totalorder %s91, %s92
    %p104 = scmp.eq.s32.totalorder %s19, 1
    %p105 = por %p103, %p104
    %p107 = scmp.ne.s32.totalorder %s92, %s106
    %p108 = scmp.eq.s32.totalorder %s19, 0
    %p109 = por %p107, %p108
    %s111 = sadd.s32 %s110, 1
    %p114 = scmp.eq.s32.totalorder %s13, 1
    %p115 = scmp.ne.s32.totalorder %s110, %s112
    %p116 = scmp.eq.s32.totalorder %s13, 0
    %p117 = por %p115, %p116
    %p118 = scmp.ne.s32.totalorder %s110, %s112
    %p119 = scmp.eq.s32.totalorder %s18, 1
    %p120 = por %p118, %p119
    %p121 = scmp.ne.s32.totalorder %s112, %s113
    %p122 = scmp.eq.s32.totalorder %s18, 0
    %p123 = por %p121, %p122
    %p124 = scmp.ne.s32.totalorder %s112, %s113
    %p125 = scmp.eq.s32.totalorder %s19, 1
    %p126 = por %p124, %p125
    %p128 = scmp.ne.s32.totalorder %s113, %s127
    %p129 = scmp.eq.s32.totalorder %s19, 0
    %p130 = por %p128, %p129
    %s131 = ssub.s32 %s13, %s20
    %p132 = scmp.eq.s32.totalorder %s131, 0
    %s134 = sadd.s32 %s133, 1
    %s135 = scalar_select %p132, %s133, %s134
    %p138 = pneg %p132
    %p139 = scmp.eq.s32.totalorder %s13, 1
    %p140 = por %p138, %p139
    %p141 = scmp.ne.s32.totalorder %s133, %s136
    %p142 = scmp.eq.s32.totalorder %s13, 0
    %p143 = por %p141, %p142
    %p144 = scmp.ne.s32.totalorder %s133, %s136
    %p145 = scmp.eq.s32.totalorder %s18, 1
    %p146 = por %p144, %p145
    %p147 = scmp.ne.s32.totalorder %s136, %s137
    %p148 = scmp.eq.s32.totalorder %s18, 0
    %p149 = por %p147, %p148
    %p150 = scmp.ne.s32.totalorder %s136, %s137
    %p151 = scmp.eq.s32.totalorder %s19, 1
    %p152 = por %p150, %p151
    %p154 = scmp.ne.s32.totalorder %s137, %s153
    %p155 = scmp.eq.s32.totalorder %s19, 0
    %p156 = por %p154, %p155
    %s157 = ssub.s32 %s13, %s20
    %p158 = scmp.eq.s32.totalorder %s157, 0
    %s160 = sadd.s32 %s159, 1
    %s161 = scalar_select %p158, %s159, %s160
    %p164 = pneg %p158
    %p165 = scmp.eq.s32.totalorder %s13, 1
    %p166 = por %p164, %p165
    %p167 = scmp.ne.s32.totalorder %s159, %s162
    %p168 = scmp.eq.s32.totalorder %s13, 0
    %p169 = por %p167, %p168
    %p170 = scmp.ne.s32.totalorder %s159, %s162
    %p171 = scmp.eq.s32.totalorder %s18, 1
    %p172 = por %p170, %p171
    %p173 = scmp.ne.s32.totalorder %s162, %s163
    %p174 = scmp.eq.s32.totalorder %s18, 0
    %p175 = por %p173, %p174
    %p176 = scmp.ne.s32.totalorder %s162, %s163
    %p177 = scmp.eq.s32.totalorder %s19, 1
    %p178 = por %p176, %p177
    %p180 = scmp.ne.s32.totalorder %s163, %s179
    %p181 = scmp.eq.s32.totalorder %s19, 0
    %p182 = por %p180, %p181
    %p183 = scmp.le.s32.totalorder 1, %s13
    %p184 = scmp.lt.s32.totalorder %s13, 3
    %p185 = pnand %p183, %p184
    %p186 = pneg %p185
    // Predicated region
    $region9: #{pose_mamba_forward.15} parent=5 // pred_check
      _
    $region10: #{pose_mamba_forward.15} parent=5 // pred_check_branch
      %188 = sbr.rel (%p185) target = $region12
    $region11: #{pose_mamba_forward.15} parent=5 // pred_region
      %s189 = ssub.s32 %s13, 1
      // Predicated region
      $region13: #{pose_mamba_forward.15} parent=11 // pred_check
        %p190 = pneg %p60
      $region14: #{pose_mamba_forward.15} parent=11 // pred_check_branch
        %192 = sbr.rel (%p190) target = $region16
      $region15: #{pose_mamba_forward.15} parent=11 // pred_region
        _
      $region16: #{pose_mamba_forward.15} parent=11 // pred_fallthru
        _
      // Predicated region
      $region17: #{pose_mamba_forward.15} parent=11 // pred_check
        %p193 = pneg %p81
      $region18: #{pose_mamba_forward.15} parent=11 // pred_check_branch
        %195 = sbr.rel (%p193) target = $region20
      $region19: #{pose_mamba_forward.15} parent=11 // pred_region
        _
      $region20: #{pose_mamba_forward.15} parent=11 // pred_fallthru
        _
      // Predicated region
      $region21: #{pose_mamba_forward.15} parent=11 // pred_check
        %p196 = pneg %p102
      $region22: #{pose_mamba_forward.15} parent=11 // pred_check_branch
        %198 = sbr.rel (%p196) target = $region24
      $region23: #{pose_mamba_forward.15} parent=11 // pred_region
        _
      $region24: #{pose_mamba_forward.15} parent=11 // pred_fallthru
        _
      // Predicated region
      $region25: #{pose_mamba_forward.15} parent=11 // pred_check
        %p199 = pneg %p123
      $region26: #{pose_mamba_forward.15} parent=11 // pred_check_branch
        %201 = sbr.rel (%p199) target = $region28
      $region27: #{pose_mamba_forward.15} parent=11 // pred_region
        _
      $region28: #{pose_mamba_forward.15} parent=11 // pred_fallthru
        _
    $region12: #{pose_mamba_forward.15} parent=5 // pred_fallthru
      _
    %p202 = scmp.lt.s32.totalorder %s13, 2
    // Predicated region
    $region29: #{pose_mamba_forward.15} parent=5 // pred_check
      %p203 = pneg %p202
    $region30: #{pose_mamba_forward.15} parent=5 // pred_check_branch
      %205 = sbr.rel (%p203) target = $region32
    $region31: #{pose_mamba_forward.15} parent=5 // pred_region
      // Predicated region
      $region33: #{pose_mamba_forward.15} parent=31 // pred_check
        %p206 = pneg %p33
      $region34: #{pose_mamba_forward.15} parent=31 // pred_check_branch
        %208 = sbr.rel (%p206) target = $region36
      $region35: #{pose_mamba_forward.15} parent=31 // pred_region
        %s209 = smul.u32 4, %s13
        %p210 = scmp.lt.s32.totalorder %s209, 7
        %s211 = scalar_select %p210, %s209, 7
        %s212 = smul.addr %s211, 4
        %s213 = scalar_lea.vmem %s0, %s212
        %s214 = smul.u32 4, %s13
      $region36: #{pose_mamba_forward.15} parent=31 // pred_fallthru
        _
    $region32: #{pose_mamba_forward.15} parent=5 // pred_fallthru
      _
    %p215 = scmp.le.s32.totalorder 1, %s13
    %p216 = scmp.lt.s32.totalorder %s13, 3
    %p217 = pnand %p215, %p216
    %p218 = pneg %p217
    // Predicated region
    $region37: #{pose_mamba_forward.15} parent=5 // pred_check
      _
    $region38: #{pose_mamba_forward.15} parent=5 // pred_check_branch
      %220 = sbr.rel (%p217) target = $region40
    $region39: #{pose_mamba_forward.15} parent=5 // pred_region
      %s221 = ssub.s32 %s13, 1
      %s222 = smul.u32 4, %s18
      %p223 = scmp.lt.s32.totalorder %s222, 7
      %s224 = scalar_select %p223, %s222, 7
      %s225 = smul.addr %s224, 4
      %s226 = scalar_lea.vmem %s0, %s225
      %p227 = pneg %p39
      %p228 = pneg %p36
      %p229 = pneg %p60
      %p230 = pneg %p57
      %p231 = pneg %p81
      %p232 = pneg %p78
      %p233 = pneg %p102
      %p234 = pneg %p99
      %p235 = pneg %p123
      %p236 = pneg %p120
      %p237 = pneg %p149
      %p238 = pneg %p146
      %s239 = smul.u32 4, %s18
      %p240 = scmp.lt.s32.totalorder %s239, 7
      %s241 = scalar_select %p240, %s239, 7
      %s242 = smul.addr %s241, 4
      %s243 = scalar_lea.vmem %s5, %s242
      %p244 = pneg %p175
      %p245 = pneg %p172
      %s246 = smul.u32 4, %s18
      %p247 = scmp.lt.s32.totalorder %s246, 7
      %s248 = scalar_select %p247, %s246, 7
      %s249 = smul.addr %s248, 4
      %s250 = scalar_lea.vmem %s6, %s249
      %s251 = smul.u32 4, %s18
      %p252 = scmp.lt.s32.totalorder %s251, 7
      %s253 = scalar_select %p252, %s251, 7
      %s254 = smul.addr %s253, 4
      %s255 = scalar_lea.vmem %s0, %s254
      %s256 = smul.u32 4, %s18
      %s257 = smul.u32 4, %s18
      %p258 = scmp.lt.s32.totalorder %s257, 7
      %s259 = scalar_select %p258, %s257, 7
      %s260 = smul.addr %s259, 4
      %s261 = scalar_lea.vmem %s5, %s260
      %s262 = smul.u32 4, %s18
      %s263 = smul.u32 4, %s18
      %p264 = scmp.lt.s32.totalorder %s263, 7
      %s265 = scalar_select %p264, %s263, 7
      %s266 = smul.addr %s265, 4
      %s267 = scalar_lea.vmem %s6, %s266
      %s268 = smul.u32 4, %s18
      %v270 = vld [vmem:[%s255] sm:$0xf]
      %v271 = vld [vmem:[%s255 + $0x4] sm:$0xf]
      %v272 = vld [vmem:[%s255 + $0x8] sm:$0xf]
      %v273 = vld [vmem:[%s255 + $0xc] sm:$0xf]
      %v274 = vunpack.c.l.bf16 %v270
      %v275 = vunpack.c.l.bf16 %v271
      %v276 = vunpack.c.l.bf16 %v272
      %v277 = vunpack.c.l.bf16 %v273
      %v278 = vld [vmem:[%s1] sm:$0x1]
      %v279 = vld [vmem:[%s2] sm:$0x1]
      %vm280 = vcmask 261120
      %v281 = vsel %vm280, %v274, 0.0
      %282 = vadd.xlane.f32.xlu0 %v281
      %v283 = vpop.xlane.xlu0 %282
      %v284 = vsel %vm280, %v275, 0.0
      %285 = vadd.xlane.f32.xlu0 %v284
      %v286 = vpop.xlane.xlu0 %285
      %v287 = vsel %vm280, %v276, 0.0
      %288 = vadd.xlane.f32.xlu0 %v287
      %v289 = vpop.xlane.xlu0 %288
      %v290 = vsel %vm280, %v277, 0.0
      %291 = vadd.xlane.f32.xlu0 %v290
      %v292 = vpop.xlane.xlu0 %291
      %v293 = vrcp.pop 32.0
      %v294 = vmul.f32 %v283, %v293
      %v295 = vmul.f32 %v286, %v293
      %v296 = vmul.f32 %v289, %v293
      %v297 = vmul.f32 %v292, %v293
      %v298 = vsub.f32 %v274, %v294
      %v299 = vsub.f32 %v275, %v295
      %v300 = vsub.f32 %v276, %v296
      %v301 = vsub.f32 %v277, %v297
      %v302 = vmul.f32 %v298, %v298
      %v303 = vmul.f32 %v299, %v299
      %v304 = vmul.f32 %v300, %v300
      %v305 = vmul.f32 %v301, %v301
      %v306 = vsel %vm280, %v302, 0.0
      %307 = vadd.xlane.f32.xlu0 %v306
      %v308 = vpop.xlane.xlu0 %307
      %v309 = vsel %vm280, %v303, 0.0
      %310 = vadd.xlane.f32.xlu0 %v309
      %v311 = vpop.xlane.xlu0 %310
      %v312 = vsel %vm280, %v304, 0.0
      %313 = vadd.xlane.f32.xlu0 %v312
      %v314 = vpop.xlane.xlu0 %313
      %v315 = vsel %vm280, %v305, 0.0
      %316 = vadd.xlane.f32.xlu0 %v315
      %v317 = vpop.xlane.xlu0 %316
      %v318 = vmul.f32 %v308, %v293
      %v319 = vmul.f32 %v311, %v293
      %v320 = vmul.f32 %v314, %v293
      %v321 = vmul.f32 %v317, %v293
      %v322 = vadd.f32 %v318, 1e-06
      %v323 = vadd.f32 %v319, 1e-06
      %v324 = vadd.f32 %v320, 1e-06
      %v325 = vadd.f32 %v321, 1e-06
      %v326 = vrsqrt.pop %v322
      %v327 = vrsqrt.pop %v323
      %v328 = vrsqrt.pop %v324
      %v329 = vrsqrt.pop %v325
      %v330 = vmul.f32 %v298, %v326
      %v331 = vmul.f32 %v299, %v327
      %v332 = vmul.f32 %v300, %v328
      %v333 = vmul.f32 %v301, %v329
      %v335 = vlaneseq
      %v336 = vshrl.u32 %v335, 7
      %v337 = vsub.s32 0, %v336
      %v338 = vrot.slane %v278, %v337
      %v340 = vmul.f32 %v330, %v338
      %v341 = vmul.f32 %v331, %v338
      %v342 = vmul.f32 %v332, %v338
      %v343 = vmul.f32 %v333, %v338
      %v345 = vlaneseq
      %v346 = vshrl.u32 %v345, 7
      %v347 = vsub.s32 0, %v346
      %v348 = vrot.slane %v279, %v347
      %v350 = vadd.f32 %v340, %v348
      %v351 = vadd.f32 %v341, %v348
      %v352 = vadd.f32 %v342, %v348
      %v353 = vadd.f32 %v343, %v348
      %v354 = vpack.c.bf16 %v351, %v350
      %v355 = vpack.c.bf16 %v353, %v352
      %v356 = vld [vmem:[%s3] sm:$0xf]
      %v357 = vld [vmem:[%s3 + $0x4] sm:$0xf]
      %v358 = vld [vmem:[%s3 + $0x8] sm:$0xf]
      %v359 = vld [vmem:[%s3 + $0xc] sm:$0xf]
      %v360 = vld [vmem:[%s4] sm:$0x1]
      %v362 = vlaneseq
      %v363 = vshrl.u32 %v362, 7
      %v364 = vsub.s32 0, %v363
      %v365 = vrot.slane %v360, %v364
      %v371 = vunpack.c.l.b16 %v356
      %v372 = vunpack.c.l.b16 %v357
      %v373 = vunpack.c.l.b16 %v358
      %v374 = vunpack.c.l.b16 %v359
      %v375 = vpack.c.b16 %v372, %v371
      %v376 = vpack.c.b16 %v374, %v373
      %v380 = vsel %vm280, %v354, 0
      %v383 = vsel %vm280, %v355, 0
      %385 = vmatprep.subr.bf16.mxu0 0
      %386 = vmatpush1.bf16.msra.mxu0 %v375
      %387 = vmatprep.subr.bf16.mxu0 0
      %388 = vmatpush1.bf16.msra.mxu0 %v376
      %389 = vmatprep.subr.bf16.mxu0 0
      %390 = vmatpush1.bf16.msra.mxu0 0
      %391 = vmatprep.subr.bf16.mxu0 0
      %392 = vmatpush1.bf16.msra.mxu0 0
      %393 = vmatprep.subr.bf16.mxu0 0
      %394 = vmatpush1.bf16.msra.mxu0 0
      %395 = vmatprep.subr.bf16.mxu0 0
      %396 = vmatpush1.bf16.msra.mxu0 0
      %397 = vmatprep.subr.bf16.mxu0 0
      %398 = vmatpush1.bf16.msra.mxu0 0
      %399 = vmatprep.subr.bf16.mxu0 0
      %400 = vmatpush1.bf16.msra.mxu0 0
      %401 = vmatprep.subr.bf16.mxu0 0
      %402 = vmatpush1.bf16.msra.mxu0 0
      %403 = vmatprep.subr.bf16.mxu0 0
      %404 = vmatpush1.bf16.msra.mxu0 0
      %405 = vmatprep.subr.bf16.mxu0 0
      %406 = vmatpush1.bf16.msra.mxu0 0
      %407 = vmatprep.subr.bf16.mxu0 0
      %408 = vmatpush1.bf16.msra.mxu0 0
      %409 = vmatprep.subr.bf16.mxu0 0
      %410 = vmatpush1.bf16.msra.mxu0 0
      %411 = vmatprep.subr.bf16.mxu0 0
      %412 = vmatpush1.bf16.msra.mxu0 0
      %413 = vmatprep.subr.bf16.mxu0 0
      %414 = vmatpush1.bf16.msra.mxu0 0
      %415 = vmatprep.subr.bf16.mxu0 0
      %416 = vmatpush1.bf16.msra.mxu0 0
      %417 = vmatprep.mubr.bf16.mxu0 0
      %418 = vmatmul.mubr.bf16.gmra.mrb[0].mxu0 %v380
      %v419 = vpop.f32.mrb[0].mxu0
      %v420 = vadd.f32 %v365, %v419
      %v421 = vpop.f32.mrb[0].mxu0
      %v422 = vpop.f32.mrb[0].mxu0
      %v423 = vadd.f32 %v365, %v422
      %v424 = vpop.f32.mrb[0].mxu0
      %425 = vmatprep.mubr.bf16.mxu0 0
      %426 = vmatmul.mubr.bf16.gmra.mrb[0].mxu0 %v383
      %v427 = vpop.f32.mrb[0].mxu0
      %v428 = vadd.f32 %v365, %v427
      %v429 = vpop.f32.mrb[0].mxu0
      %v430 = vpop.f32.mrb[0].mxu0
      %v431 = vadd.f32 %v365, %v430
      %v432 = vpop.f32.mrb[0].mxu0
      %433 = vdwg.mxu0
      %v434 = vpack.c.bf16 %v423, %v420
      %v435 = vpack.c.bf16 %v431, %v428
      %v438 = vunpack.c.l.b16 %v434
      %v439 = vunpack.c.h.b16 %v434
      %v440 = vunpack.c.l.b16 %v435
      %v441 = vunpack.c.h.b16 %v435
      %v442 = vpack.c.b16 %v438, %v438
      %v443 = vpack.c.b16 %v439, %v439
      %v444 = vpack.c.b16 %v440, %v440
      %v445 = vpack.c.b16 %v441, %v441
      %vm450 = vcmask 257024
      %451 = vst.msk [vmem:[%s261] sm:$0xf] %vm450, %v442
      %452 = vst.msk [vmem:[%s261 + $0x4] sm:$0xf] %vm450, %v443
      %453 = vst.msk [vmem:[%s261 + $0x8] sm:$0xf] %vm450, %v444
      %454 = vst.msk [vmem:[%s261 + $0xc] sm:$0xf] %vm450, %v445
      %455 = vrot.lane.b32.xlu0 %v442, 96
      %v456 = vpop.permute.xlu0 %455
      %457 = vrot.lane.b32.xlu0 %v443, 96
      %v458 = vpop.permute.xlu0 %457
      %459 = vrot.lane.b32.xlu0 %v444, 96
      %v460 = vpop.permute.xlu0 %459
      %461 = vrot.lane.b32.xlu0 %v445, 96
      %v462 = vpop.permute.xlu0 %461
      %467 = vst.msk [vmem:[%s267] sm:$0xf] %vm450, %v456
      %468 = vst.msk [vmem:[%s267 + $0x4] sm:$0xf] %vm450, %v458
      %469 = vst.msk [vmem:[%s267 + $0x8] sm:$0xf] %vm450, %v460
      %470 = vst.msk [vmem:[%s267 + $0xc] sm:$0xf] %vm450, %v462
      %s471 = smul.u32 4, %s18
      %p472 = scmp.lt.s32.totalorder %s471, 7
      %s473 = scalar_select %p472, %s471, 7
      %s474 = smul.addr %s473, 4
      %s475 = scalar_lea.vmem %s5, %s474
      %s476 = smul.u32 4, %s18
      %p477 = scmp.lt.s32.totalorder %s476, 7
      %s478 = scalar_select %p477, %s476, 7
      %s479 = smul.addr %s478, 4
      %s480 = scalar_lea.vmem %s6, %s479
      // Predicated region
      $region41: #{pose_mamba_forward.15} parent=39 // pred_check
        %p481 = pneg %p146
      $region42: #{pose_mamba_forward.15} parent=39 // pred_check_branch
        %483 = sbr.rel (%p481) target = $region44
      $region43: #{pose_mamba_forward.15} parent=39 // pred_region
        %s484 = smul.u32 4, %s18
      $region44: #{pose_mamba_forward.15} parent=39 // pred_fallthru
        _
      // Predicated region
      $region45: #{pose_mamba_forward.15} parent=39 // pred_check
        %p485 = pneg %p172
      $region46: #{pose_mamba_forward.15} parent=39 // pred_check_branch
        %487 = sbr.rel (%p485) target = $region48
      $region47: #{pose_mamba_forward.15} parent=39 // pred_region
        %s488 = smul.u32 4, %s18
      $region48: #{pose_mamba_forward.15} parent=39 // pred_fallthru
        _
    $region40: #{pose_mamba_forward.15} parent=5 // pred_fallthru
      _
    %p489 = scmp.le.s32.totalorder 2, %s13
    // Predicated region
    $region49: #{pose_mamba_forward.15} parent=5 // pred_check
      %p490 = pneg %p489
    $region50: #{pose_mamba_forward.15} parent=5 // pred_check_branch
      %492 = sbr.rel (%p490) target = $region52
    $region51: #{pose_mamba_forward.15} parent=5 // pred_region
      %s493 = ssub.s32 %s13, 2
      // Predicated region
      $region53: #{pose_mamba_forward.15} parent=51 // pred_check
        %p494 = pneg %p152
      $region54: #{pose_mamba_forward.15} parent=51 // pred_check_branch
        %496 = sbr.rel (%p494) target = $region56
      $region55: #{pose_mamba_forward.15} parent=51 // pred_region
        %s497 = smul.u32 4, %s19
        %p498 = scmp.lt.s32.totalorder %s497, 7
        %s499 = scalar_select %p498, %s497, 7
        %s500 = smul.addr %s499, 4
        %s501 = scalar_lea.vmem %s5, %s500
      $region56: #{pose_mamba_forward.15} parent=51 // pred_fallthru
        _
      // Predicated region
      $region57: #{pose_mamba_forward.15} parent=51 // pred_check
        %p502 = pneg %p178
      $region58: #{pose_mamba_forward.15} parent=51 // pred_check_branch
        %504 = sbr.rel (%p502) target = $region60
      $region59: #{pose_mamba_forward.15} parent=51 // pred_region
        %s505 = smul.u32 4, %s19
        %p506 = scmp.lt.s32.totalorder %s505, 7
        %s507 = scalar_select %p506, %s505, 7
        %s508 = smul.addr %s507, 4
        %s509 = scalar_lea.vmem %s6, %s508
      $region60: #{pose_mamba_forward.15} parent=51 // pred_fallthru
        _
    $region52: #{pose_mamba_forward.15} parent=5 // pred_fallthru
      _
  $region6: #{pose_mamba_forward.15} parent=0 // loop_footer
    %s17 = sadd.s32 1, %s13
  $region7: #{pose_mamba_forward.15} parent=0 // loop_footer_branch
    %12 = sbr.rel target = $region3
  $region8: #{pose_mamba_forward.15} parent=0 // loop_exit
    _

// kernel: pose_mamba_forward.17
$region0: #{pose_mamba_forward.17}
  #allocation0 [shape = 'u32[]', space=smem, size = 0x4, offset = 0x4, fixed_abs, tag = 'smem constant byte address 0x4 - core index']
  #allocation1 [shape = 'u32[144,128]{1,0:T(1,128)}', space=vmem, size = 0x12000, scoped, tag = 'internal scratch']
  %s0 = inlined_call_operand.vmem [shape: bf16[64,32], index: 0, kind: input, shape index: {}]
  %s1 = inlined_call_operand.vmem [shape: bf16[64,32], index: 1, kind: input, shape index: {}]
  %s2 = inlined_call_operand.vmem [shape: bf16[32,32], index: 2, kind: input, shape index: {}]
  %s3 = inlined_call_operand.vmem [shape: f32[1,32], index: 3, kind: input, shape index: {}]
  %s4 = inlined_call_operand.vmem [shape: f32[1,32], index: 4, kind: input, shape index: {}]
  %s5 = inlined_call_operand.vmem [shape: f32[1,32], index: 5, kind: input, shape index: {}]
  %s6 = inlined_call_operand.vmem [shape: bf16[32,64], index: 6, kind: input, shape index: {}]
  %s7 = inlined_call_operand.vmem [shape: f32[1,64], index: 7, kind: input, shape index: {}]
  %s8 = inlined_call_operand.vmem [shape: bf16[64,32], index: 8, kind: input, shape index: {}]
  %s9 = inlined_call_operand.vmem [shape: f32[1,32], index: 9, kind: input, shape index: {}]
  %s10 = inlined_call_operand.vmem [shape: f32[1,32], index: 10, kind: input, shape index: {}]
  %s11 = inlined_call_operand.vmem [shape: f32[1,32], index: 11, kind: input, shape index: {}]
  %s12 = inlined_call_operand.vmem [shape: bf16[64,32], index: 12, kind: output, shape index: {}]
  %s13 = sld [smem:[#allocation0]]
  $region81: #{pose_mamba_forward.17} parent=0
    _
  %s15 = ssub.s32 1, %s13
  %s16 = scalar_select 0, %s15, %s13
  loop: start=0, step=1, limit=4
  $region2: #{pose_mamba_forward.17} parent=0 // loop_pre_header
    _
  $region3: #{pose_mamba_forward.17} parent=0 // loop_header
    %s18 = sphi 0, %s22
    %p19 = scmp.ge.s32.totalorder %s18, 4
    %s28 = sphi 0, %s30
    %s31 = sphi 0, %s28
    %s32 = sphi 0, %s31
    %s48 = sphi 0, %s32
    %s54 = sphi 0, %s56
    %s57 = sphi 0, %s54
    %s58 = sphi 0, %s57
    %s74 = sphi 0, %s58
    %s78 = sphi 0, %s78
    %s80 = sphi 0, %s78
    %s81 = sphi 0, %s80
    %s95 = sphi 0, %s81
    %s99 = sphi 0, %s99
    %s101 = sphi 0, %s99
    %s102 = sphi 0, %s101
    %s116 = sphi 0, %s102
    %s120 = sphi 0, %s120
    %s122 = sphi 0, %s120
    %s123 = sphi 0, %s122
    %s137 = sphi 0, %s123
    %s141 = sphi 0, %s141
    %s143 = sphi 0, %s141
    %s144 = sphi 0, %s143
    %s158 = sphi 0, %s144
    %s162 = sphi 0, %s162
    %s164 = sphi 0, %s162
    %s165 = sphi 0, %s164
    %s179 = sphi 0, %s165
    %s183 = sphi 0, %s183
    %s185 = sphi 0, %s183
    %s186 = sphi 0, %s185
    %s200 = sphi 0, %s186
    %s204 = sphi 0, %s204
    %s206 = sphi 0, %s204
    %s207 = sphi 0, %s206
    %s221 = sphi 0, %s207
    %s225 = sphi 0, %s225
    %s227 = sphi 0, %s225
    %s228 = sphi 0, %s227
    %s242 = sphi 0, %s228
    %s246 = sphi 0, %s246
    %s248 = sphi 0, %s246
    %s249 = sphi 0, %s248
    %s263 = sphi 0, %s249
    %s267 = sphi 0, %s267
    %s269 = sphi 0, %s267
    %s270 = sphi 0, %s269
    %s284 = sphi 0, %s270
    %s290 = sphi 0, %s292
    %s293 = sphi 0, %s290
    %s294 = sphi 0, %s293
    %s310 = sphi 0, %s294
  $region4: #{pose_mamba_forward.17} parent=0 // loop_header_branch
    %21 = sbr.rel (%p19) target = $region8
  $region5: #{pose_mamba_forward.17} parent=0 // loop_body
    %s23 = ssub.s32 %s18, 1
    %s24 = ssub.s32 %s18, 2
    %s25 = sadd.s32 %s18, 1
    %s26 = ssub.s32 %s18, %s25
    %p27 = scmp.eq.s32.totalorder %s26, 0
    %s29 = sadd.s32 %s28, 1
    %s30 = scalar_select %p27, %s28, %s29
    %p33 = pneg %p27
    %p34 = scmp.eq.s32.totalorder %s18, 1
    %p35 = por %p33, %p34
    %p36 = scmp.ne.s32.totalorder %s28, %s31
    %p37 = scmp.eq.s32.totalorder %s18, 0
    %p38 = por %p36, %p37
    %p39 = scmp.ne.s32.totalorder %s28, %s31
    %p40 = scmp.eq.s32.totalorder %s23, 1
    %p41 = por %p39, %p40
    %p42 = scmp.ne.s32.totalorder %s31, %s32
    %p43 = scmp.eq.s32.totalorder %s23, 0
    %p44 = por %p42, %p43
    %p45 = scmp.ne.s32.totalorder %s31, %s32
    %p46 = scmp.eq.s32.totalorder %s24, 1
    %p47 = por %p45, %p46
    %p49 = scmp.ne.s32.totalorder %s32, %s48
    %p50 = scmp.eq.s32.totalorder %s24, 0
    %p51 = por %p49, %p50
    %s52 = ssub.s32 %s18, %s25
    %p53 = scmp.eq.s32.totalorder %s52, 0
    %s55 = sadd.s32 %s54, 1
    %s56 = scalar_select %p53, %s54, %s55
    %p59 = pneg %p53
    %p60 = scmp.eq.s32.totalorder %s18, 1
    %p61 = por %p59, %p60
    %p62 = scmp.ne.s32.totalorder %s54, %s57
    %p63 = scmp.eq.s32.totalorder %s18, 0
    %p64 = por %p62, %p63
    %p65 = scmp.ne.s32.totalorder %s54, %s57
    %p66 = scmp.eq.s32.totalorder %s23, 1
    %p67 = por %p65, %p66
    %p68 = scmp.ne.s32.totalorder %s57, %s58
    %p69 = scmp.eq.s32.totalorder %s23, 0
    %p70 = por %p68, %p69
    %p71 = scmp.ne.s32.totalorder %s57, %s58
    %p72 = scmp.eq.s32.totalorder %s24, 1
    %p73 = por %p71, %p72
    %p75 = scmp.ne.s32.totalorder %s58, %s74
    %p76 = scmp.eq.s32.totalorder %s24, 0
    %p77 = por %p75, %p76
    %s79 = sadd.s32 %s78, 1
    %p82 = scmp.eq.s32.totalorder %s18, 1
    %p83 = scmp.ne.s32.totalorder %s78, %s80
    %p84 = scmp.eq.s32.totalorder %s18, 0
    %p85 = por %p83, %p84
    %p86 = scmp.ne.s32.totalorder %s78, %s80
    %p87 = scmp.eq.s32.totalorder %s23, 1
    %p88 = por %p86, %p87
    %p89 = scmp.ne.s32.totalorder %s80, %s81
    %p90 = scmp.eq.s32.totalorder %s23, 0
    %p91 = por %p89, %p90
    %p92 = scmp.ne.s32.totalorder %s80, %s81
    %p93 = scmp.eq.s32.totalorder %s24, 1
    %p94 = por %p92, %p93
    %p96 = scmp.ne.s32.totalorder %s81, %s95
    %p97 = scmp.eq.s32.totalorder %s24, 0
    %p98 = por %p96, %p97
    %s100 = sadd.s32 %s99, 1
    %p103 = scmp.eq.s32.totalorder %s18, 1
    %p104 = scmp.ne.s32.totalorder %s99, %s101
    %p105 = scmp.eq.s32.totalorder %s18, 0
    %p106 = por %p104, %p105
    %p107 = scmp.ne.s32.totalorder %s99, %s101
    %p108 = scmp.eq.s32.totalorder %s23, 1
    %p109 = por %p107, %p108
    %p110 = scmp.ne.s32.totalorder %s101, %s102
    %p111 = scmp.eq.s32.totalorder %s23, 0
    %p112 = por %p110, %p111
    %p113 = scmp.ne.s32.totalorder %s101, %s102
    %p114 = scmp.eq.s32.totalorder %s24, 1
    %p115 = por %p113, %p114
    %p117 = scmp.ne.s32.totalorder %s102, %s116
    %p118 = scmp.eq.s32.totalorder %s24, 0
    %p119 = por %p117, %p118
    %s121 = sadd.s32 %s120, 1
    %p124 = scmp.eq.s32.totalorder %s18, 1
    %p125 = scmp.ne.s32.totalorder %s120, %s122
    %p126 = scmp.eq.s32.totalorder %s18, 0
    %p127 = por %p125, %p126
    %p128 = scmp.ne.s32.totalorder %s120, %s122
    %p129 = scmp.eq.s32.totalorder %s23, 1
    %p130 = por %p128, %p129
    %p131 = scmp.ne.s32.totalorder %s122, %s123
    %p132 = scmp.eq.s32.totalorder %s23, 0
    %p133 = por %p131, %p132
    %p134 = scmp.ne.s32.totalorder %s122, %s123
    %p135 = scmp.eq.s32.totalorder %s24, 1
    %p136 = por %p134, %p135
    %p138 = scmp.ne.s32.totalorder %s123, %s137
    %p139 = scmp.eq.s32.totalorder %s24, 0
    %p140 = por %p138, %p139
    %s142 = sadd.s32 %s141, 1
    %p145 = scmp.eq.s32.totalorder %s18, 1
    %p146 = scmp.ne.s32.totalorder %s141, %s143
    %p147 = scmp.eq.s32.totalorder %s18, 0
    %p148 = por %p146, %p147
    %p149 = scmp.ne.s32.totalorder %s141, %s143
    %p150 = scmp.eq.s32.totalorder %s23, 1
    %p151 = por %p149, %p150
    %p152 = scmp.ne.s32.totalorder %s143, %s144
    %p153 = scmp.eq.s32.totalorder %s23, 0
    %p154 = por %p152, %p153
    %p155 = scmp.ne.s32.totalorder %s143, %s144
    %p156 = scmp.eq.s32.totalorder %s24, 1
    %p157 = por %p155, %p156
    %p159 = scmp.ne.s32.totalorder %s144, %s158
    %p160 = scmp.eq.s32.totalorder %s24, 0
    %p161 = por %p159, %p160
    %s163 = sadd.s32 %s162, 1
    %p166 = scmp.eq.s32.totalorder %s18, 1
    %p167 = scmp.ne.s32.totalorder %s162, %s164
    %p168 = scmp.eq.s32.totalorder %s18, 0
    %p169 = por %p167, %p168
    %p170 = scmp.ne.s32.totalorder %s162, %s164
    %p171 = scmp.eq.s32.totalorder %s23, 1
    %p172 = por %p170, %p171
    %p173 = scmp.ne.s32.totalorder %s164, %s165
    %p174 = scmp.eq.s32.totalorder %s23, 0
    %p175 = por %p173, %p174
    %p176 = scmp.ne.s32.totalorder %s164, %s165
    %p177 = scmp.eq.s32.totalorder %s24, 1
    %p178 = por %p176, %p177
    %p180 = scmp.ne.s32.totalorder %s165, %s179
    %p181 = scmp.eq.s32.totalorder %s24, 0
    %p182 = por %p180, %p181
    %s184 = sadd.s32 %s183, 1
    %p187 = scmp.eq.s32.totalorder %s18, 1
    %p188 = scmp.ne.s32.totalorder %s183, %s185
    %p189 = scmp.eq.s32.totalorder %s18, 0
    %p190 = por %p188, %p189
    %p191 = scmp.ne.s32.totalorder %s183, %s185
    %p192 = scmp.eq.s32.totalorder %s23, 1
    %p193 = por %p191, %p192
    %p194 = scmp.ne.s32.totalorder %s185, %s186
    %p195 = scmp.eq.s32.totalorder %s23, 0
    %p196 = por %p194, %p195
    %p197 = scmp.ne.s32.totalorder %s185, %s186
    %p198 = scmp.eq.s32.totalorder %s24, 1
    %p199 = por %p197, %p198
    %p201 = scmp.ne.s32.totalorder %s186, %s200
    %p202 = scmp.eq.s32.totalorder %s24, 0
    %p203 = por %p201, %p202
    %s205 = sadd.s32 %s204, 1
    %p208 = scmp.eq.s32.totalorder %s18, 1
    %p209 = scmp.ne.s32.totalorder %s204, %s206
    %p210 = scmp.eq.s32.totalorder %s18, 0
    %p211 = por %p209, %p210
    %p212 = scmp.ne.s32.totalorder %s204, %s206
    %p213 = scmp.eq.s32.totalorder %s23, 1
    %p214 = por %p212, %p213
    %p215 = scmp.ne.s32.totalorder %s206, %s207
    %p216 = scmp.eq.s32.totalorder %s23, 0
    %p217 = por %p215, %p216
    %p218 = scmp.ne.s32.totalorder %s206, %s207
    %p219 = scmp.eq.s32.totalorder %s24, 1
    %p220 = por %p218, %p219
    %p222 = scmp.ne.s32.totalorder %s207, %s221
    %p223 = scmp.eq.s32.totalorder %s24, 0
    %p224 = por %p222, %p223
    %s226 = sadd.s32 %s225, 1
    %p229 = scmp.eq.s32.totalorder %s18, 1
    %p230 = scmp.ne.s32.totalorder %s225, %s227
    %p231 = scmp.eq.s32.totalorder %s18, 0
    %p232 = por %p230, %p231
    %p233 = scmp.ne.s32.totalorder %s225, %s227
    %p234 = scmp.eq.s32.totalorder %s23, 1
    %p235 = por %p233, %p234
    %p236 = scmp.ne.s32.totalorder %s227, %s228
    %p237 = scmp.eq.s32.totalorder %s23, 0
    %p238 = por %p236, %p237
    %p239 = scmp.ne.s32.totalorder %s227, %s228
    %p240 = scmp.eq.s32.totalorder %s24, 1
    %p241 = por %p239, %p240
    %p243 = scmp.ne.s32.totalorder %s228, %s242
    %p244 = scmp.eq.s32.totalorder %s24, 0
    %p245 = por %p243, %p244
    %s247 = sadd.s32 %s246, 1
    %p250 = scmp.eq.s32.totalorder %s18, 1
    %p251 = scmp.ne.s32.totalorder %s246, %s248
    %p252 = scmp.eq.s32.totalorder %s18, 0
    %p253 = por %p251, %p252
    %p254 = scmp.ne.s32.totalorder %s246, %s248
    %p255 = scmp.eq.s32.totalorder %s23, 1
    %p256 = por %p254, %p255
    %p257 = scmp.ne.s32.totalorder %s248, %s249
    %p258 = scmp.eq.s32.totalorder %s23, 0
    %p259 = por %p257, %p258
    %p260 = scmp.ne.s32.totalorder %s248, %s249
    %p261 = scmp.eq.s32.totalorder %s24, 1
    %p262 = por %p260, %p261
    %p264 = scmp.ne.s32.totalorder %s249, %s263
    %p265 = scmp.eq.s32.totalorder %s24, 0
    %p266 = por %p264, %p265
    %s268 = sadd.s32 %s267, 1
    %p271 = scmp.eq.s32.totalorder %s18, 1
    %p272 = scmp.ne.s32.totalorder %s267, %s269
    %p273 = scmp.eq.s32.totalorder %s18, 0
    %p274 = por %p272, %p273
    %p275 = scmp.ne.s32.totalorder %s267, %s269
    %p276 = scmp.eq.s32.totalorder %s23, 1
    %p277 = por %p275, %p276
    %p278 = scmp.ne.s32.totalorder %s269, %s270
    %p279 = scmp.eq.s32.totalorder %s23, 0
    %p280 = por %p278, %p279
    %p281 = scmp.ne.s32.totalorder %s269, %s270
    %p282 = scmp.eq.s32.totalorder %s24, 1
    %p283 = por %p281, %p282
    %p285 = scmp.ne.s32.totalorder %s270, %s284
    %p286 = scmp.eq.s32.totalorder %s24, 0
    %p287 = por %p285, %p286
    %s288 = ssub.s32 %s18, %s25
    %p289 = scmp.eq.s32.totalorder %s288, 0
    %s291 = sadd.s32 %s290, 1
    %s292 = scalar_select %p289, %s290, %s291
    %p295 = pneg %p289
    %p296 = scmp.eq.s32.totalorder %s18, 1
    %p297 = por %p295, %p296
    %p298 = scmp.ne.s32.totalorder %s290, %s293
    %p299 = scmp.eq.s32.totalorder %s18, 0
    %p300 = por %p298, %p299
    %p301 = scmp.ne.s32.totalorder %s290, %s293
    %p302 = scmp.eq.s32.totalorder %s23, 1
    %p303 = por %p301, %p302
    %p304 = scmp.ne.s32.totalorder %s293, %s294
    %p305 = scmp.eq.s32.totalorder %s23, 0
    %p306 = por %p304, %p305
    %p307 = scmp.ne.s32.totalorder %s293, %s294
    %p308 = scmp.eq.s32.totalorder %s24, 1
    %p309 = por %p307, %p308
    %p311 = scmp.ne.s32.totalorder %s294, %s310
    %p312 = scmp.eq.s32.totalorder %s24, 0
    %p313 = por %p311, %p312
    %p314 = scmp.le.s32.totalorder 1, %s18
    %p315 = scmp.lt.s32.totalorder %s18, 3
    %p316 = pnand %p314, %p315
    %p317 = pneg %p316
    // Predicated region
    $region9: #{pose_mamba_forward.17} parent=5 // pred_check
      _
    $region10: #{pose_mamba_forward.17} parent=5 // pred_check_branch
      %319 = sbr.rel (%p316) target = $region12
    $region11: #{pose_mamba_forward.17} parent=5 // pred_region
      %s320 = ssub.s32 %s18, 1
      // Predicated region
      $region13: #{pose_mamba_forward.17} parent=11 // pred_check
        %p321 = pneg %p91
      $region14: #{pose_mamba_forward.17} parent=11 // pred_check_branch
        %323 = sbr.rel (%p321) target = $region16
      $region15: #{pose_mamba_forward.17} parent=11 // pred_region
        _
      $region16: #{pose_mamba_forward.17} parent=11 // pred_fallthru
        _
      // Predicated region
      $region17: #{pose_mamba_forward.17} parent=11 // pred_check
        %p324 = pneg %p112
      $region18: #{pose_mamba_forward.17} parent=11 // pred_check_branch
        %326 = sbr.rel (%p324) target = $region20
      $region19: #{pose_mamba_forward.17} parent=11 // pred_region
        _
      $region20: #{pose_mamba_forward.17} parent=11 // pred_fallthru
        _
      // Predicated region
      $region21: #{pose_mamba_forward.17} parent=11 // pred_check
        %p327 = pneg %p133
      $region22: #{pose_mamba_forward.17} parent=11 // pred_check_branch
        %329 = sbr.rel (%p327) target = $region24
      $region23: #{pose_mamba_forward.17} parent=11 // pred_region
        _
      $region24: #{pose_mamba_forward.17} parent=11 // pred_fallthru
        _
      // Predicated region
      $region25: #{pose_mamba_forward.17} parent=11 // pred_check
        %p330 = pneg %p154
      $region26: #{pose_mamba_forward.17} parent=11 // pred_check_branch
        %332 = sbr.rel (%p330) target = $region28
      $region27: #{pose_mamba_forward.17} parent=11 // pred_region
        _
      $region28: #{pose_mamba_forward.17} parent=11 // pred_fallthru
        _
      // Predicated region
      $region29: #{pose_mamba_forward.17} parent=11 // pred_check
        %p333 = pneg %p175
      $region30: #{pose_mamba_forward.17} parent=11 // pred_check_branch
        %335 = sbr.rel (%p333) target = $region32
      $region31: #{pose_mamba_forward.17} parent=11 // pred_region
        _
      $region32: #{pose_mamba_forward.17} parent=11 // pred_fallthru
        _
      // Predicated region
      $region33: #{pose_mamba_forward.17} parent=11 // pred_check
        %p336 = pneg %p196
      $region34: #{pose_mamba_forward.17} parent=11 // pred_check_branch
        %338 = sbr.rel (%p336) target = $region36
      $region35: #{pose_mamba_forward.17} parent=11 // pred_region
        _
      $region36: #{pose_mamba_forward.17} parent=11 // pred_fallthru
        _
      // Predicated region
      $region37: #{pose_mamba_forward.17} parent=11 // pred_check
        %p339 = pneg %p217
      $region38: #{pose_mamba_forward.17} parent=11 // pred_check_branch
        %341 = sbr.rel (%p339) target = $region40
      $region39: #{pose_mamba_forward.17} parent=11 // pred_region
        _
      $region40: #{pose_mamba_forward.17} parent=11 // pred_fallthru
        _
      // Predicated region
      $region41: #{pose_mamba_forward.17} parent=11 // pred_check
        %p342 = pneg %p238
      $region42: #{pose_mamba_forward.17} parent=11 // pred_check_branch
        %344 = sbr.rel (%p342) target = $region44
      $region43: #{pose_mamba_forward.17} parent=11 // pred_region
        _
      $region44: #{pose_mamba_forward.17} parent=11 // pred_fallthru
        _
      // Predicated region
      $region45: #{pose_mamba_forward.17} parent=11 // pred_check
        %p345 = pneg %p259
      $region46: #{pose_mamba_forward.17} parent=11 // pred_check_branch
        %347 = sbr.rel (%p345) target = $region48
      $region47: #{pose_mamba_forward.17} parent=11 // pred_region
        _
      $region48: #{pose_mamba_forward.17} parent=11 // pred_fallthru
        _
      // Predicated region
      $region49: #{pose_mamba_forward.17} parent=11 // pred_check
        %p348 = pneg %p280
      $region50: #{pose_mamba_forward.17} parent=11 // pred_check_branch
        %350 = sbr.rel (%p348) target = $region52
      $region51: #{pose_mamba_forward.17} parent=11 // pred_region
        _
      $region52: #{pose_mamba_forward.17} parent=11 // pred_fallthru
        _
    $region12: #{pose_mamba_forward.17} parent=5 // pred_fallthru
      _
    %p351 = scmp.lt.s32.totalorder %s18, 2
    // Predicated region
    $region53: #{pose_mamba_forward.17} parent=5 // pred_check
      %p352 = pneg %p351
    $region54: #{pose_mamba_forward.17} parent=5 // pred_check_branch
      %354 = sbr.rel (%p352) target = $region56
    $region55: #{pose_mamba_forward.17} parent=5 // pred_region
      // Predicated region
      $region57: #{pose_mamba_forward.17} parent=55 // pred_check
        %p355 = pneg %p38
      $region58: #{pose_mamba_forward.17} parent=55 // pred_check_branch
        %357 = sbr.rel (%p355) target = $region60
      $region59: #{pose_mamba_forward.17} parent=55 // pred_region
        %s358 = smul.u32 4, %s18
        %p359 = scmp.lt.s32.totalorder %s358, 7
        %s360 = scalar_select %p359, %s358, 7
        %s361 = smul.addr %s360, 4
        %s362 = scalar_lea.vmem %s0, %s361
        %s363 = smul.u32 4, %s18
      $region60: #{pose_mamba_forward.17} parent=55 // pred_fallthru
        _
      // Predicated region
      $region61: #{pose_mamba_forward.17} parent=55 // pred_check
        %p364 = pneg %p64
      $region62: #{pose_mamba_forward.17} parent=55 // pred_check_branch
        %366 = sbr.rel (%p364) target = $region64
      $region63: #{pose_mamba_forward.17} parent=55 // pred_region
        %s367 = smul.u32 4, %s18
        %p368 = scmp.lt.s32.totalorder %s367, 7
        %s369 = scalar_select %p368, %s367, 7
        %s370 = smul.addr %s369, 4
        %s371 = scalar_lea.vmem %s1, %s370
        %s372 = smul.u32 4, %s18
      $region64: #{pose_mamba_forward.17} parent=55 // pred_fallthru
        _
    $region56: #{pose_mamba_forward.17} parent=5 // pred_fallthru
      _
    %p373 = scmp.le.s32.totalorder 1, %s18
    %p374 = scmp.lt.s32.totalorder %s18, 3
    %p375 = pnand %p373, %p374
    %p376 = pneg %p375
    // Predicated region
    $region65: #{pose_mamba_forward.17} parent=5 // pred_check
      _
    $region66: #{pose_mamba_forward.17} parent=5 // pred_check_branch
      %378 = sbr.rel (%p375) target = $region68
    $region67: #{pose_mamba_forward.17} parent=5 // pred_region
      %s379 = ssub.s32 %s18, 1
      %s380 = smul.u32 4, %s23
      %p381 = scmp.lt.s32.totalorder %s380, 7
      %s382 = scalar_select %p381, %s380, 7
      %s383 = smul.addr %s382, 4
      %s384 = scalar_lea.vmem %s0, %s383
      %p385 = pneg %p44
      %p386 = pneg %p41
      %s387 = smul.u32 4, %s23
      %p388 = scmp.lt.s32.totalorder %s387, 7
      %s389 = scalar_select %p388, %s387, 7
      %s390 = smul.addr %s389, 4
      %s391 = scalar_lea.vmem %s1, %s390
      %p392 = pneg %p70
      %p393 = pneg %p67
      %p394 = pneg %p91
      %p395 = pneg %p88
      %p396 = pneg %p112
      %p397 = pneg %p109
      %p398 = pneg %p133
      %p399 = pneg %p130
      %p400 = pneg %p154
      %p401 = pneg %p151
      %p402 = pneg %p175
      %p403 = pneg %p172
      %p404 = pneg %p196
      %p405 = pneg %p193
      %p406 = pneg %p217
      %p407 = pneg %p214
      %p408 = pneg %p238
      %p409 = pneg %p235
      %p410 = pneg %p259
      %p411 = pneg %p256
      %p412 = pneg %p280
      %p413 = pneg %p277
      %p414 = pneg %p306
      %p415 = pneg %p303
      %s416 = smul.u32 4, %s23
      %p417 = scmp.lt.s32.totalorder %s416, 7
      %s418 = scalar_select %p417, %s416, 7
      %s419 = smul.addr %s418, 4
      %s420 = scalar_lea.vmem %s12, %s419
      %s421 = smul.u32 4, %s23
      %p422 = scmp.lt.s32.totalorder %s421, 7
      %s423 = scalar_select %p422, %s421, 7
      %s424 = smul.addr %s423, 4
      %s425 = scalar_lea.vmem %s0, %s424
      %s426 = smul.u32 4, %s23
      %s427 = smul.u32 4, %s23
      %p428 = scmp.lt.s32.totalorder %s427, 7
      %s429 = scalar_select %p428, %s427, 7
      %s430 = smul.addr %s429, 4
      %s431 = scalar_lea.vmem %s1, %s430
      %s432 = smul.u32 4, %s23
      %s433 = smul.u32 4, %s23
      %p434 = scmp.lt.s32.totalorder %s433, 7
      %s435 = scalar_select %p434, %s433, 7
      %s436 = smul.addr %s435, 4
      %s437 = scalar_lea.vmem %s12, %s436
      %s438 = smul.u32 4, %s23
      %v440 = vld [vmem:[%s431] sm:$0xf]
      %v441 = vld [vmem:[%s431 + $0x4] sm:$0xf]
      %v442 = vld [vmem:[%s431 + $0x8] sm:$0xf]
      %v443 = vld [vmem:[%s431 + $0xc] sm:$0xf]
      %v444 = vld [vmem:[%s2] sm:$0xf]
      %v445 = vld [vmem:[%s2 + $0x4] sm:$0xf]
      %v446 = vld [vmem:[%s2 + $0x8] sm:$0xf]
      %v447 = vld [vmem:[%s2 + $0xc] sm:$0xf]
      %v448 = vld [vmem:[%s3] sm:$0x1]
      %v450 = vlaneseq
      %v451 = vshrl.u32 %v450, 7
      %v452 = vsub.s32 0, %v451
      %v453 = vrot.slane %v448, %v452
      %v459 = vunpack.c.l.b16 %v440
      %v460 = vunpack.c.l.b16 %v441
      %v461 = vunpack.c.l.b16 %v442
      %v462 = vunpack.c.l.b16 %v443
      %v463 = vpack.c.b16 %v460, %v459
      %v464 = vpack.c.b16 %v462, %v461
      %v469 = vunpack.c.l.b16 %v444
      %v470 = vunpack.c.l.b16 %v445
      %v471 = vunpack.c.l.b16 %v446
      %v472 = vunpack.c.l.b16 %v447
      %v473 = vpack.c.b16 %v470, %v469
      %v474 = vpack.c.b16 %v472, %v471
      %vm477 = vcmask 261120
      %v479 = vsel %vm477, %v463, 0
      %v482 = vsel %vm477, %v464, 0
      %484 = vmatprep.subr.bf16.mxu0 0
      %485 = vmatpush1.bf16.msra.mxu0 %v473
      %486 = vmatprep.subr.bf16.mxu0 0
      %487 = vmatpush1.bf16.msra.mxu0 %v474
      %488 = vmatprep.subr.bf16.mxu0 0
      %489 = vmatpush1.bf16.msra.mxu0 0
      %490 = vmatprep.subr.bf16.mxu0 0
      %491 = vmatpush1.bf16.msra.mxu0 0
      %492 = vmatprep.subr.bf16.mxu0 0
      %493 = vmatpush1.bf16.msra.mxu0 0
      %494 = vmatprep.subr.bf16.mxu0 0
      %495 = vmatpush1.bf16.msra.mxu0 0
      %496 = vmatprep.subr.bf16.mxu0 0
      %497 = vmatpush1.bf16.msra.mxu0 0
      %498 = vmatprep.subr.bf16.mxu0 0
      %499 = vmatpush1.bf16.msra.mxu0 0
      %500 = vmatprep.subr.bf16.mxu0 0
      %501 = vmatpush1.bf16.msra.mxu0 0
      %502 = vmatprep.subr.bf16.mxu0 0
      %503 = vmatpush1.bf16.msra.mxu0 0
      %504 = vmatprep.subr.bf16.mxu0 0
      %505 = vmatpush1.bf16.msra.mxu0 0
      %506 = vmatprep.subr.bf16.mxu0 0
      %507 = vmatpush1.bf16.msra.mxu0 0
      %508 = vmatprep.subr.bf16.mxu0 0
      %509 = vmatpush1.bf16.msra.mxu0 0
      %510 = vmatprep.subr.bf16.mxu0 0
      %511 = vmatpush1.bf16.msra.mxu0 0
      %512 = vmatprep.subr.bf16.mxu0 0
      %513 = vmatpush1.bf16.msra.mxu0 0
      %514 = vmatprep.subr.bf16.mxu0 0
      %515 = vmatpush1.bf16.msra.mxu0 0
      %516 = vmatprep.mubr.bf16.mxu0 0
      %517 = vmatmul.mubr.bf16.gmra.mrb[0].mxu0 %v479
      %v518 = vpop.f32.mrb[0].mxu0
      %v519 = vadd.f32 %v453, %v518
      %v520 = vpop.f32.mrb[0].mxu0
      %v521 = vpop.f32.mrb[0].mxu0
      %v522 = vadd.f32 %v453, %v521
      %v523 = vpop.f32.mrb[0].mxu0
      %524 = vmatprep.mubr.bf16.mxu0 0
      %525 = vmatmul.mubr.bf16.gmra.mrb[0].mxu0 %v482
      %v526 = vpop.f32.mrb[0].mxu0
      %v527 = vadd.f32 %v453, %v526
      %v528 = vpop.f32.mrb[0].mxu0
      %v529 = vpop.f32.mrb[0].mxu0
      %v530 = vadd.f32 %v453, %v529
      %v531 = vpop.f32.mrb[0].mxu0
      %532 = vdwg.mxu0
      %v533 = vld [vmem:[%s425] sm:$0xf]
      %v534 = vld [vmem:[%s425 + $0x4] sm:$0xf]
      %v535 = vld [vmem:[%s425 + $0x8] sm:$0xf]
      %v536 = vld [vmem:[%s425 + $0xc] sm:$0xf]
      %v537 = vunpack.c.l.bf16 %v533
      %v538 = vunpack.c.l.bf16 %v534
      %v539 = vunpack.c.l.bf16 %v535
      %v540 = vunpack.c.l.bf16 %v536
      %v541 = vadd.f32 %v537, %v519
      %v542 = vadd.f32 %v538, %v522
      %v543 = vadd.f32 %v539, %v527
      %v544 = vadd.f32 %v540, %v530
      %v545 = vld [vmem:[%s4] sm:$0x1]
      %v546 = vld [vmem:[%s5] sm:$0x1]
      %v547 = vsel %vm477, %v541, 0.0
      %548 = vadd.xlane.f32.xlu0 %v547
      %v549 = vpop.xlane.xlu0 %548
      %v550 = vsel %vm477, %v542, 0.0
      %551 = vadd.xlane.f32.xlu0 %v550
      %v552 = vpop.xlane.xlu0 %551
      %v553 = vsel %vm477, %v543, 0.0
      %554 = vadd.xlane.f32.xlu0 %v553
      %v555 = vpop.xlane.xlu0 %554
      %v556 = vsel %vm477, %v544, 0.0
      %557 = vadd.xlane.f32.xlu0 %v556
      %v558 = vpop.xlane.xlu0 %557
      %v559 = vrcp.pop 32.0
      %v560 = vmul.f32 %v549, %v559
      %v561 = vmul.f32 %v552, %v559
      %v562 = vmul.f32 %v555, %v559
      %v563 = vmul.f32 %v558, %v559
      %v564 = vsub.f32 %v541, %v560
      %v565 = vsub.f32 %v542, %v561
      %v566 = vsub.f32 %v543, %v562
      %v567 = vsub.f32 %v544, %v563
      %v568 = vmul.f32 %v564, %v564
      %v569 = vmul.f32 %v565, %v565
      %v570 = vmul.f32 %v566, %v566
      %v571 = vmul.f32 %v567, %v567
      %v572 = vsel %vm477, %v568, 0.0
      %573 = vadd.xlane.f32.xlu0 %v572
      %v574 = vpop.xlane.xlu0 %573
      %v575 = vsel %vm477, %v569, 0.0
      %576 = vadd.xlane.f32.xlu0 %v575
      %v577 = vpop.xlane.xlu0 %576
      %v578 = vsel %vm477, %v570, 0.0
      %579 = vadd.xlane.f32.xlu0 %v578
      %v580 = vpop.xlane.xlu0 %579
      %v581 = vsel %vm477, %v571, 0.0
      %582 = vadd.xlane.f32.xlu0 %v581
      %v583 = vpop.xlane.xlu0 %582
      %v584 = vmul.f32 %v574, %v559
      %v585 = vmul.f32 %v577, %v559
      %v586 = vmul.f32 %v580, %v559
      %v587 = vmul.f32 %v583, %v559
      %v588 = vadd.f32 %v584, 1e-06
      %v589 = vadd.f32 %v585, 1e-06
      %v590 = vadd.f32 %v586, 1e-06
      %v591 = vadd.f32 %v587, 1e-06
      %v592 = vrsqrt.pop %v588
      %v593 = vrsqrt.pop %v589
      %v594 = vrsqrt.pop %v590
      %v595 = vrsqrt.pop %v591
      %v596 = vmul.f32 %v564, %v592
      %v597 = vmul.f32 %v565, %v593
      %v598 = vmul.f32 %v566, %v594
      %v599 = vmul.f32 %v567, %v595
      %v601 = vlaneseq
      %v602 = vshrl.u32 %v601, 7
      %v603 = vsub.s32 0, %v602
      %v604 = vrot.slane %v545, %v603
      %v606 = vmul.f32 %v596, %v604
      %v607 = vmul.f32 %v597, %v604
      %v608 = vmul.f32 %v598, %v604
      %v609 = vmul.f32 %v599, %v604
      %v611 = vlaneseq
      %v612 = vshrl.u32 %v611, 7
      %v613 = vsub.s32 0, %v612
      %v614 = vrot.slane %v546, %v613
      %v616 = vadd.f32 %v606, %v614
      %v617 = vadd.f32 %v607, %v614
      %v618 = vadd.f32 %v608, %v614
      %v619 = vadd.f32 %v609, %v614
      %v620 = vpack.c.bf16 %v617, %v616
      %v621 = vpack.c.bf16 %v619, %v618
      %v622 = vld [vmem:[%s6] sm:$0xf]
      %v623 = vld [vmem:[%s6 + $0x4] sm:$0xf]
      %v624 = vld [vmem:[%s6 + $0x8] sm:$0xf]
      %v625 = vld [vmem:[%s6 + $0xc] sm:$0xf]
      %v626 = vld [vmem:[%s7] sm:$0x1]
      %v628 = vlaneseq
      %v629 = vshrl.u32 %v628, 7
      %v630 = vsub.s32 0, %v629
      %v631 = vrot.slane %v626, %v630
      %v637 = vunpack.c.l.b16 %v622
      %v638 = vunpack.c.l.b16 %v623
      %v639 = vunpack.c.l.b16 %v624
      %v640 = vunpack.c.l.b16 %v625
      %v641 = vpack.c.b16 %v638, %v637
      %v642 = vpack.c.b16 %v640, %v639
      %v646 = vsel %vm477, %v620, 0
      %v649 = vsel %vm477, %v621, 0
      %651 = vmatprep.subr.bf16.mxu0 0
      %652 = vmatpush1.bf16.msra.mxu0 %v641
      %653 = vmatprep.subr.bf16.mxu0 0
      %654 = vmatpush1.bf16.msra.mxu0 %v642
      %655 = vmatprep.subr.bf16.mxu0 0
      %656 = vmatpush1.bf16.msra.mxu0 0
      %657 = vmatprep.subr.bf16.mxu0 0
      %658 = vmatpush1.bf16.msra.mxu0 0
      %659 = vmatprep.subr.bf16.mxu0 0
      %660 = vmatpush1.bf16.msra.mxu0 0
      %661 = vmatprep.subr.bf16.mxu0 0
      %662 = vmatpush1.bf16.msra.mxu0 0
      %663 = vmatprep.subr.bf16.mxu0 0
      %664 = vmatpush1.bf16.msra.mxu0 0
      %665 = vmatprep.subr.bf16.mxu0 0
      %666 = vmatpush1.bf16.msra.mxu0 0
      %667 = vmatprep.subr.bf16.mxu0 0
      %668 = vmatpush1.bf16.msra.mxu0 0
      %669 = vmatprep.subr.bf16.mxu0 0
      %670 = vmatpush1.bf16.msra.mxu0 0
      %671 = vmatprep.subr.bf16.mxu0 0
      %672 = vmatpush1.bf16.msra.mxu0 0
      %673 = vmatprep.subr.bf16.mxu0 0
      %674 = vmatpush1.bf16.msra.mxu0 0
      %675 = vmatprep.subr.bf16.mxu0 0
      %676 = vmatpush1.bf16.msra.mxu0 0
      %677 = vmatprep.subr.bf16.mxu0 0
      %678 = vmatpush1.bf16.msra.mxu0 0
      %679 = vmatprep.subr.bf16.mxu0 0
      %680 = vmatpush1.bf16.msra.mxu0 0
      %681 = vmatprep.subr.bf16.mxu0 0
      %682 = vmatpush1.bf16.msra.mxu0 0
      %683 = vmatprep.mubr.bf16.mxu0 0
      %684 = vmatmul.mubr.bf16.gmra.mrb[0].mxu0 %v646
      %v685 = vpop.f32.mrb[0].mxu0
      %v686 = vadd.f32 %v631, %v685
      %v687 = vpop.f32.mrb[0].mxu0
      %v688 = vpop.f32.mrb[0].mxu0
      %v689 = vadd.f32 %v631, %v688
      %v690 = vpop.f32.mrb[0].mxu0
      %691 = vmatprep.mubr.bf16.mxu0 0
      %692 = vmatmul.mubr.bf16.gmra.mrb[0].mxu0 %v649
      %v693 = vpop.f32.mrb[0].mxu0
      %v694 = vadd.f32 %v631, %v693
      %v695 = vpop.f32.mrb[0].mxu0
      %v696 = vpop.f32.mrb[0].mxu0
      %v697 = vadd.f32 %v631, %v696
      %v698 = vpop.f32.mrb[0].mxu0
      %699 = vdwg.mxu0
      %v700 = vmul.f32 %v686, %v686
      %v701 = vmul.f32 %v689, %v689
      %v702 = vmul.f32 %v694, %v694
      %v703 = vmul.f32 %v697, %v697
      %v704 = vmul.f32 %v686, %v700
      %v705 = vmul.f32 %v689, %v701
      %v706 = vmul.f32 %v694, %v702
      %v707 = vmul.f32 %v697, %v703
      %v708 = vmul.f32 %v704, 0.044715
      %v709 = vmul.f32 %v705, 0.044715
      %v710 = vmul.f32 %v706, 0.044715
      %v711 = vmul.f32 %v707, 0.044715
      %v712 = vadd.f32 %v686, %v708
      %v713 = vadd.f32 %v689, %v709
      %v714 = vadd.f32 %v694, %v710
      %v715 = vadd.f32 %v697, %v711
      %v716 = vmul.f32 %v712, 0.7978846
      %v717 = vmul.f32 %v713, 0.7978846
      %v718 = vmul.f32 %v714, 0.7978846
      %v719 = vmul.f32 %v715, 0.7978846
      %v720 = vtanh.pop %v716
      %v721 = vtanh.pop %v717
      %v722 = vtanh.pop %v718
      %v723 = vtanh.pop %v719
      %v724 = vadd.f32 %v720, 1.0
      %v725 = vadd.f32 %v721, 1.0
      %v726 = vadd.f32 %v722, 1.0
      %v727 = vadd.f32 %v723, 1.0
      %v728 = vmul.f32 %v724, 0.5
      %v729 = vmul.f32 %v725, 0.5
      %v730 = vmul.f32 %v726, 0.5
      %v731 = vmul.f32 %v727, 0.5
      %v732 = vmul.f32 %v686, %v728
      %v733 = vmul.f32 %v689, %v729
      %v734 = vmul.f32 %v694, %v730
      %v735 = vmul.f32 %v697, %v731
      %v736 = vpack.c.bf16 %v733, %v732
      %v737 = vpack.c.bf16 %v735, %v734
      %v738 = vld [vmem:[%s8] sm:$0xf]
      %v739 = vld [vmem:[%s8 + $0x4] sm:$0xf]
      %v740 = vld [vmem:[%s8 + $0x8] sm:$0xf]
      %v741 = vld [vmem:[%s8 + $0xc] sm:$0xf]
      %v742 = vld [vmem:[%s8 + $0x10] sm:$0xf]
      %v743 = vld [vmem:[%s8 + $0x14] sm:$0xf]
      %v744 = vld [vmem:[%s8 + $0x18] sm:$0xf]
      %v745 = vld [vmem:[%s8 + $0x1c] sm:$0xf]
      %v746 = vld [vmem:[%s9] sm:$0x1]
      %v748 = vlaneseq
      %v749 = vshrl.u32 %v748, 7
      %v750 = vsub.s32 0, %v749
      %v751 = vrot.slane %v746, %v750
      %v761 = vunpack.c.l.b16 %v738
      %v762 = vunpack.c.l.b16 %v739
      %v763 = vunpack.c.l.b16 %v740
      %v764 = vunpack.c.l.b16 %v741
      %v765 = vunpack.c.l.b16 %v742
      %v766 = vunpack.c.l.b16 %v743
      %v767 = vunpack.c.l.b16 %v744
      %v768 = vunpack.c.l.b16 %v745
      %v769 = vpack.c.b16 %v762, %v761
      %v770 = vpack.c.b16 %v764, %v763
      %v771 = vpack.c.b16 %v766, %v765
      %v772 = vpack.c.b16 %v768, %v767
      %vm777 = vcmask 523264
      %v779 = vsel %vm777, %v736, 0
      %v782 = vsel %vm777, %v737, 0
      %784 = vmatprep.subr.bf16.mxu0 0
      %785 = vmatpush1.bf16.msra.mxu0 %v769
      %786 = vmatprep.subr.bf16.mxu0 0
      %787 = vmatpush1.bf16.msra.mxu0 %v770
      %788 = vmatprep.subr.bf16.mxu0 0
      %789 = vmatpush1.bf16.msra.mxu0 %v771
      %790 = vmatprep.subr.bf16.mxu0 0
      %791 = vmatpush1.bf16.msra.mxu0 %v772
      %792 = vmatprep.subr.bf16.mxu0 0
      %793 = vmatpush1.bf16.msra.mxu0 0
      %794 = vmatprep.subr.bf16.mxu0 0
      %795 = vmatpush1.bf16.msra.mxu0 0
      %796 = vmatprep.subr.bf16.mxu0 0
      %797 = vmatpush1.bf16.msra.mxu0 0
      %798 = vmatprep.subr.bf16.mxu0 0
      %799 = vmatpush1.bf16.msra.mxu0 0
      %800 = vmatprep.subr.bf16.mxu0 0
      %801 = vmatpush1.bf16.msra.mxu0 0
      %802 = vmatprep.subr.bf16.mxu0 0
      %803 = vmatpush1.bf16.msra.mxu0 0
      %804 = vmatprep.subr.bf16.mxu0 0
      %805 = vmatpush1.bf16.msra.mxu0 0
      %806 = vmatprep.subr.bf16.mxu0 0
      %807 = vmatpush1.bf16.msra.mxu0 0
      %808 = vmatprep.subr.bf16.mxu0 0
      %809 = vmatpush1.bf16.msra.mxu0 0
      %810 = vmatprep.subr.bf16.mxu0 0
      %811 = vmatpush1.bf16.msra.mxu0 0
      %812 = vmatprep.subr.bf16.mxu0 0
      %813 = vmatpush1.bf16.msra.mxu0 0
      %814 = vmatprep.subr.bf16.mxu0 0
      %815 = vmatpush1.bf16.msra.mxu0 0
      %816 = vmatprep.mubr.bf16.mxu0 0
      %817 = vmatmul.mubr.bf16.gmra.mrb[0].mxu0 %v779
      %v818 = vpop.f32.mrb[0].mxu0
      %v819 = vadd.f32 %v751, %v818
      %v820 = vpop.f32.mrb[0].mxu0
      %v821 = vpop.f32.mrb[0].mxu0
      %v822 = vadd.f32 %v751, %v821
      %v823 = vpop.f32.mrb[0].mxu0
      %824 = vmatprep.mubr.bf16.mxu0 0
      %825 = vmatmul.mubr.bf16.gmra.mrb[0].mxu0 %v782
      %v826 = vpop.f32.mrb[0].mxu0
      %v827 = vadd.f32 %v751, %v826
      %v828 = vpop.f32.mrb[0].mxu0
      %v829 = vpop.f32.mrb[0].mxu0
      %v830 = vadd.f32 %v751, %v829
      %v831 = vpop.f32.mrb[0].mxu0
      %832 = vdwg.mxu0
      %v833 = vadd.f32 %v541, %v819
      %v834 = vadd.f32 %v542, %v822
      %v835 = vadd.f32 %v543, %v827
      %v836 = vadd.f32 %v544, %v830
      %v837 = vld [vmem:[%s10] sm:$0x1]
      %v838 = vld [vmem:[%s11] sm:$0x1]
      %v839 = vsel %vm477, %v833, 0.0
      %840 = vadd.xlane.f32.xlu0 %v839
      %v841 = vpop.xlane.xlu0 %840
      %v842 = vsel %vm477, %v834, 0.0
      %843 = vadd.xlane.f32.xlu0 %v842
      %v844 = vpop.xlane.xlu0 %843
      %v845 = vsel %vm477, %v835, 0.0
      %846 = vadd.xlane.f32.xlu0 %v845
      %v847 = vpop.xlane.xlu0 %846
      %v848 = vsel %vm477, %v836, 0.0
      %849 = vadd.xlane.f32.xlu0 %v848
      %v850 = vpop.xlane.xlu0 %849
      %v851 = vmul.f32 %v841, %v559
      %v852 = vmul.f32 %v844, %v559
      %v853 = vmul.f32 %v847, %v559
      %v854 = vmul.f32 %v850, %v559
      %v855 = vsub.f32 %v833, %v851
      %v856 = vsub.f32 %v834, %v852
      %v857 = vsub.f32 %v835, %v853
      %v858 = vsub.f32 %v836, %v854
      %v859 = vmul.f32 %v855, %v855
      %v860 = vmul.f32 %v856, %v856
      %v861 = vmul.f32 %v857, %v857
      %v862 = vmul.f32 %v858, %v858
      %v863 = vsel %vm477, %v859, 0.0
      %864 = vadd.xlane.f32.xlu0 %v863
      %v865 = vpop.xlane.xlu0 %864
      %v866 = vsel %vm477, %v860, 0.0
      %867 = vadd.xlane.f32.xlu0 %v866
      %v868 = vpop.xlane.xlu0 %867
      %v869 = vsel %vm477, %v861, 0.0
      %870 = vadd.xlane.f32.xlu0 %v869
      %v871 = vpop.xlane.xlu0 %870
      %v872 = vsel %vm477, %v862, 0.0
      %873 = vadd.xlane.f32.xlu0 %v872
      %v874 = vpop.xlane.xlu0 %873
      %v875 = vmul.f32 %v865, %v559
      %v876 = vmul.f32 %v868, %v559
      %v877 = vmul.f32 %v871, %v559
      %v878 = vmul.f32 %v874, %v559
      %v879 = vadd.f32 %v875, 1e-06
      %v880 = vadd.f32 %v876, 1e-06
      %v881 = vadd.f32 %v877, 1e-06
      %v882 = vadd.f32 %v878, 1e-06
      %v883 = vrsqrt.pop %v879
      %v884 = vrsqrt.pop %v880
      %v885 = vrsqrt.pop %v881
      %v886 = vrsqrt.pop %v882
      %v887 = vmul.f32 %v855, %v883
      %v888 = vmul.f32 %v856, %v884
      %v889 = vmul.f32 %v857, %v885
      %v890 = vmul.f32 %v858, %v886
      %v892 = vlaneseq
      %v893 = vshrl.u32 %v892, 7
      %v894 = vsub.s32 0, %v893
      %v895 = vrot.slane %v837, %v894
      %v897 = vmul.f32 %v887, %v895
      %v898 = vmul.f32 %v888, %v895
      %v899 = vmul.f32 %v889, %v895
      %v900 = vmul.f32 %v890, %v895
      %v902 = vlaneseq
      %v903 = vshrl.u32 %v902, 7
      %v904 = vsub.s32 0, %v903
      %v905 = vrot.slane %v838, %v904
      %v907 = vadd.f32 %v897, %v905
      %v908 = vadd.f32 %v898, %v905
      %v909 = vadd.f32 %v899, %v905
      %v910 = vadd.f32 %v900, %v905
      %v911 = vpack.c.bf16 %v908, %v907
      %v912 = vpack.c.bf16 %v910, %v909
      %v915 = vunpack.c.l.b16 %v911
      %v916 = vunpack.c.h.b16 %v911
      %v917 = vunpack.c.l.b16 %v912
      %v918 = vunpack.c.h.b16 %v912
      %v919 = vpack.c.b16 %v915, %v915
      %v920 = vpack.c.b16 %v916, %v916
      %v921 = vpack.c.b16 %v917, %v917
      %v922 = vpack.c.b16 %v918, %v918
      %vm927 = vcmask 257024
      %928 = vst.msk [vmem:[%s437] sm:$0xf] %vm927, %v919
      %929 = vst.msk [vmem:[%s437 + $0x4] sm:$0xf] %vm927, %v920
      %930 = vst.msk [vmem:[%s437 + $0x8] sm:$0xf] %vm927, %v921
      %931 = vst.msk [vmem:[%s437 + $0xc] sm:$0xf] %vm927, %v922
      %s932 = smul.u32 4, %s23
      %p933 = scmp.lt.s32.totalorder %s932, 7
      %s934 = scalar_select %p933, %s932, 7
      %s935 = smul.addr %s934, 4
      %s936 = scalar_lea.vmem %s12, %s935
      // Predicated region
      $region69: #{pose_mamba_forward.17} parent=67 // pred_check
        %p937 = pneg %p303
      $region70: #{pose_mamba_forward.17} parent=67 // pred_check_branch
        %939 = sbr.rel (%p937) target = $region72
      $region71: #{pose_mamba_forward.17} parent=67 // pred_region
        %s940 = smul.u32 4, %s23
      $region72: #{pose_mamba_forward.17} parent=67 // pred_fallthru
        _
    $region68: #{pose_mamba_forward.17} parent=5 // pred_fallthru
      _
    %p941 = scmp.le.s32.totalorder 2, %s18
    // Predicated region
    $region73: #{pose_mamba_forward.17} parent=5 // pred_check
      %p942 = pneg %p941
    $region74: #{pose_mamba_forward.17} parent=5 // pred_check_branch
      %944 = sbr.rel (%p942) target = $region76
    $region75: #{pose_mamba_forward.17} parent=5 // pred_region
      %s945 = ssub.s32 %s18, 2
      // Predicated region
      $region77: #{pose_mamba_forward.17} parent=75 // pred_check
        %p946 = pneg %p309
      $region78: #{pose_mamba_forward.17} parent=75 // pred_check_branch
        %948 = sbr.rel (%p946) target = $region80
      $region79: #{pose_mamba_forward.17} parent=75 // pred_region
        %s949 = smul.u32 4, %s24
        %p950 = scmp.lt.s32.totalorder %s949, 7
        %s951 = scalar_select %p950, %s949, 7
        %s952 = smul.addr %s951, 4
        %s953 = scalar_lea.vmem %s12, %s952
      $region80: #{pose_mamba_forward.17} parent=75 // pred_fallthru
        _
    $region76: #{pose_mamba_forward.17} parent=5 // pred_fallthru
      _
  $region6: #{pose_mamba_forward.17} parent=0 // loop_footer
    %s22 = sadd.s32 1, %s18
  $region7: #{pose_mamba_forward.17} parent=0 // loop_footer_branch
    %17 = sbr.rel target = $region3
  $region8: #{pose_mamba_forward.17} parent=0 // loop_exit
    _

// kernel: pose_mamba_forward.27
$region0: #{pose_mamba_forward.27}
  #allocation0 [shape = 'u32[]', space=smem, size = 0x4, offset = 0x4, fixed_abs, tag = 'smem constant byte address 0x4 - core index']
  #allocation1 [shape = 'u32[144,128]{1,0:T(1,128)}', space=vmem, size = 0x12000, scoped, tag = 'internal scratch']
  %s0 = inlined_call_operand.vmem [shape: bf16[64,32], index: 0, kind: input, shape index: {}]
  %s1 = inlined_call_operand.vmem [shape: f32[1,32], index: 1, kind: input, shape index: {}]
  %s2 = inlined_call_operand.vmem [shape: f32[1,32], index: 2, kind: input, shape index: {}]
  %s3 = inlined_call_operand.vmem [shape: bf16[32,128], index: 3, kind: input, shape index: {}]
  %s4 = inlined_call_operand.vmem [shape: f32[1,128], index: 4, kind: input, shape index: {}]
  %s5 = inlined_call_operand.vmem [shape: bf16[64,128], index: 5, kind: output, shape index: {}]
  %s6 = sld [smem:[#allocation0]]
  $region53: #{pose_mamba_forward.27} parent=0
    _
  %s8 = ssub.s32 1, %s6
  %s9 = scalar_select 0, %s8, %s6
  loop: start=0, step=1, limit=4
  $region2: #{pose_mamba_forward.27} parent=0 // loop_pre_header
    _
  $region3: #{pose_mamba_forward.27} parent=0 // loop_header
    %s11 = sphi 0, %s15
    %p12 = scmp.ge.s32.totalorder %s11, 4
    %s21 = sphi 0, %s23
    %s24 = sphi 0, %s21
    %s25 = sphi 0, %s24
    %s41 = sphi 0, %s25
    %s45 = sphi 0, %s45
    %s47 = sphi 0, %s45
    %s48 = sphi 0, %s47
    %s62 = sphi 0, %s48
    %s66 = sphi 0, %s66
    %s68 = sphi 0, %s66
    %s69 = sphi 0, %s68
    %s83 = sphi 0, %s69
    %s87 = sphi 0, %s87
    %s89 = sphi 0, %s87
    %s90 = sphi 0, %s89
    %s104 = sphi 0, %s90
    %s108 = sphi 0, %s108
    %s110 = sphi 0, %s108
    %s111 = sphi 0, %s110
    %s125 = sphi 0, %s111
    %s131 = sphi 0, %s133
    %s134 = sphi 0, %s131
    %s135 = sphi 0, %s134
    %s151 = sphi 0, %s135
  $region4: #{pose_mamba_forward.27} parent=0 // loop_header_branch
    %14 = sbr.rel (%p12) target = $region8
  $region5: #{pose_mamba_forward.27} parent=0 // loop_body
    %s16 = ssub.s32 %s11, 1
    %s17 = ssub.s32 %s11, 2
    %s18 = sadd.s32 %s11, 1
    %s19 = ssub.s32 %s11, %s18
    %p20 = scmp.eq.s32.totalorder %s19, 0
    %s22 = sadd.s32 %s21, 1
    %s23 = scalar_select %p20, %s21, %s22
    %p26 = pneg %p20
    %p27 = scmp.eq.s32.totalorder %s11, 1
    %p28 = por %p26, %p27
    %p29 = scmp.ne.s32.totalorder %s21, %s24
    %p30 = scmp.eq.s32.totalorder %s11, 0
    %p31 = por %p29, %p30
    %p32 = scmp.ne.s32.totalorder %s21, %s24
    %p33 = scmp.eq.s32.totalorder %s16, 1
    %p34 = por %p32, %p33
    %p35 = scmp.ne.s32.totalorder %s24, %s25
    %p36 = scmp.eq.s32.totalorder %s16, 0
    %p37 = por %p35, %p36
    %p38 = scmp.ne.s32.totalorder %s24, %s25
    %p39 = scmp.eq.s32.totalorder %s17, 1
    %p40 = por %p38, %p39
    %p42 = scmp.ne.s32.totalorder %s25, %s41
    %p43 = scmp.eq.s32.totalorder %s17, 0
    %p44 = por %p42, %p43
    %s46 = sadd.s32 %s45, 1
    %p49 = scmp.eq.s32.totalorder %s11, 1
    %p50 = scmp.ne.s32.totalorder %s45, %s47
    %p51 = scmp.eq.s32.totalorder %s11, 0
    %p52 = por %p50, %p51
    %p53 = scmp.ne.s32.totalorder %s45, %s47
    %p54 = scmp.eq.s32.totalorder %s16, 1
    %p55 = por %p53, %p54
    %p56 = scmp.ne.s32.totalorder %s47, %s48
    %p57 = scmp.eq.s32.totalorder %s16, 0
    %p58 = por %p56, %p57
    %p59 = scmp.ne.s32.totalorder %s47, %s48
    %p60 = scmp.eq.s32.totalorder %s17, 1
    %p61 = por %p59, %p60
    %p63 = scmp.ne.s32.totalorder %s48, %s62
    %p64 = scmp.eq.s32.totalorder %s17, 0
    %p65 = por %p63, %p64
    %s67 = sadd.s32 %s66, 1
    %p70 = scmp.eq.s32.totalorder %s11, 1
    %p71 = scmp.ne.s32.totalorder %s66, %s68
    %p72 = scmp.eq.s32.totalorder %s11, 0
    %p73 = por %p71, %p72
    %p74 = scmp.ne.s32.totalorder %s66, %s68
    %p75 = scmp.eq.s32.totalorder %s16, 1
    %p76 = por %p74, %p75
    %p77 = scmp.ne.s32.totalorder %s68, %s69
    %p78 = scmp.eq.s32.totalorder %s16, 0
    %p79 = por %p77, %p78
    %p80 = scmp.ne.s32.totalorder %s68, %s69
    %p81 = scmp.eq.s32.totalorder %s17, 1
    %p82 = por %p80, %p81
    %p84 = scmp.ne.s32.totalorder %s69, %s83
    %p85 = scmp.eq.s32.totalorder %s17, 0
    %p86 = por %p84, %p85
    %s88 = sadd.s32 %s87, 1
    %p91 = scmp.eq.s32.totalorder %s11, 1
    %p92 = scmp.ne.s32.totalorder %s87, %s89
    %p93 = scmp.eq.s32.totalorder %s11, 0
    %p94 = por %p92, %p93
    %p95 = scmp.ne.s32.totalorder %s87, %s89
    %p96 = scmp.eq.s32.totalorder %s16, 1
    %p97 = por %p95, %p96
    %p98 = scmp.ne.s32.totalorder %s89, %s90
    %p99 = scmp.eq.s32.totalorder %s16, 0
    %p100 = por %p98, %p99
    %p101 = scmp.ne.s32.totalorder %s89, %s90
    %p102 = scmp.eq.s32.totalorder %s17, 1
    %p103 = por %p101, %p102
    %p105 = scmp.ne.s32.totalorder %s90, %s104
    %p106 = scmp.eq.s32.totalorder %s17, 0
    %p107 = por %p105, %p106
    %s109 = sadd.s32 %s108, 1
    %p112 = scmp.eq.s32.totalorder %s11, 1
    %p113 = scmp.ne.s32.totalorder %s108, %s110
    %p114 = scmp.eq.s32.totalorder %s11, 0
    %p115 = por %p113, %p114
    %p116 = scmp.ne.s32.totalorder %s108, %s110
    %p117 = scmp.eq.s32.totalorder %s16, 1
    %p118 = por %p116, %p117
    %p119 = scmp.ne.s32.totalorder %s110, %s111
    %p120 = scmp.eq.s32.totalorder %s16, 0
    %p121 = por %p119, %p120
    %p122 = scmp.ne.s32.totalorder %s110, %s111
    %p123 = scmp.eq.s32.totalorder %s17, 1
    %p124 = por %p122, %p123
    %p126 = scmp.ne.s32.totalorder %s111, %s125
    %p127 = scmp.eq.s32.totalorder %s17, 0
    %p128 = por %p126, %p127
    %s129 = ssub.s32 %s11, %s18
    %p130 = scmp.eq.s32.totalorder %s129, 0
    %s132 = sadd.s32 %s131, 1
    %s133 = scalar_select %p130, %s131, %s132
    %p136 = pneg %p130
    %p137 = scmp.eq.s32.totalorder %s11, 1
    %p138 = por %p136, %p137
    %p139 = scmp.ne.s32.totalorder %s131, %s134
    %p140 = scmp.eq.s32.totalorder %s11, 0
    %p141 = por %p139, %p140
    %p142 = scmp.ne.s32.totalorder %s131, %s134
    %p143 = scmp.eq.s32.totalorder %s16, 1
    %p144 = por %p142, %p143
    %p145 = scmp.ne.s32.totalorder %s134, %s135
    %p146 = scmp.eq.s32.totalorder %s16, 0
    %p147 = por %p145, %p146
    %p148 = scmp.ne.s32.totalorder %s134, %s135
    %p149 = scmp.eq.s32.totalorder %s17, 1
    %p150 = por %p148, %p149
    %p152 = scmp.ne.s32.totalorder %s135, %s151
    %p153 = scmp.eq.s32.totalorder %s17, 0
    %p154 = por %p152, %p153
    %p155 = scmp.le.s32.totalorder 1, %s11
    %p156 = scmp.lt.s32.totalorder %s11, 3
    %p157 = pnand %p155, %p156
    %p158 = pneg %p157
    // Predicated region
    $region9: #{pose_mamba_forward.27} parent=5 // pred_check
      _
    $region10: #{pose_mamba_forward.27} parent=5 // pred_check_branch
      %160 = sbr.rel (%p157) target = $region12
    $region11: #{pose_mamba_forward.27} parent=5 // pred_region
      %s161 = ssub.s32 %s11, 1
      // Predicated region
      $region13: #{pose_mamba_forward.27} parent=11 // pred_check
        %p162 = pneg %p58
      $region14: #{pose_mamba_forward.27} parent=11 // pred_check_branch
        %164 = sbr.rel (%p162) target = $region16
      $region15: #{pose_mamba_forward.27} parent=11 // pred_region
        _
      $region16: #{pose_mamba_forward.27} parent=11 // pred_fallthru
        _
      // Predicated region
      $region17: #{pose_mamba_forward.27} parent=11 // pred_check
        %p165 = pneg %p79
      $region18: #{pose_mamba_forward.27} parent=11 // pred_check_branch
        %167 = sbr.rel (%p165) target = $region20
      $region19: #{pose_mamba_forward.27} parent=11 // pred_region
        _
      $region20: #{pose_mamba_forward.27} parent=11 // pred_fallthru
        _
      // Predicated region
      $region21: #{pose_mamba_forward.27} parent=11 // pred_check
        %p168 = pneg %p100
      $region22: #{pose_mamba_forward.27} parent=11 // pred_check_branch
        %170 = sbr.rel (%p168) target = $region24
      $region23: #{pose_mamba_forward.27} parent=11 // pred_region
        _
      $region24: #{pose_mamba_forward.27} parent=11 // pred_fallthru
        _
      // Predicated region
      $region25: #{pose_mamba_forward.27} parent=11 // pred_check
        %p171 = pneg %p121
      $region26: #{pose_mamba_forward.27} parent=11 // pred_check_branch
        %173 = sbr.rel (%p171) target = $region28
      $region27: #{pose_mamba_forward.27} parent=11 // pred_region
        _
      $region28: #{pose_mamba_forward.27} parent=11 // pred_fallthru
        _
    $region12: #{pose_mamba_forward.27} parent=5 // pred_fallthru
      _
    %p174 = scmp.lt.s32.totalorder %s11, 2
    // Predicated region
    $region29: #{pose_mamba_forward.27} parent=5 // pred_check
      %p175 = pneg %p174
    $region30: #{pose_mamba_forward.27} parent=5 // pred_check_branch
      %177 = sbr.rel (%p175) target = $region32
    $region31: #{pose_mamba_forward.27} parent=5 // pred_region
      // Predicated region
      $region33: #{pose_mamba_forward.27} parent=31 // pred_check
        %p178 = pneg %p31
      $region34: #{pose_mamba_forward.27} parent=31 // pred_check_branch
        %180 = sbr.rel (%p178) target = $region36
      $region35: #{pose_mamba_forward.27} parent=31 // pred_region
        %s181 = smul.u32 4, %s11
        %p182 = scmp.lt.s32.totalorder %s181, 7
        %s183 = scalar_select %p182, %s181, 7
        %s184 = smul.addr %s183, 4
        %s185 = scalar_lea.vmem %s0, %s184
        %s186 = smul.u32 4, %s11
      $region36: #{pose_mamba_forward.27} parent=31 // pred_fallthru
        _
    $region32: #{pose_mamba_forward.27} parent=5 // pred_fallthru
      _
    %p187 = scmp.le.s32.totalorder 1, %s11
    %p188 = scmp.lt.s32.totalorder %s11, 3
    %p189 = pnand %p187, %p188
    %p190 = pneg %p189
    // Predicated region
    $region37: #{pose_mamba_forward.27} parent=5 // pred_check
      _
    $region38: #{pose_mamba_forward.27} parent=5 // pred_check_branch
      %192 = sbr.rel (%p189) target = $region40
    $region39: #{pose_mamba_forward.27} parent=5 // pred_region
      %s193 = ssub.s32 %s11, 1
      %s194 = smul.u32 4, %s16
      %p195 = scmp.lt.s32.totalorder %s194, 7
      %s196 = scalar_select %p195, %s194, 7
      %s197 = smul.addr %s196, 4
      %s198 = scalar_lea.vmem %s0, %s197
      %p199 = pneg %p37
      %p200 = pneg %p34
      %p201 = pneg %p58
      %p202 = pneg %p55
      %p203 = pneg %p79
      %p204 = pneg %p76
      %p205 = pneg %p100
      %p206 = pneg %p97
      %p207 = pneg %p121
      %p208 = pneg %p118
      %p209 = pneg %p147
      %p210 = pneg %p144
      %s211 = smul.u32 4, %s16
      %p212 = scmp.lt.s32.totalorder %s211, 7
      %s213 = scalar_select %p212, %s211, 7
      %s214 = smul.addr %s213, 4
      %s215 = scalar_lea.vmem %s5, %s214
      %s216 = smul.u32 4, %s16
      %p217 = scmp.lt.s32.totalorder %s216, 7
      %s218 = scalar_select %p217, %s216, 7
      %s219 = smul.addr %s218, 4
      %s220 = scalar_lea.vmem %s0, %s219
      %s221 = smul.u32 4, %s16
      %s222 = smul.u32 4, %s16
      %p223 = scmp.lt.s32.totalorder %s222, 7
      %s224 = scalar_select %p223, %s222, 7
      %s225 = smul.addr %s224, 4
      %s226 = scalar_lea.vmem %s5, %s225
      %s227 = smul.u32 4, %s16
      %v229 = vld [vmem:[%s220] sm:$0xf]
      %v230 = vld [vmem:[%s220 + $0x4] sm:$0xf]
      %v231 = vld [vmem:[%s220 + $0x8] sm:$0xf]
      %v232 = vld [vmem:[%s220 + $0xc] sm:$0xf]
      %v233 = vunpack.c.l.bf16 %v229
      %v234 = vunpack.c.l.bf16 %v230
      %v235 = vunpack.c.l.bf16 %v231
      %v236 = vunpack.c.l.bf16 %v232
      %v237 = vld [vmem:[%s1] sm:$0x1]
      %v238 = vld [vmem:[%s2] sm:$0x1]
      %vm239 = vcmask 261120
      %v240 = vsel %vm239, %v233, 0.0
      %241 = vadd.xlane.f32.xlu0 %v240
      %v242 = vpop.xlane.xlu0 %241
      %v243 = vsel %vm239, %v234, 0.0
      %244 = vadd.xlane.f32.xlu0 %v243
      %v245 = vpop.xlane.xlu0 %244
      %v246 = vsel %vm239, %v235, 0.0
      %247 = vadd.xlane.f32.xlu0 %v246
      %v248 = vpop.xlane.xlu0 %247
      %v249 = vsel %vm239, %v236, 0.0
      %250 = vadd.xlane.f32.xlu0 %v249
      %v251 = vpop.xlane.xlu0 %250
      %v252 = vrcp.pop 32.0
      %v253 = vmul.f32 %v242, %v252
      %v254 = vmul.f32 %v245, %v252
      %v255 = vmul.f32 %v248, %v252
      %v256 = vmul.f32 %v251, %v252
      %v257 = vsub.f32 %v233, %v253
      %v258 = vsub.f32 %v234, %v254
      %v259 = vsub.f32 %v235, %v255
      %v260 = vsub.f32 %v236, %v256
      %v261 = vmul.f32 %v257, %v257
      %v262 = vmul.f32 %v258, %v258
      %v263 = vmul.f32 %v259, %v259
      %v264 = vmul.f32 %v260, %v260
      %v265 = vsel %vm239, %v261, 0.0
      %266 = vadd.xlane.f32.xlu0 %v265
      %v267 = vpop.xlane.xlu0 %266
      %v268 = vsel %vm239, %v262, 0.0
      %269 = vadd.xlane.f32.xlu0 %v268
      %v270 = vpop.xlane.xlu0 %269
      %v271 = vsel %vm239, %v263, 0.0
      %272 = vadd.xlane.f32.xlu0 %v271
      %v273 = vpop.xlane.xlu0 %272
      %v274 = vsel %vm239, %v264, 0.0
      %275 = vadd.xlane.f32.xlu0 %v274
      %v276 = vpop.xlane.xlu0 %275
      %v277 = vmul.f32 %v267, %v252
      %v278 = vmul.f32 %v270, %v252
      %v279 = vmul.f32 %v273, %v252
      %v280 = vmul.f32 %v276, %v252
      %v281 = vadd.f32 %v277, 1e-05
      %v282 = vadd.f32 %v278, 1e-05
      %v283 = vadd.f32 %v279, 1e-05
      %v284 = vadd.f32 %v280, 1e-05
      %v285 = vrsqrt.pop %v281
      %v286 = vrsqrt.pop %v282
      %v287 = vrsqrt.pop %v283
      %v288 = vrsqrt.pop %v284
      %v289 = vmul.f32 %v257, %v285
      %v290 = vmul.f32 %v258, %v286
      %v291 = vmul.f32 %v259, %v287
      %v292 = vmul.f32 %v260, %v288
      %v294 = vlaneseq
      %v295 = vshrl.u32 %v294, 7
      %v296 = vsub.s32 0, %v295
      %v297 = vrot.slane %v237, %v296
      %v299 = vmul.f32 %v289, %v297
      %v300 = vmul.f32 %v290, %v297
      %v301 = vmul.f32 %v291, %v297
      %v302 = vmul.f32 %v292, %v297
      %v304 = vlaneseq
      %v305 = vshrl.u32 %v304, 7
      %v306 = vsub.s32 0, %v305
      %v307 = vrot.slane %v238, %v306
      %v309 = vadd.f32 %v299, %v307
      %v310 = vadd.f32 %v300, %v307
      %v311 = vadd.f32 %v301, %v307
      %v312 = vadd.f32 %v302, %v307
      %v313 = vpack.c.bf16 %v310, %v309
      %v314 = vpack.c.bf16 %v312, %v311
      %v315 = vld [vmem:[%s3] sm:$0xf]
      %v316 = vld [vmem:[%s3 + $0x4] sm:$0xf]
      %v317 = vld [vmem:[%s3 + $0x8] sm:$0xf]
      %v318 = vld [vmem:[%s3 + $0xc] sm:$0xf]
      %v319 = vld [vmem:[%s4] sm:$0x1]
      %v321 = vlaneseq
      %v322 = vshrl.u32 %v321, 7
      %v323 = vsub.s32 0, %v322
      %v324 = vrot.slane %v319, %v323
      %v330 = vunpack.c.l.b16 %v315
      %v331 = vunpack.c.l.b16 %v316
      %v332 = vunpack.c.l.b16 %v317
      %v333 = vunpack.c.l.b16 %v318
      %v334 = vpack.c.b16 %v331, %v330
      %v335 = vpack.c.b16 %v333, %v332
      %v339 = vsel %vm239, %v313, 0
      %v342 = vsel %vm239, %v314, 0
      %344 = vmatprep.subr.bf16.mxu0 0
      %345 = vmatpush1.bf16.msra.mxu0 %v334
      %346 = vmatprep.subr.bf16.mxu0 0
      %347 = vmatpush1.bf16.msra.mxu0 %v335
      %348 = vmatprep.subr.bf16.mxu0 0
      %349 = vmatpush1.bf16.msra.mxu0 0
      %350 = vmatprep.subr.bf16.mxu0 0
      %351 = vmatpush1.bf16.msra.mxu0 0
      %352 = vmatprep.subr.bf16.mxu0 0
      %353 = vmatpush1.bf16.msra.mxu0 0
      %354 = vmatprep.subr.bf16.mxu0 0
      %355 = vmatpush1.bf16.msra.mxu0 0
      %356 = vmatprep.subr.bf16.mxu0 0
      %357 = vmatpush1.bf16.msra.mxu0 0
      %358 = vmatprep.subr.bf16.mxu0 0
      %359 = vmatpush1.bf16.msra.mxu0 0
      %360 = vmatprep.subr.bf16.mxu0 0
      %361 = vmatpush1.bf16.msra.mxu0 0
      %362 = vmatprep.subr.bf16.mxu0 0
      %363 = vmatpush1.bf16.msra.mxu0 0
      %364 = vmatprep.subr.bf16.mxu0 0
      %365 = vmatpush1.bf16.msra.mxu0 0
      %366 = vmatprep.subr.bf16.mxu0 0
      %367 = vmatpush1.bf16.msra.mxu0 0
      %368 = vmatprep.subr.bf16.mxu0 0
      %369 = vmatpush1.bf16.msra.mxu0 0
      %370 = vmatprep.subr.bf16.mxu0 0
      %371 = vmatpush1.bf16.msra.mxu0 0
      %372 = vmatprep.subr.bf16.mxu0 0
      %373 = vmatpush1.bf16.msra.mxu0 0
      %374 = vmatprep.subr.bf16.mxu0 0
      %375 = vmatpush1.bf16.msra.mxu0 0
      %376 = vmatprep.mubr.bf16.mxu0 0
      %377 = vmatmul.mubr.bf16.gmra.mrb[0].mxu0 %v339
      %v378 = vpop.f32.mrb[0].mxu0
      %v379 = vadd.f32 %v324, %v378
      %v380 = vpop.f32.mrb[0].mxu0
      %v381 = vpop.f32.mrb[0].mxu0
      %v382 = vadd.f32 %v324, %v381
      %v383 = vpop.f32.mrb[0].mxu0
      %384 = vmatprep.mubr.bf16.mxu0 0
      %385 = vmatmul.mubr.bf16.gmra.mrb[0].mxu0 %v342
      %v386 = vpop.f32.mrb[0].mxu0
      %v387 = vadd.f32 %v324, %v386
      %v388 = vpop.f32.mrb[0].mxu0
      %v389 = vpop.f32.mrb[0].mxu0
      %v390 = vadd.f32 %v324, %v389
      %v391 = vpop.f32.mrb[0].mxu0
      %392 = vdwg.mxu0
      %v393 = vpack.c.bf16 %v382, %v379
      %v394 = vpack.c.bf16 %v390, %v387
      %v397 = vunpack.c.l.b16 %v393
      %v398 = vunpack.c.h.b16 %v393
      %v399 = vunpack.c.l.b16 %v394
      %v400 = vunpack.c.h.b16 %v394
      %v401 = vpack.c.b16 %v397, %v397
      %v402 = vpack.c.b16 %v398, %v398
      %v403 = vpack.c.b16 %v399, %v399
      %v404 = vpack.c.b16 %v400, %v400
      %409 = vst [vmem:[%s226] sm:$0xf] %v401
      %410 = vst [vmem:[%s226 + $0x4] sm:$0xf] %v402
      %411 = vst [vmem:[%s226 + $0x8] sm:$0xf] %v403
      %412 = vst [vmem:[%s226 + $0xc] sm:$0xf] %v404
      %s413 = smul.u32 4, %s16
      %p414 = scmp.lt.s32.totalorder %s413, 7
      %s415 = scalar_select %p414, %s413, 7
      %s416 = smul.addr %s415, 4
      %s417 = scalar_lea.vmem %s5, %s416
      // Predicated region
      $region41: #{pose_mamba_forward.27} parent=39 // pred_check
        %p418 = pneg %p144
      $region42: #{pose_mamba_forward.27} parent=39 // pred_check_branch
        %420 = sbr.rel (%p418) target = $region44
      $region43: #{pose_mamba_forward.27} parent=39 // pred_region
        %s421 = smul.u32 4, %s16
      $region44: #{pose_mamba_forward.27} parent=39 // pred_fallthru
        _
    $region40: #{pose_mamba_forward.27} parent=5 // pred_fallthru
      _
    %p422 = scmp.le.s32.totalorder 2, %s11
    // Predicated region
    $region45: #{pose_mamba_forward.27} parent=5 // pred_check
      %p423 = pneg %p422
    $region46: #{pose_mamba_forward.27} parent=5 // pred_check_branch
      %425 = sbr.rel (%p423) target = $region48
    $region47: #{pose_mamba_forward.27} parent=5 // pred_region
      %s426 = ssub.s32 %s11, 2
      // Predicated region
      $region49: #{pose_mamba_forward.27} parent=47 // pred_check
        %p427 = pneg %p150
      $region50: #{pose_mamba_forward.27} parent=47 // pred_check_branch
        %429 = sbr.rel (%p427) target = $region52
      $region51: #{pose_mamba_forward.27} parent=47 // pred_region
        %s430 = smul.u32 4, %s17
        %p431 = scmp.lt.s32.totalorder %s430, 7
        %s432 = scalar_select %p431, %s430, 7
        %s433 = smul.addr %s432, 4
        %s434 = scalar_lea.vmem %s5, %s433
      $region52: #{pose_mamba_forward.27} parent=47 // pred_fallthru
        _
    $region48: #{pose_mamba_forward.27} parent=5 // pred_fallthru
      _
  $region6: #{pose_mamba_forward.27} parent=0 // loop_footer
    %s15 = sadd.s32 1, %s11
  $region7: #{pose_mamba_forward.27} parent=0 // loop_footer_branch
    %10 = sbr.rel target = $region3
  $region8: #{pose_mamba_forward.27} parent=0 // loop_exit
    _

</llo_original>
